<compile_context>
chip_gen: v7x
topology: tpu7x:2x2x1
jax: 0.10.0
libtpu: 0.0.40
codegen_flags: <defaults>
</compile_context>

<pallas_src>
import math
import jax
import jax.numpy as jnp
from jax.experimental import pallas as pl
from jax.experimental.pallas import tpu as pltpu


# VMEM budget (bytes) used when auto-picking tile sizes.  Conservative enough
# for v7x (64 MiB physical VMEM); could be raised on v5e/v6e.
_TILE_BUDGET_BYTES = 12 * 1024 * 1024


def _pick_tile(extent, unit_bytes, budget_bytes=_TILE_BUDGET_BYTES):
    """Largest divisor of `extent` whose tile fits the VMEM budget."""
    best = 1
    for t in range(1, extent + 1):
        if extent % t == 0 and t * unit_bytes <= budget_bytes:
            best = t
    return best


# ----------------------------------------------------------------------------
# Kernel A: conv1 (3,1,1) + BN + ReLU            grid = (N, H/hT)  (no halo)
# ----------------------------------------------------------------------------
def conv1_kernel(x_ref, w_ref, b_ref, o_ref, acc_ref):
    # x_ref  : (1, D, hT, W, Cin) f32    input tile (full D, H-tile)
    # w_ref  : (3, Cin, P)        bf16   conv1 weight with BN scale folded in
    # b_ref  : (1, P)             f32    folded BN bias
    # o_ref  : (1, D, hT, W, P)   bf16   conv1 output tile
    # acc_ref: (D, hT, W, P)      f32    VMEM accumulator scratch
    _, d, ht, w, cin = x_ref.shape
    p = w_ref.shape[-1]
    rows = ht * w

    xb = x_ref[0].astype(jnp.bfloat16)                      # (D, hT, W, Cin)
    xm = xb.reshape(d * rows, cin)

    # centre temporal tap: out[t] += x[t] @ w[1]
    acc_ref[...] = jnp.dot(
        xm, w_ref[1], preferred_element_type=jnp.float32).reshape(d, ht, w, p)
    if d > 1:
        # tap 0: out[t] += x[t-1] @ w[0]   (zero padding at t == 0)
        y0 = jnp.dot(xm[: (d - 1) * rows], w_ref[0],
                     preferred_element_type=jnp.float32)
        acc_ref[1:] = acc_ref[1:] + y0.reshape(d - 1, ht, w, p)
        # tap 2: out[t] += x[t+1] @ w[2]   (zero padding at t == D-1)
        y2 = jnp.dot(xm[rows:], w_ref[2],
                     preferred_element_type=jnp.float32)
        acc_ref[: d - 1] = acc_ref[: d - 1] + y2.reshape(d - 1, ht, w, p)

    out = acc_ref[...].reshape(d * rows, p) + b_ref[...]
    o_ref[...] = jnp.maximum(out, 0.0).reshape(1, d, ht, w, p).astype(o_ref.dtype)


# ----------------------------------------------------------------------------
# Kernel B: conv2 (1,3,3)+BN+ReLU + conv3 (1,1,1)+BN + residual + ReLU
#           grid = (N, D/dT)  (no halo: conv2 mixes only H/W, conv3 pointwise)
# ----------------------------------------------------------------------------
def conv23_kernel(h1_ref, id_ref, w2_ref, b2_ref, w3_ref, b3_ref, o_ref, acc_ref):
    # h1_ref : (1, dT, H, W, P)    bf16   conv1 output tile (full H, W)
    # id_ref : (1, dT, H, W, Cout) f32    residual identity (block input x)
    # w2_ref : (3, 3, P, P)        bf16   conv2 weight with BN scale folded in
    # b2_ref : (1, P)              f32
    # w3_ref : (P, Cout)           bf16   conv3 weight with BN scale folded in
    # b3_ref : (1, Cout)           f32
    # o_ref  : (1, dT, H, W, Cout) f32
    # acc_ref: (dT, H, W, P)       f32    conv2 accumulator scratch
    _, dt, h, w, p = h1_ref.shape
    cout = w3_ref.shape[-1]
    rows = dt * h * w

    hm = h1_ref[0].reshape(rows, p)                         # bf16

    # ---- conv2: per-tap matmul, shifted slice-accumulation (zero padding) --
    acc_ref[...] = jnp.dot(
        hm, w2_ref[1, 1], preferred_element_type=jnp.float32).reshape(dt, h, w, p)
    for kh in range(3):
        for kw in range(3):
            if kh == 1 and kw == 1:
                continue
            oh, ow = kh - 1, kw - 1
            h_lo, h_hi = max(0, -oh), h - max(0, oh)
            w_lo, w_hi = max(0, -ow), w - max(0, ow)
            if h_hi <= h_lo or w_hi <= w_lo:
                continue
            y = jnp.dot(hm, w2_ref[kh, kw],
                        preferred_element_type=jnp.float32).reshape(dt, h, w, p)
            acc_ref[:, h_lo:h_hi, w_lo:w_hi, :] = (
                acc_ref[:, h_lo:h_hi, w_lo:w_hi, :]
                + y[:, h_lo + oh:h_hi + oh, w_lo + ow:w_hi + ow, :])

    h2 = jnp.maximum(acc_ref[...].reshape(rows, p) + b2_ref[...], 0.0)

    # ---- conv3 (1x1x1) + BN + residual + ReLU ------------------------------
    y3 = jnp.dot(h2.astype(jnp.bfloat16), w3_ref[...],
                 preferred_element_type=jnp.float32)        # (rows, Cout)
    out = y3 + b3_ref[...] + id_ref[0].reshape(rows, cout)
    o_ref[...] = jnp.maximum(out, 0.0).reshape(1, dt, h, w, cout).astype(o_ref.dtype)


# ----------------------------------------------------------------------------
# Wrapper
# ----------------------------------------------------------------------------
def bottleneck3d_forward(x, params, *, h_tile=None, d_tile=None):
    """x: (N, D, H, W, Cin) float32, Cin == 4 * planes (no downsample)."""
    n, d, h, w, cin = x.shape
    p = params["w1"].shape[-1]
    cout = params["w3"].shape[-1]
    assert cin == cout, "residual add requires inplanes == planes * expansion"

    f32, bf16 = jnp.float32, jnp.bfloat16
    # Fold eval-mode BN scale into the conv weights (f32), then cast to bf16.
    w1 = (params["w1"] * params["s1"]).astype(bf16)         # (3, Cin, P)
    w2 = (params["w2"] * params["s2"]).astype(bf16)         # (3, 3, P, P)
    w3 = (params["w3"] * params["s3"]).astype(bf16)         # (P, Cout)
    b1 = params["b1"].astype(f32)
    b2 = params["b2"].astype(f32)
    b3 = params["b3"].astype(f32)

    # Tile sizes: largest divisor whose double-buffered activation tiles
    # (+ f32 scratch) fit the per-kernel VMEM budget.
    if h_tile is None:
        unit = d * w * (4 * cin + 2 * p) * 2 + d * w * p * 4
        h_tile = _pick_tile(h, unit)
    if d_tile is None:
        unit = h * w * (2 * p + 4 * cout + 4 * cout) * 2 + h * w * p * 4
        d_tile = _pick_tile(d, unit)

    cparams = pltpu.CompilerParams(
        dimension_semantics=("parallel", "parallel"),
        vmem_limit_bytes=48 * 1024 * 1024,
    )

    def const_spec(shape):     # grid-invariant parameter tensors (resident)
        return pl.BlockSpec(shape, lambda i, j: (0,) * len(shape))

    # ---- kernel A: conv1 + BN + ReLU, tiled over (N, H) --------------------
    h1 = pl.pallas_call(
        conv1_kernel,
        out_shape=jax.ShapeDtypeStruct((n, d, h, w, p), bf16),
        grid=(n, pl.cdiv(h, h_tile)),
        in_specs=[
            pl.BlockSpec((1, d, h_tile, w, cin), lambda i, j: (i, 0, j, 0, 0)),
            const_spec((3, cin, p)),
            const_spec((1, p)),
        ],
        out_specs=pl.BlockSpec((1, d, h_tile, w, p), lambda i, j: (i, 0, j, 0, 0)),
        scratch_shapes=[pltpu.VMEM((d, h_tile, w, p), f32)],
        compiler_params=cparams,
    )(x, w1, b1)

    # ---- kernel B: conv2+BN+ReLU + conv3+BN + residual + ReLU, tiled (N, D) -
    out = pl.pallas_call(
        conv23_kernel,
        out_shape=jax.ShapeDtypeStruct((n, d, h, w, cout), f32),
        grid=(n, pl.cdiv(d, d_tile)),
        in_specs=[
            pl.BlockSpec((1, d_tile, h, w, p), lambda i, j: (i, j, 0, 0, 0)),
            pl.BlockSpec((1, d_tile, h, w, cout), lambda i, j: (i, j, 0, 0, 0)),
            const_spec((3, 3, p, p)),
            const_spec((1, p)),
            const_spec((p, cout)),
            const_spec((1, cout)),
        ],
        out_specs=pl.BlockSpec((1, d_tile, h, w, cout), lambda i, j: (i, j, 0, 0, 0)),
        scratch_shapes=[pltpu.VMEM((d_tile, h, w, p), f32)],
        compiler_params=cparams,
    )(h1, x, w2, b2, w3, b3)
    return out


# ----------------------------------------------------------------------------
# Pure-JAX reference (mirrors the kernel's bf16 weight / activation casts)
# ----------------------------------------------------------------------------
def reference_forward(x, params):
    f32, bf16 = jnp.float32, jnp.bfloat16
    cin = x.shape[-1]
    p = params["w1"].shape[-1]
    cout = params["w3"].shape[-1]

    w1 = (params["w1"] * params["s1"]).astype(bf16).astype(f32)
    w2 = (params["w2"] * params["s2"]).astype(bf16).astype(f32)
    w3 = (params["w3"] * params["s3"]).astype(bf16).astype(f32)

    def conv(a, wgt, padding):
        return jax.lax.conv_general_dilated(
            a, wgt, window_strides=(1, 1, 1), padding=padding,
            dimension_numbers=("NDHWC", "DHWIO", "NDHWC"))

    xb = x.astype(bf16).astype(f32)
    t = conv(xb, w1.reshape(3, 1, 1, cin, p), [(1, 1), (0, 0), (0, 0)]) + params["b1"]
    t = jnp.maximum(t, 0.0)
    t = t.astype(bf16).astype(f32)            # h1 leaves kernel A as bf16
    t = conv(t, w2.reshape(1, 3, 3, p, p), [(0, 0), (1, 1), (1, 1)]) + params["b2"]
    t = jnp.maximum(t, 0.0)
    t = t.astype(bf16).astype(f32)            # conv3 consumes bf16 h2 in kernel B
    t = conv(t, w3.reshape(1, 1, 1, p, cout), [(0, 0), (0, 0), (0, 0)]) + params["b3"] + x
    return jnp.maximum(t, 0.0)


def make_params(key, cin, planes):
    """Deterministic synthetic weights + folded (eval-mode) BatchNorm params."""
    cout = planes * 4  # Bottleneck3d.expansion
    ks = jax.random.split(key, 16)
    eps = 1e-5

    def fold_bn(kg, kb, km, kv, c):
        gamma = jax.random.uniform(kg, (1, c), jnp.float32, 0.5, 1.5)
        beta = 0.1 * jax.random.normal(kb, (1, c), jnp.float32)
        mean = 0.1 * jax.random.normal(km, (1, c), jnp.float32)
        var = jax.random.uniform(kv, (1, c), jnp.float32, 0.5, 1.5)
        scale = gamma / jnp.sqrt(var + eps)
        bias = beta - mean * scale
        return scale, bias

    w1 = jax.random.normal(ks[0], (3, cin, planes), jnp.float32) / math.sqrt(3 * cin)
    w2 = jax.random.normal(ks[1], (3, 3, planes, planes), jnp.float32) / math.sqrt(9 * planes)
    w3 = jax.random.normal(ks[2], (planes, cout), jnp.float32) / math.sqrt(planes)
    s1, b1 = fold_bn(ks[3], ks[4], ks[5], ks[6], planes)
    s2, b2 = fold_bn(ks[7], ks[8], ks[9], ks[10], planes)
    s3, b3 = fold_bn(ks[11], ks[12], ks[13], ks[14], cout)
    return dict(w1=w1, w2=w2, w3=w3, s1=s1, b1=b1, s2=s2, b2=b2, s3=s3, b3=b3)


if __name__ == "__main__":
    # planes=32 -> out channels 128 == inplanes, so the residual needs no
    # downsample; channels-last keeps the conv3 output lane-dense (128 lanes).
    # TODO(synk): downsample / drop_path / non_local branches (all disabled at
    # module defaults) are not implemented.
    N, PLANES, D, H, W = 2, 32, 8, 16, 16
    CIN = PLANES * 4

    key = jax.random.PRNGKey(0)
    kx, kp = jax.random.split(key)
    params = make_params(kp, CIN, PLANES)

    x_ncdhw = jax.random.normal(kx, (N, CIN, D, H, W), jnp.float32)  # PyTorch layout
    x = jnp.transpose(x_ncdhw, (0, 2, 3, 4, 1))                      # -> NDHWC

    # Explicit small tiles so both kernels run a (2, 2) grid at this test size.
    out = bottleneck3d_forward(x, params, h_tile=8, d_tile=4)
    out = jax.block_until_ready(out)
    assert out.shape == (N, D, H, W, CIN)

    ref = reference_forward(x, params)
    err = float(jnp.max(jnp.abs(out - ref)))
    assert jnp.allclose(out, ref, atol=2e-2, rtol=2e-2), "max abs diff %f" % err

    print("KERNEL_OK")
</pallas_src>

<mosaic_0001>
module attributes {stable_mosaic.version = 11 : i64} {
  func.func @conv1_kernel(%arg0: i32, %arg1: i32, %arg2: memref<1x8x8x16x128xf32, #tpu.memory_space<vmem>>, %arg3: memref<3x128x32xbf16, #tpu.memory_space<vmem>>, %arg4: memref<1x32xf32, #tpu.memory_space<vmem>>, %arg5: memref<1x8x8x16x32xbf16, #tpu.memory_space<vmem>>, %arg6: memref<8x8x16x32xf32, #tpu.memory_space<vmem>>) attributes {dimension_semantics = [#tpu.dimension_semantics<parallel>, #tpu.dimension_semantics<parallel>], iteration_bounds = array<i64: 2, 2>, scalar_prefetch = 0 : i64, scratch_operands = 1 : i64, tpu.core_type = #tpu.core_type<tc>, window_params = [{transform_indices = @transform_0, window_bounds = array<i64: 1, 8, 8, 16, 128>}, {pipeline_mode = #tpu.pipeline_mode<synchronous>, transform_indices = @transform_1, window_bounds = array<i64: 3, 128, 32>}, {pipeline_mode = #tpu.pipeline_mode<synchronous>, transform_indices = @transform_2, window_bounds = array<i64: 1, 32>}, {transform_indices = @transform_3, window_bounds = array<i64: 1, 8, 8, 16, 32>}]} {
    %c0 = arith.constant 0 : index
    %c0_0 = arith.constant 0 : index
    %c0_1 = arith.constant 0 : index
    %c0_2 = arith.constant 0 : index
    %c0_3 = arith.constant 0 : index
    %0 = vector.load %arg2[%c0, %c0_0, %c0_1, %c0_2, %c0_3] : memref<1x8x8x16x128xf32, #tpu.memory_space<vmem>>, vector<1x8x8x16x128xf32>
    %1 = vector.shape_cast %0 : vector<1x8x8x16x128xf32> to vector<8x8x16x128xf32>
    %2 = arith.truncf %1 : vector<8x8x16x128xf32> to vector<8x8x16x128xbf16>
    %3 = vector.shape_cast %2 : vector<8x8x16x128xbf16> to vector<1024x128xbf16>
    %c1 = arith.constant 1 : index
    %c0_4 = arith.constant 0 : index
    %c0_5 = arith.constant 0 : index
    %4 = vector.load %arg3[%c1, %c0_4, %c0_5] : memref<3x128x32xbf16, #tpu.memory_space<vmem>>, vector<1x128x32xbf16>
    %5 = vector.shape_cast %4 : vector<1x128x32xbf16> to vector<128x32xbf16>
    %cst = arith.constant dense<0.000000e+00> : vector<1024x32xf32>
    %6 = tpu.matmul %3, %5, %cst {dimension_numbers = #tpu.dot_dimension_numbers<[1], [0], [0], [1], [0, 0, 1, 1], [], []>} : vector<1024x128xbf16>, vector<128x32xbf16>, vector<1024x32xf32> -> vector<1024x32xf32>
    %7 = vector.shape_cast %6 : vector<1024x32xf32> to vector<8x8x16x32xf32>
    %c0_6 = arith.constant 0 : index
    %c0_7 = arith.constant 0 : index
    %c0_8 = arith.constant 0 : index
    %c0_9 = arith.constant 0 : index
    %8 = vector.load %arg6[%c0_6, %c0_7, %c0_8, %c0_9] : memref<8x8x16x32xf32, #tpu.memory_space<vmem>>, vector<8x8x16x32xf32>
    tpu.vector_store %arg6[%c0_6, %c0_7, %c0_8, %c0_9], %7 {strides = array<i32>} : memref<8x8x16x32xf32, #tpu.memory_space<vmem>>, vector<8x8x16x32xf32>,
    %9 = vector.extract_strided_slice %3 {offsets = [0, 0], sizes = [896, 128], strides = [1, 1]} : vector<1024x128xbf16> to vector<896x128xbf16>
    %c0_10 = arith.constant 0 : index
    %c0_11 = arith.constant 0 : index
    %c0_12 = arith.constant 0 : index
    %10 = vector.load %arg3[%c0_10, %c0_11, %c0_12] : memref<3x128x32xbf16, #tpu.memory_space<vmem>>, vector<1x128x32xbf16>
    %11 = vector.shape_cast %10 : vector<1x128x32xbf16> to vector<128x32xbf16>
    %cst_13 = arith.constant dense<0.000000e+00> : vector<896x32xf32>
    %12 = tpu.matmul %9, %11, %cst_13 {dimension_numbers = #tpu.dot_dimension_numbers<[1], [0], [0], [1], [0, 0, 1, 1], [], []>} : vector<896x128xbf16>, vector<128x32xbf16>, vector<896x32xf32> -> vector<896x32xf32>
    %c1_14 = arith.constant 1 : index
    %c0_15 = arith.constant 0 : index
    %c0_16 = arith.constant 0 : index
    %c0_17 = arith.constant 0 : index
    %13 = vector.load %arg6[%c1_14, %c0_15, %c0_16, %c0_17] : memref<8x8x16x32xf32, #tpu.memory_space<vmem>>, vector<7x8x16x32xf32>
    %14 = vector.shape_cast %12 : vector<896x32xf32> to vector<7x8x16x32xf32>
    %15 = arith.addf %13, %14 : vector<7x8x16x32xf32>
    %c1_18 = arith.constant 1 : index
    %c0_19 = arith.constant 0 : index
    %c0_20 = arith.constant 0 : index
    %c0_21 = arith.constant 0 : index
    %16 = vector.load %arg6[%c1_18, %c0_19, %c0_20, %c0_21] : memref<8x8x16x32xf32, #tpu.memory_space<vmem>>, vector<7x8x16x32xf32>
    tpu.vector_store %arg6[%c1_18, %c0_19, %c0_20, %c0_21], %15 {strides = array<i32>} : memref<8x8x16x32xf32, #tpu.memory_space<vmem>>, vector<7x8x16x32xf32>,
    %17 = vector.extract_strided_slice %3 {offsets = [128, 0], sizes = [896, 128], strides = [1, 1]} : vector<1024x128xbf16> to vector<896x128xbf16>
    %c2 = arith.constant 2 : index
    %c0_22 = arith.constant 0 : index
    %c0_23 = arith.constant 0 : index
    %18 = vector.load %arg3[%c2, %c0_22, %c0_23] : memref<3x128x32xbf16, #tpu.memory_space<vmem>>, vector<1x128x32xbf16>
    %19 = vector.shape_cast %18 : vector<1x128x32xbf16> to vector<128x32xbf16>
    %cst_24 = arith.constant dense<0.000000e+00> : vector<896x32xf32>
    %20 = tpu.matmul %17, %19, %cst_24 {dimension_numbers = #tpu.dot_dimension_numbers<[1], [0], [0], [1], [0, 0, 1, 1], [], []>} : vector<896x128xbf16>, vector<128x32xbf16>, vector<896x32xf32> -> vector<896x32xf32>
    %c0_25 = arith.constant 0 : index
    %c0_26 = arith.constant 0 : index
    %c0_27 = arith.constant 0 : index
    %c0_28 = arith.constant 0 : index
    %21 = vector.load %arg6[%c0_25, %c0_26, %c0_27, %c0_28] : memref<8x8x16x32xf32, #tpu.memory_space<vmem>>, vector<7x8x16x32xf32>
    %22 = vector.shape_cast %20 : vector<896x32xf32> to vector<7x8x16x32xf32>
    %23 = arith.addf %21, %22 : vector<7x8x16x32xf32>
    %c0_29 = arith.constant 0 : index
    %c0_30 = arith.constant 0 : index
    %c0_31 = arith.constant 0 : index
    %c0_32 = arith.constant 0 : index
    %24 = vector.load %arg6[%c0_29, %c0_30, %c0_31, %c0_32] : memref<8x8x16x32xf32, #tpu.memory_space<vmem>>, vector<7x8x16x32xf32>
    tpu.vector_store %arg6[%c0_29, %c0_30, %c0_31, %c0_32], %23 {strides = array<i32>} : memref<8x8x16x32xf32, #tpu.memory_space<vmem>>, vector<7x8x16x32xf32>,
    %c0_33 = arith.constant 0 : index
    %c0_34 = arith.constant 0 : index
    %c0_35 = arith.constant 0 : index
    %c0_36 = arith.constant 0 : index
    %25 = vector.load %arg6[%c0_33, %c0_34, %c0_35, %c0_36] : memref<8x8x16x32xf32, #tpu.memory_space<vmem>>, vector<8x8x16x32xf32>
    %26 = vector.shape_cast %25 : vector<8x8x16x32xf32> to vector<1024x32xf32>
    %c0_37 = arith.constant 0 : index
    %c0_38 = arith.constant 0 : index
    %27 = vector.load %arg4[%c0_37, %c0_38] : memref<1x32xf32, #tpu.memory_space<vmem>>, vector<1x32xf32>
    %28 = vector.broadcast %27 : vector<1x32xf32> to vector<1024x32xf32>
    %29 = arith.addf %26, %28 : vector<1024x32xf32>
    %cst_39 = arith.constant 0.000000e+00 : f32
    %30 = vector.broadcast %cst_39 : f32 to vector<1024x32xf32>
    %31 = arith.maximumf %29, %30 : vector<1024x32xf32>
    %32 = vector.shape_cast %31 : vector<1024x32xf32> to vector<1x8x8x16x32xf32>
    %33 = arith.truncf %32 : vector<1x8x8x16x32xf32> to vector<1x8x8x16x32xbf16>
    %c0_40 = arith.constant 0 : index
    %c0_41 = arith.constant 0 : index
    %c0_42 = arith.constant 0 : index
    %c0_43 = arith.constant 0 : index
    %c0_44 = arith.constant 0 : index
    %34 = vector.load %arg5[%c0_40, %c0_41, %c0_42, %c0_43, %c0_44] : memref<1x8x8x16x32xbf16, #tpu.memory_space<vmem>>, vector<1x8x8x16x32xbf16>
    tpu.vector_store %arg5[%c0_40, %c0_41, %c0_42, %c0_43, %c0_44], %33 {strides = array<i32>} : memref<1x8x8x16x32xbf16, #tpu.memory_space<vmem>>, vector<1x8x8x16x32xbf16>,
    return
  }
  func.func @transform_0(%arg0: i32, %arg1: i32) -> (i32, i32, i32, i32, i32) {
    %c0_i32 = arith.constant 0 : i32
    %c0_i32_0 = arith.constant 0 : i32
    %c0_i32_1 = arith.constant 0 : i32
    %c0_i32_2 = arith.constant 0 : i32
    return %arg0, %c0_i32, %arg1, %c0_i32_0, %c0_i32_1 : i32, i32, i32, i32, i32
  }
  func.func @transform_1(%arg0: i32, %arg1: i32) -> (i32, i32, i32) {
    %c0_i32 = arith.constant 0 : i32
    %c0_i32_0 = arith.constant 0 : i32
    %c0_i32_1 = arith.constant 0 : i32
    %c0_i32_2 = arith.constant 0 : i32
    return %c0_i32, %c0_i32_0, %c0_i32_1 : i32, i32, i32
  }
  func.func @transform_2(%arg0: i32, %arg1: i32) -> (i32, i32) {
    %c0_i32 = arith.constant 0 : i32
    %c0_i32_0 = arith.constant 0 : i32
    %c0_i32_1 = arith.constant 0 : i32
    return %c0_i32, %c0_i32_0 : i32, i32
  }
  func.func @transform_3(%arg0: i32, %arg1: i32) -> (i32, i32, i32, i32, i32) {
    %c0_i32 = arith.constant 0 : i32
    %c0_i32_0 = arith.constant 0 : i32
    %c0_i32_1 = arith.constant 0 : i32
    %c0_i32_2 = arith.constant 0 : i32
    return %arg0, %c0_i32, %arg1, %c0_i32_0, %c0_i32_1 : i32, i32, i32, i32, i32
  }
}

</mosaic_0001>

<llo_original>
// kernel: tpu_custom_call.1
$region0: #{tpu_custom_call.1}
  #allocation0 [shape = 'u32[]', space=smem, size = 0x4, offset = 0x4, fixed_abs, tag = 'smem constant byte address 0x4 - core index']
  #allocation1 [shape = 'u32[144,128]{1,0:T(1,128)}', space=vmem, size = 0x12000, scoped, tag = 'internal scratch']
  #allocation2 [shape = 'f32[8,8,16,32]{3,2,1,0:T(8,128)}', space=vmem, size = 0x80000, scoped, tag = 'scratch operand']
  #allocation9 [shape = 's32[]', space=sflag, size = 0x4, offset = 0, fixed_abs, tag = 'sflag constant byte address 0x0 - dummy sync flag']
  #allocation11 [shape = 's32[]', space=sflag, size = 0x4, offset = 0, fixed_abs, tag = 'sflag constant byte address 0x0 - dummy sync flag']
  %s0 = inlined_call_operand.hbm [shape: f32[2,8,16,16,128], index: 0, kind: input, shape index: {}]
  %s1 = inlined_call_operand.vmem [shape: bf16[3,128,32], index: 1, kind: input, shape index: {}]
  %s2 = inlined_call_operand.hbm [shape: f32[1,32], index: 2, kind: input, shape index: {}]
  %s3 = inlined_call_operand.hbm [shape: bf16[2,8,16,16,32], index: 3, kind: output, shape index: {}]
  %s4 = sld [smem:[#allocation0]]
  $region53: #{tpu_custom_call.1} parent=0
    _
  %s6 = ssub.s32 1, %s4
  %s7 = scalar_select 0, %s6, %s4
  $region1: #{tpu_custom_call.1} parent=0
    #allocation3 [shape = 'u8[1048576]{0}', space=vmem, size = 0x100000, scoped, tag = 'input window, operand 0']
    #allocation4 [shape = 's32[2]{0}', space=sflag, size = 0x8, scoped, tag = 'scoped memory for tpu_custom_call.1']
    #allocation5 [shape = 's32[2]{0}', space=sflag, size = 0x8, scoped, tag = 'scoped memory for tpu_custom_call.1']
    #allocation6 [shape = 'u8[512]{0}', space=vmem, size = 0x400, scoped, tag = 'input window, operand 2, single buffered']
    #allocation7 [shape = 's32[1]{0}', space=sflag, size = 0x4, scoped, tag = 'scoped memory for tpu_custom_call.1']
    #allocation8 [shape = 'u8[524288]{0}', space=vmem, size = 0x80000, scoped, tag = 'output window, operand 0']
    %8 = vsyncpa [#allocation4], 0
    %s9 = scalar_lea.sflag [#allocation4], 1
    %10 = vsyncpa %s9, 0
    %11 = vsyncpa [#allocation7], 0
    %12 = vsyncpa [#allocation5], 0
    %s13 = scalar_lea.sflag [#allocation5], 1
    %14 = vsyncpa %s13, 0
    loop: start=0, step=1, limit=6
    $region2: #{tpu_custom_call.1} parent=1 // loop_pre_header
      _
    $region3: #{tpu_custom_call.1} parent=1 // loop_header
      %s16 = sphi 0, %s20
      %p17 = scmp.ge.s32.totalorder %s16, 6
      %s23 = sphi 0, %s35
      %s24 = sphi 0, %s31
      %s25 = sphi 0, %s23
      %s26 = sphi 0, %s24
      %s27 = sphi 0, %s25
      %s28 = sphi 0, %s26
      %s40 = sphi 0, %s42
      %s43 = sphi 0, %s40
      %s44 = sphi 0, %s43
      %s60 = sphi 0, %s44
      %s64 = sphi 0, %s64
      %s66 = sphi 0, %s64
      %s67 = sphi 0, %s66
      %s81 = sphi 0, %s67
      %s85 = sphi 0, %s85
      %s87 = sphi 0, %s85
      %s88 = sphi 0, %s87
      %s102 = sphi 0, %s88
      %s110 = sphi 0, %s112
      %s113 = sphi 0, %s110
      %s114 = sphi 0, %s113
      %s130 = sphi 0, %s114
    $region4: #{tpu_custom_call.1} parent=1 // loop_header_branch
      %19 = sbr.rel (%p17) target = $region8
    $region5: #{tpu_custom_call.1} parent=1 // loop_body
      %s21 = ssub.s32 %s16, 1
      %s22 = ssub.s32 %s16, 2
      %s29 = sadd.s32 1, %s24
      %p30 = scmp.ge.s32.totalorder %s29, 2
      %s31 = scalar_select %p30, 0, %s29
      %s32 = sadd.s32 1, %s23
      %s33 = scalar_select %p30, %s32, %s23
      %p34 = scmp.ge.s32.totalorder %s33, 2
      %s35 = scalar_select %p34, 0, %s33
      %s36 = ssub.s32 %s23, %s35
      %s37 = ssub.s32 %s24, %s31
      %s38 = sor.u32 %s36, %s37
      %p39 = scmp.eq.s32.totalorder %s38, 0
      %s41 = sadd.s32 %s40, 1
      %s42 = scalar_select %p39, %s40, %s41
      %p45 = pneg %p39
      %p46 = scmp.eq.s32.totalorder %s16, 3
      %p47 = por %p45, %p46
      %p48 = scmp.ne.s32.totalorder %s40, %s43
      %p49 = scmp.eq.s32.totalorder %s16, 0
      %p50 = por %p48, %p49
      %p51 = scmp.ne.s32.totalorder %s40, %s43
      %p52 = scmp.eq.s32.totalorder %s21, 3
      %p53 = por %p51, %p52
      %p54 = scmp.ne.s32.totalorder %s43, %s44
      %p55 = scmp.eq.s32.totalorder %s21, 0
      %p56 = por %p54, %p55
      %p57 = scmp.ne.s32.totalorder %s43, %s44
      %p58 = scmp.eq.s32.totalorder %s22, 3
      %p59 = por %p57, %p58
      %p61 = scmp.ne.s32.totalorder %s44, %s60
      %p62 = scmp.eq.s32.totalorder %s22, 0
      %p63 = por %p61, %p62
      %s65 = sadd.s32 %s64, 1
      %p68 = scmp.eq.s32.totalorder %s16, 3
      %p69 = scmp.ne.s32.totalorder %s64, %s66
      %p70 = scmp.eq.s32.totalorder %s16, 0
      %p71 = por %p69, %p70
      %p72 = scmp.ne.s32.totalorder %s64, %s66
      %p73 = scmp.eq.s32.totalorder %s21, 3
      %p74 = por %p72, %p73
      %p75 = scmp.ne.s32.totalorder %s66, %s67
      %p76 = scmp.eq.s32.totalorder %s21, 0
      %p77 = por %p75, %p76
      %p78 = scmp.ne.s32.totalorder %s66, %s67
      %p79 = scmp.eq.s32.totalorder %s22, 3
      %p80 = por %p78, %p79
      %p82 = scmp.ne.s32.totalorder %s67, %s81
      %p83 = scmp.eq.s32.totalorder %s22, 0
      %p84 = por %p82, %p83
      %s86 = sadd.s32 %s85, 1
      %p89 = scmp.eq.s32.totalorder %s16, 3
      %p90 = scmp.ne.s32.totalorder %s85, %s87
      %p91 = scmp.eq.s32.totalorder %s16, 0
      %p92 = por %p90, %p91
      %p93 = scmp.ne.s32.totalorder %s85, %s87
      %p94 = scmp.eq.s32.totalorder %s21, 3
      %p95 = por %p93, %p94
      %p96 = scmp.ne.s32.totalorder %s87, %s88
      %p97 = scmp.eq.s32.totalorder %s21, 0
      %p98 = por %p96, %p97
      %p99 = scmp.ne.s32.totalorder %s87, %s88
      %p100 = scmp.eq.s32.totalorder %s22, 3
      %p101 = por %p99, %p100
      %p103 = scmp.ne.s32.totalorder %s88, %s102
      %p104 = scmp.eq.s32.totalorder %s22, 0
      %p105 = por %p103, %p104
      %s106 = ssub.s32 %s23, %s35
      %s107 = ssub.s32 %s24, %s31
      %s108 = sor.u32 %s106, %s107
      %p109 = scmp.eq.s32.totalorder %s108, 0
      %s111 = sadd.s32 %s110, 1
      %s112 = scalar_select %p109, %s110, %s111
      %p115 = pneg %p109
      %p116 = scmp.eq.s32.totalorder %s16, 3
      %p117 = por %p115, %p116
      %p118 = scmp.ne.s32.totalorder %s110, %s113
      %p119 = scmp.eq.s32.totalorder %s16, 0
      %p120 = por %p118, %p119
      %p121 = scmp.ne.s32.totalorder %s110, %s113
      %p122 = scmp.eq.s32.totalorder %s21, 3
      %p123 = por %p121, %p122
      %p124 = scmp.ne.s32.totalorder %s113, %s114
      %p125 = scmp.eq.s32.totalorder %s21, 0
      %p126 = por %p124, %p125
      %p127 = scmp.ne.s32.totalorder %s113, %s114
      %p128 = scmp.eq.s32.totalorder %s22, 3
      %p129 = por %p127, %p128
      %p131 = scmp.ne.s32.totalorder %s114, %s130
      %p132 = scmp.eq.s32.totalorder %s22, 0
      %p133 = por %p131, %p132
      %p134 = scmp.le.s32.totalorder 1, %s16
      %p135 = scmp.lt.s32.totalorder %s16, 5
      %p136 = pnand %p134, %p135
      %p137 = pneg %p136
      // Predicated region
      $region9: #{tpu_custom_call.1} parent=5 // pred_check
        _
      $region10: #{tpu_custom_call.1} parent=5 // pred_check_branch
        %139 = sbr.rel (%p136) target = $region12
      $region11: #{tpu_custom_call.1} parent=5 // pred_region
        %s140 = ssub.s32 %s16, 1
        // Predicated region
        $region13: #{tpu_custom_call.1} parent=11 // pred_check
          %p141 = pneg %p77
        $region14: #{tpu_custom_call.1} parent=11 // pred_check_branch
          %143 = sbr.rel (%p141) target = $region16
        $region15: #{tpu_custom_call.1} parent=11 // pred_region
          _
        $region16: #{tpu_custom_call.1} parent=11 // pred_fallthru
          _
        // Predicated region
        $region17: #{tpu_custom_call.1} parent=11 // pred_check
          %p144 = pneg %p98
        $region18: #{tpu_custom_call.1} parent=11 // pred_check_branch
          %146 = sbr.rel (%p144) target = $region20
        $region19: #{tpu_custom_call.1} parent=11 // pred_region
          %s148 = ssub.s32 16, 16
          %149 = vsyncadd [#allocation7], %s148
          %s151 = sshll.u32 [#allocation6], 4
          %s152 = int_to_ptr.vmem [resolvable:$true] %s151
          %154 = dma.hbm_to_vmem [thread:$0]  %s2, 16, %s152, [#allocation7]
        $region20: #{tpu_custom_call.1} parent=11 // pred_fallthru
          _
      $region12: #{tpu_custom_call.1} parent=5 // pred_fallthru
        _
      %p155 = scmp.lt.s32.totalorder %s16, 4
      // Predicated region
      $region21: #{tpu_custom_call.1} parent=5 // pred_check
        %p156 = pneg %p155
      $region22: #{tpu_custom_call.1} parent=5 // pred_check_branch
        %158 = sbr.rel (%p156) target = $region24
      $region23: #{tpu_custom_call.1} parent=5 // pred_region
        // Predicated region
        $region25: #{tpu_custom_call.1} parent=23 // pred_check
          %p159 = pneg %p50
        $region26: #{tpu_custom_call.1} parent=23 // pred_check_branch
          %161 = sbr.rel (%p159) target = $region28
        $region27: #{tpu_custom_call.1} parent=23 // pred_region
          #allocation10 [shape = 'u32[6]{0}', space=smem, size = 0x18, scoped, tag = 'DMA stride descriptor']
          %s162 = sand.u32 %s40, 1
          %s163 = scalar_lea.sflag [#allocation4], %s162
          %s164 = sand.u32 %s40, 1
          %s165 = smul.addr %s164, 1024
          %s166 = scalar_lea.vmem [#allocation3], %s165
          %s167 = smul.u32 8, %s24
          %s169 = ssub.s32 16384, 16384
          %170 = vsyncadd %s163, %s169
          %s171 = smul.addr %s167, 2
          %s172 = smul.addr %s23, 256
          %s173 = sadd.s32 %s171, %s172
          %s174 = smul.addr %s173, 128
          %s175 = scalar_lea.hbm %s0, %s174
          %s177 = sshll.u32 1, 14
          %s178 = sxor.u32 4294967295, %s177
          %s180 = sld [smem:[#allocation0]]
          %s181 = sadd.s32 2, %s180
          %s183 = sshll.u32 7, 26
          %s184 = sxor.u32 4294967295, %s183
          %s185 = sand.u32 0, %s184
          %s186 = sshll.u32 %s181, 26
          %s187 = sor.u32 %s185, %s186
          %s188 = sshll.u32 %s166, 4
          %s189 = int_to_ptr.vmem [resolvable:$true] %s188
          %195 = sst [smem:[#allocation10]] 4096
          %s196 = scalar_lea.smem [#allocation10], 1
          %197 = sst [smem:[%s196]] 2048
          %s198 = scalar_lea.smem [#allocation10], 2
          %199 = sst [smem:[%s198]] 16
          %s200 = scalar_lea.smem [#allocation10], 3
          %201 = sst [smem:[%s200]] 128
          %s202 = scalar_lea.smem [#allocation10], 4
          %203 = sst [smem:[%s202]] 128
          %s204 = scalar_lea.smem [#allocation10], 5
          %205 = sst [smem:[%s204]] 8
          %207 = dma.general %s175, 16384, %s189, %s163, [#allocation9], [#allocation10], %s187, 0
        $region28: #{tpu_custom_call.1} parent=23 // pred_fallthru
          _
      $region24: #{tpu_custom_call.1} parent=5 // pred_fallthru
        _
      %p208 = scmp.le.s32.totalorder 1, %s16
      %p209 = scmp.lt.s32.totalorder %s16, 5
      %p210 = pnand %p208, %p209
      %p211 = pneg %p210
      // Predicated region
      $region29: #{tpu_custom_call.1} parent=5 // pred_check
        _
      $region30: #{tpu_custom_call.1} parent=5 // pred_check_branch
        %213 = sbr.rel (%p210) target = $region32
      $region31: #{tpu_custom_call.1} parent=5 // pred_region
        %s214 = ssub.s32 %s16, 1
        %s215 = sand.u32 %s43, 1
        %s216 = scalar_lea.sflag [#allocation4], %s215
        %s217 = sand.u32 %s43, 1
        %s218 = smul.addr %s217, 1024
        %s219 = scalar_lea.vmem [#allocation3], %s218
        // Predicated region
        $region33: #{tpu_custom_call.1} parent=31 // pred_check
          %p220 = pneg %p56
        $region34: #{tpu_custom_call.1} parent=31 // pred_check_branch
          %222 = sbr.rel (%p220) target = $region36
        $region35: #{tpu_custom_call.1} parent=31 // pred_region
          %223 = dma.done %s216, 16384
        $region36: #{tpu_custom_call.1} parent=31 // pred_fallthru
          _
        // Predicated region
        $region37: #{tpu_custom_call.1} parent=31 // pred_check
          %p224 = pneg %p98
        $region38: #{tpu_custom_call.1} parent=31 // pred_check_branch
          %226 = sbr.rel (%p224) target = $region40
        $region39: #{tpu_custom_call.1} parent=31 // pred_region
          %227 = dma.done [#allocation7], 16
        $region40: #{tpu_custom_call.1} parent=31 // pred_fallthru
          _
        %s228 = sand.u32 %s43, 1
        %s229 = scalar_lea.sflag [#allocation4], %s228
        %s230 = sand.u32 %s43, 1
        %s231 = smul.addr %s230, 1024
        %s232 = scalar_lea.vmem [#allocation3], %s231
        %p233 = pneg %p56
        %p234 = pneg %p53
        %p235 = pneg %p77
        %p236 = pneg %p74
        %p237 = pneg %p98
        %p238 = pneg %p95
        %p239 = pneg %p126
        %p240 = pneg %p123
        %s241 = sand.u32 %s113, 1
        %s242 = scalar_lea.sflag [#allocation5], %s241
        %s243 = sand.u32 %s113, 1
        %s244 = smul.addr %s243, 512
        %s245 = scalar_lea.vmem [#allocation8], %s244
        %s246 = smul.u32 8, %s26
        %s247 = smul.u32 8, %s26
        %v249 = vld [vmem:[%s219] sm:$0xff]
        %v250 = vld [vmem:[%s219 + $0x8] sm:$0xff]
        %v251 = vld [vmem:[%s219 + $0x10] sm:$0xff]
        %v252 = vld [vmem:[%s219 + $0x18] sm:$0xff]
        %v253 = vld [vmem:[%s219 + $0x20] sm:$0xff]
        %v254 = vld [vmem:[%s219 + $0x28] sm:$0xff]
        %v255 = vld [vmem:[%s219 + $0x30] sm:$0xff]
        %v256 = vld [vmem:[%s219 + $0x38] sm:$0xff]
        %v257 = vld [vmem:[%s219 + $0x40] sm:$0xff]
        %v258 = vld [vmem:[%s219 + $0x48] sm:$0xff]
        %v259 = vld [vmem:[%s219 + $0x50] sm:$0xff]
        %v260 = vld [vmem:[%s219 + $0x58] sm:$0xff]
        %v261 = vld [vmem:[%s219 + $0x60] sm:$0xff]
        %v262 = vld [vmem:[%s219 + $0x68] sm:$0xff]
        %v263 = vld [vmem:[%s219 + $0x70] sm:$0xff]
        %v264 = vld [vmem:[%s219 + $0x78] sm:$0xff]
        %v265 = vld [vmem:[%s219 + $0x80] sm:$0xff]
        %v266 = vld [vmem:[%s219 + $0x88] sm:$0xff]
        %v267 = vld [vmem:[%s219 + $0x90] sm:$0xff]
        %v268 = vld [vmem:[%s219 + $0x98] sm:$0xff]
        %v269 = vld [vmem:[%s219 + $0xa0] sm:$0xff]
        %v270 = vld [vmem:[%s219 + $0xa8] sm:$0xff]
        %v271 = vld [vmem:[%s219 + $0xb0] sm:$0xff]
        %v272 = vld [vmem:[%s219 + $0xb8] sm:$0xff]
        %v273 = vld [vmem:[%s219 + $0xc0] sm:$0xff]
        %v274 = vld [vmem:[%s219 + $0xc8] sm:$0xff]
        %v275 = vld [vmem:[%s219 + $0xd0] sm:$0xff]
        %v276 = vld [vmem:[%s219 + $0xd8] sm:$0xff]
        %v277 = vld [vmem:[%s219 + $0xe0] sm:$0xff]
        %v278 = vld [vmem:[%s219 + $0xe8] sm:$0xff]
        %v279 = vld [vmem:[%s219 + $0xf0] sm:$0xff]
        %v280 = vld [vmem:[%s219 + $0xf8] sm:$0xff]
        %v281 = vld [vmem:[%s219 + $0x100] sm:$0xff]
        %v282 = vld [vmem:[%s219 + $0x108] sm:$0xff]
        %v283 = vld [vmem:[%s219 + $0x110] sm:$0xff]
        %v284 = vld [vmem:[%s219 + $0x118] sm:$0xff]
        %v285 = vld [vmem:[%s219 + $0x120] sm:$0xff]
        %v286 = vld [vmem:[%s219 + $0x128] sm:$0xff]
        %v287 = vld [vmem:[%s219 + $0x130] sm:$0xff]
        %v288 = vld [vmem:[%s219 + $0x138] sm:$0xff]
        %v289 = vld [vmem:[%s219 + $0x140] sm:$0xff]
        %v290 = vld [vmem:[%s219 + $0x148] sm:$0xff]
        %v291 = vld [vmem:[%s219 + $0x150] sm:$0xff]
        %v292 = vld [vmem:[%s219 + $0x158] sm:$0xff]
        %v293 = vld [vmem:[%s219 + $0x160] sm:$0xff]
        %v294 = vld [vmem:[%s219 + $0x168] sm:$0xff]
        %v295 = vld [vmem:[%s219 + $0x170] sm:$0xff]
        %v296 = vld [vmem:[%s219 + $0x178] sm:$0xff]
        %v297 = vld [vmem:[%s219 + $0x180] sm:$0xff]
        %v298 = vld [vmem:[%s219 + $0x188] sm:$0xff]
        %v299 = vld [vmem:[%s219 + $0x190] sm:$0xff]
        %v300 = vld [vmem:[%s219 + $0x198] sm:$0xff]
        %v301 = vld [vmem:[%s219 + $0x1a0] sm:$0xff]
        %v302 = vld [vmem:[%s219 + $0x1a8] sm:$0xff]
        %v303 = vld [vmem:[%s219 + $0x1b0] sm:$0xff]
        %v304 = vld [vmem:[%s219 + $0x1b8] sm:$0xff]
        %v305 = vld [vmem:[%s219 + $0x1c0] sm:$0xff]
        %v306 = vld [vmem:[%s219 + $0x1c8] sm:$0xff]
        %v307 = vld [vmem:[%s219 + $0x1d0] sm:$0xff]
        %v308 = vld [vmem:[%s219 + $0x1d8] sm:$0xff]
        %v309 = vld [vmem:[%s219 + $0x1e0] sm:$0xff]
        %v310 = vld [vmem:[%s219 + $0x1e8] sm:$0xff]
        %v311 = vld [vmem:[%s219 + $0x1f0] sm:$0xff]
        %v312 = vld [vmem:[%s219 + $0x1f8] sm:$0xff]
        %v313 = vld [vmem:[%s219 + $0x200] sm:$0xff]
        %v314 = vld [vmem:[%s219 + $0x208] sm:$0xff]
        %v315 = vld [vmem:[%s219 + $0x210] sm:$0xff]
        %v316 = vld [vmem:[%s219 + $0x218] sm:$0xff]
        %v317 = vld [vmem:[%s219 + $0x220] sm:$0xff]
        %v318 = vld [vmem:[%s219 + $0x228] sm:$0xff]
        %v319 = vld [vmem:[%s219 + $0x230] sm:$0xff]
        %v320 = vld [vmem:[%s219 + $0x238] sm:$0xff]
        %v321 = vld [vmem:[%s219 + $0x240] sm:$0xff]
        %v322 = vld [vmem:[%s219 + $0x248] sm:$0xff]
        %v323 = vld [vmem:[%s219 + $0x250] sm:$0xff]
        %v324 = vld [vmem:[%s219 + $0x258] sm:$0xff]
        %v325 = vld [vmem:[%s219 + $0x260] sm:$0xff]
        %v326 = vld [vmem:[%s219 + $0x268] sm:$0xff]
        %v327 = vld [vmem:[%s219 + $0x270] sm:$0xff]
        %v328 = vld [vmem:[%s219 + $0x278] sm:$0xff]
        %v329 = vld [vmem:[%s219 + $0x280] sm:$0xff]
        %v330 = vld [vmem:[%s219 + $0x288] sm:$0xff]
        %v331 = vld [vmem:[%s219 + $0x290] sm:$0xff]
        %v332 = vld [vmem:[%s219 + $0x298] sm:$0xff]
        %v333 = vld [vmem:[%s219 + $0x2a0] sm:$0xff]
        %v334 = vld [vmem:[%s219 + $0x2a8] sm:$0xff]
        %v335 = vld [vmem:[%s219 + $0x2b0] sm:$0xff]
        %v336 = vld [vmem:[%s219 + $0x2b8] sm:$0xff]
        %v337 = vld [vmem:[%s219 + $0x2c0] sm:$0xff]
        %v338 = vld [vmem:[%s219 + $0x2c8] sm:$0xff]
        %v339 = vld [vmem:[%s219 + $0x2d0] sm:$0xff]
        %v340 = vld [vmem:[%s219 + $0x2d8] sm:$0xff]
        %v341 = vld [vmem:[%s219 + $0x2e0] sm:$0xff]
        %v342 = vld [vmem:[%s219 + $0x2e8] sm:$0xff]
        %v343 = vld [vmem:[%s219 + $0x2f0] sm:$0xff]
        %v344 = vld [vmem:[%s219 + $0x2f8] sm:$0xff]
        %v345 = vld [vmem:[%s219 + $0x300] sm:$0xff]
        %v346 = vld [vmem:[%s219 + $0x308] sm:$0xff]
        %v347 = vld [vmem:[%s219 + $0x310] sm:$0xff]
        %v348 = vld [vmem:[%s219 + $0x318] sm:$0xff]
        %v349 = vld [vmem:[%s219 + $0x320] sm:$0xff]
        %v350 = vld [vmem:[%s219 + $0x328] sm:$0xff]
        %v351 = vld [vmem:[%s219 + $0x330] sm:$0xff]
        %v352 = vld [vmem:[%s219 + $0x338] sm:$0xff]
        %v353 = vld [vmem:[%s219 + $0x340] sm:$0xff]
        %v354 = vld [vmem:[%s219 + $0x348] sm:$0xff]
        %v355 = vld [vmem:[%s219 + $0x350] sm:$0xff]
        %v356 = vld [vmem:[%s219 + $0x358] sm:$0xff]
        %v357 = vld [vmem:[%s219 + $0x360] sm:$0xff]
        %v358 = vld [vmem:[%s219 + $0x368] sm:$0xff]
        %v359 = vld [vmem:[%s219 + $0x370] sm:$0xff]
        %v360 = vld [vmem:[%s219 + $0x378] sm:$0xff]
        %v361 = vld [vmem:[%s219 + $0x380] sm:$0xff]
        %v362 = vld [vmem:[%s219 + $0x388] sm:$0xff]
        %v363 = vld [vmem:[%s219 + $0x390] sm:$0xff]
        %v364 = vld [vmem:[%s219 + $0x398] sm:$0xff]
        %v365 = vld [vmem:[%s219 + $0x3a0] sm:$0xff]
        %v366 = vld [vmem:[%s219 + $0x3a8] sm:$0xff]
        %v367 = vld [vmem:[%s219 + $0x3b0] sm:$0xff]
        %v368 = vld [vmem:[%s219 + $0x3b8] sm:$0xff]
        %v369 = vld [vmem:[%s219 + $0x3c0] sm:$0xff]
        %v370 = vld [vmem:[%s219 + $0x3c8] sm:$0xff]
        %v371 = vld [vmem:[%s219 + $0x3d0] sm:$0xff]
        %v372 = vld [vmem:[%s219 + $0x3d8] sm:$0xff]
        %v373 = vld [vmem:[%s219 + $0x3e0] sm:$0xff]
        %v374 = vld [vmem:[%s219 + $0x3e8] sm:$0xff]
        %v375 = vld [vmem:[%s219 + $0x3f0] sm:$0xff]
        %v376 = vld [vmem:[%s219 + $0x3f8] sm:$0xff]
        %v377 = vpack.c.bf16 %v250, %v249
        %v378 = vpack.c.bf16 %v252, %v251
        %v379 = vpack.c.bf16 %v254, %v253
        %v380 = vpack.c.bf16 %v256, %v255
        %v381 = vpack.c.bf16 %v258, %v257
        %v382 = vpack.c.bf16 %v260, %v259
        %v383 = vpack.c.bf16 %v262, %v261
        %v384 = vpack.c.bf16 %v264, %v263
        %v385 = vpack.c.bf16 %v266, %v265
        %v386 = vpack.c.bf16 %v268, %v267
        %v387 = vpack.c.bf16 %v270, %v269
        %v388 = vpack.c.bf16 %v272, %v271
        %v389 = vpack.c.bf16 %v274, %v273
        %v390 = vpack.c.bf16 %v276, %v275
        %v391 = vpack.c.bf16 %v278, %v277
        %v392 = vpack.c.bf16 %v280, %v279
        %v393 = vpack.c.bf16 %v282, %v281
        %v394 = vpack.c.bf16 %v284, %v283
        %v395 = vpack.c.bf16 %v286, %v285
        %v396 = vpack.c.bf16 %v288, %v287
        %v397 = vpack.c.bf16 %v290, %v289
        %v398 = vpack.c.bf16 %v292, %v291
        %v399 = vpack.c.bf16 %v294, %v293
        %v400 = vpack.c.bf16 %v296, %v295
        %v401 = vpack.c.bf16 %v298, %v297
        %v402 = vpack.c.bf16 %v300, %v299
        %v403 = vpack.c.bf16 %v302, %v301
        %v404 = vpack.c.bf16 %v304, %v303
        %v405 = vpack.c.bf16 %v306, %v305
        %v406 = vpack.c.bf16 %v308, %v307
        %v407 = vpack.c.bf16 %v310, %v309
        %v408 = vpack.c.bf16 %v312, %v311
        %v409 = vpack.c.bf16 %v314, %v313
        %v410 = vpack.c.bf16 %v316, %v315
        %v411 = vpack.c.bf16 %v318, %v317
        %v412 = vpack.c.bf16 %v320, %v319
        %v413 = vpack.c.bf16 %v322, %v321
        %v414 = vpack.c.bf16 %v324, %v323
        %v415 = vpack.c.bf16 %v326, %v325
        %v416 = vpack.c.bf16 %v328, %v327
        %v417 = vpack.c.bf16 %v330, %v329
        %v418 = vpack.c.bf16 %v332, %v331
        %v419 = vpack.c.bf16 %v334, %v333
        %v420 = vpack.c.bf16 %v336, %v335
        %v421 = vpack.c.bf16 %v338, %v337
        %v422 = vpack.c.bf16 %v340, %v339
        %v423 = vpack.c.bf16 %v342, %v341
        %v424 = vpack.c.bf16 %v344, %v343
        %v425 = vpack.c.bf16 %v346, %v345
        %v426 = vpack.c.bf16 %v348, %v347
        %v427 = vpack.c.bf16 %v350, %v349
        %v428 = vpack.c.bf16 %v352, %v351
        %v429 = vpack.c.bf16 %v354, %v353
        %v430 = vpack.c.bf16 %v356, %v355
        %v431 = vpack.c.bf16 %v358, %v357
        %v432 = vpack.c.bf16 %v360, %v359
        %v433 = vpack.c.bf16 %v362, %v361
        %v434 = vpack.c.bf16 %v364, %v363
        %v435 = vpack.c.bf16 %v366, %v365
        %v436 = vpack.c.bf16 %v368, %v367
        %v437 = vpack.c.bf16 %v370, %v369
        %v438 = vpack.c.bf16 %v372, %v371
        %v439 = vpack.c.bf16 %v374, %v373
        %v440 = vpack.c.bf16 %v376, %v375
        %s441 = scalar_lea.vmem %s1, 64
        %v442 = vld [vmem:[%s441] sm:$0xf]
        %v443 = vld [vmem:[%s441 + $0x4] sm:$0xf]
        %v444 = vld [vmem:[%s441 + $0x8] sm:$0xf]
        %v445 = vld [vmem:[%s441 + $0xc] sm:$0xf]
        %v446 = vld [vmem:[%s441 + $0x10] sm:$0xf]
        %v447 = vld [vmem:[%s441 + $0x14] sm:$0xf]
        %v448 = vld [vmem:[%s441 + $0x18] sm:$0xf]
        %v449 = vld [vmem:[%s441 + $0x1c] sm:$0xf]
        %v450 = vld [vmem:[%s441 + $0x20] sm:$0xf]
        %v451 = vld [vmem:[%s441 + $0x24] sm:$0xf]
        %v452 = vld [vmem:[%s441 + $0x28] sm:$0xf]
        %v453 = vld [vmem:[%s441 + $0x2c] sm:$0xf]
        %v454 = vld [vmem:[%s441 + $0x30] sm:$0xf]
        %v455 = vld [vmem:[%s441 + $0x34] sm:$0xf]
        %v456 = vld [vmem:[%s441 + $0x38] sm:$0xf]
        %v457 = vld [vmem:[%s441 + $0x3c] sm:$0xf]
        %v474 = vunpack.c.l.b16 %v442
        %v475 = vunpack.c.l.b16 %v443
        %v476 = vunpack.c.l.b16 %v444
        %v477 = vunpack.c.l.b16 %v445
        %v478 = vunpack.c.l.b16 %v446
        %v479 = vunpack.c.l.b16 %v447
        %v480 = vunpack.c.l.b16 %v448
        %v481 = vunpack.c.l.b16 %v449
        %v482 = vunpack.c.l.b16 %v450
        %v483 = vunpack.c.l.b16 %v451
        %v484 = vunpack.c.l.b16 %v452
        %v485 = vunpack.c.l.b16 %v453
        %v486 = vunpack.c.l.b16 %v454
        %v487 = vunpack.c.l.b16 %v455
        %v488 = vunpack.c.l.b16 %v456
        %v489 = vunpack.c.l.b16 %v457
        %v490 = vpack.c.b16 %v475, %v474
        %v491 = vpack.c.b16 %v477, %v476
        %v492 = vpack.c.b16 %v479, %v478
        %v493 = vpack.c.b16 %v481, %v480
        %v494 = vpack.c.b16 %v483, %v482
        %v495 = vpack.c.b16 %v485, %v484
        %v496 = vpack.c.b16 %v487, %v486
        %v497 = vpack.c.b16 %v489, %v488
        %506 = vmatprep.subr.bf16.mxu0 0
        %507 = vmatpush1.bf16.msra.mxu0 %v490
        %508 = vmatprep.subr.bf16.mxu0 0
        %509 = vmatpush1.bf16.msra.mxu0 %v491
        %510 = vmatprep.subr.bf16.mxu0 0
        %511 = vmatpush1.bf16.msra.mxu0 %v492
        %512 = vmatprep.subr.bf16.mxu0 0
        %513 = vmatpush1.bf16.msra.mxu0 %v493
        %514 = vmatprep.subr.bf16.mxu0 0
        %515 = vmatpush1.bf16.msra.mxu0 %v494
        %516 = vmatprep.subr.bf16.mxu0 0
        %517 = vmatpush1.bf16.msra.mxu0 %v495
        %518 = vmatprep.subr.bf16.mxu0 0
        %519 = vmatpush1.bf16.msra.mxu0 %v496
        %520 = vmatprep.subr.bf16.mxu0 0
        %521 = vmatpush1.bf16.msra.mxu0 %v497
        %522 = vmatprep.subr.bf16.mxu0 0
        %523 = vmatpush1.bf16.msra.mxu0 0
        %524 = vmatprep.subr.bf16.mxu0 0
        %525 = vmatpush1.bf16.msra.mxu0 0
        %526 = vmatprep.subr.bf16.mxu0 0
        %527 = vmatpush1.bf16.msra.mxu0 0
        %528 = vmatprep.subr.bf16.mxu0 0
        %529 = vmatpush1.bf16.msra.mxu0 0
        %530 = vmatprep.subr.bf16.mxu0 0
        %531 = vmatpush1.bf16.msra.mxu0 0
        %532 = vmatprep.subr.bf16.mxu0 0
        %533 = vmatpush1.bf16.msra.mxu0 0
        %534 = vmatprep.subr.bf16.mxu0 0
        %535 = vmatpush1.bf16.msra.mxu0 0
        %536 = vmatprep.subr.bf16.mxu0 0
        %537 = vmatpush1.bf16.msra.mxu0 0
        %538 = vmatprep.mubr.bf16.mxu0 0
        %539 = vmatmul.mubr.bf16.gmra.mrb[0].mxu0 %v377
        %v540 = vpop.f32.mrb[0].mxu0
        %v541 = vadd.f32 0.0, %v540
        %v542 = vpop.f32.mrb[0].mxu0
        %v543 = vpop.f32.mrb[0].mxu0
        %v544 = vadd.f32 0.0, %v543
        %v545 = vpop.f32.mrb[0].mxu0
        %546 = vmatprep.mubr.bf16.mxu0 0
        %547 = vmatmul.mubr.bf16.gmra.mrb[0].mxu0 %v378
        %v548 = vpop.f32.mrb[0].mxu0
        %v549 = vadd.f32 0.0, %v548
        %v550 = vpop.f32.mrb[0].mxu0
        %v551 = vpop.f32.mrb[0].mxu0
        %v552 = vadd.f32 0.0, %v551
        %v553 = vpop.f32.mrb[0].mxu0
        %554 = vmatprep.mubr.bf16.mxu0 0
        %555 = vmatmul.mubr.bf16.gmra.mrb[0].mxu0 %v379
        %v556 = vpop.f32.mrb[0].mxu0
        %v557 = vadd.f32 0.0, %v556
        %v558 = vpop.f32.mrb[0].mxu0
        %v559 = vpop.f32.mrb[0].mxu0
        %v560 = vadd.f32 0.0, %v559
        %v561 = vpop.f32.mrb[0].mxu0
        %562 = vmatprep.mubr.bf16.mxu0 0
        %563 = vmatmul.mubr.bf16.gmra.mrb[0].mxu0 %v380
        %v564 = vpop.f32.mrb[0].mxu0
        %v565 = vadd.f32 0.0, %v564
        %v566 = vpop.f32.mrb[0].mxu0
        %v567 = vpop.f32.mrb[0].mxu0
        %v568 = vadd.f32 0.0, %v567
        %v569 = vpop.f32.mrb[0].mxu0
        %570 = vmatprep.mubr.bf16.mxu0 0
        %571 = vmatmul.mubr.bf16.gmra.mrb[0].mxu0 %v381
        %v572 = vpop.f32.mrb[0].mxu0
        %v573 = vadd.f32 0.0, %v572
        %v574 = vpop.f32.mrb[0].mxu0
        %v575 = vpop.f32.mrb[0].mxu0
        %v576 = vadd.f32 0.0, %v575
        %v577 = vpop.f32.mrb[0].mxu0
        %578 = vmatprep.mubr.bf16.mxu0 0
        %579 = vmatmul.mubr.bf16.gmra.mrb[0].mxu0 %v382
        %v580 = vpop.f32.mrb[0].mxu0
        %v581 = vadd.f32 0.0, %v580
        %v582 = vpop.f32.mrb[0].mxu0
        %v583 = vpop.f32.mrb[0].mxu0
        %v584 = vadd.f32 0.0, %v583
        %v585 = vpop.f32.mrb[0].mxu0
        %586 = vmatprep.mubr.bf16.mxu0 0
        %587 = vmatmul.mubr.bf16.gmra.mrb[0].mxu0 %v383
        %v588 = vpop.f32.mrb[0].mxu0
        %v589 = vadd.f32 0.0, %v588
        %v590 = vpop.f32.mrb[0].mxu0
        %v591 = vpop.f32.mrb[0].mxu0
        %v592 = vadd.f32 0.0, %v591
        %v593 = vpop.f32.mrb[0].mxu0
        %594 = vmatprep.mubr.bf16.mxu0 0
        %595 = vmatmul.mubr.bf16.gmra.mrb[0].mxu0 %v384
        %v596 = vpop.f32.mrb[0].mxu0
        %v597 = vadd.f32 0.0, %v596
        %v598 = vpop.f32.mrb[0].mxu0
        %v599 = vpop.f32.mrb[0].mxu0
        %v600 = vadd.f32 0.0, %v599
        %v601 = vpop.f32.mrb[0].mxu0
        %602 = vmatprep.mubr.bf16.mxu0 0
        %603 = vmatmul.mubr.bf16.gmra.mrb[0].mxu0 %v385
        %v604 = vpop.f32.mrb[0].mxu0
        %v605 = vadd.f32 0.0, %v604
        %v606 = vpop.f32.mrb[0].mxu0
        %v607 = vpop.f32.mrb[0].mxu0
        %v608 = vadd.f32 0.0, %v607
        %v609 = vpop.f32.mrb[0].mxu0
        %610 = vmatprep.mubr.bf16.mxu0 0
        %611 = vmatmul.mubr.bf16.gmra.mrb[0].mxu0 %v386
        %v612 = vpop.f32.mrb[0].mxu0
        %v613 = vadd.f32 0.0, %v612
        %v614 = vpop.f32.mrb[0].mxu0
        %v615 = vpop.f32.mrb[0].mxu0
        %v616 = vadd.f32 0.0, %v615
        %v617 = vpop.f32.mrb[0].mxu0
        %618 = vmatprep.mubr.bf16.mxu0 0
        %619 = vmatmul.mubr.bf16.gmra.mrb[0].mxu0 %v387
        %v620 = vpop.f32.mrb[0].mxu0
        %v621 = vadd.f32 0.0, %v620
        %v622 = vpop.f32.mrb[0].mxu0
        %v623 = vpop.f32.mrb[0].mxu0
        %v624 = vadd.f32 0.0, %v623
        %v625 = vpop.f32.mrb[0].mxu0
        %626 = vmatprep.mubr.bf16.mxu0 0
        %627 = vmatmul.mubr.bf16.gmra.mrb[0].mxu0 %v388
        %v628 = vpop.f32.mrb[0].mxu0
        %v629 = vadd.f32 0.0, %v628
        %v630 = vpop.f32.mrb[0].mxu0
        %v631 = vpop.f32.mrb[0].mxu0
        %v632 = vadd.f32 0.0, %v631
        %v633 = vpop.f32.mrb[0].mxu0
        %634 = vmatprep.mubr.bf16.mxu0 0
        %635 = vmatmul.mubr.bf16.gmra.mrb[0].mxu0 %v389
        %v636 = vpop.f32.mrb[0].mxu0
        %v637 = vadd.f32 0.0, %v636
        %v638 = vpop.f32.mrb[0].mxu0
        %v639 = vpop.f32.mrb[0].mxu0
        %v640 = vadd.f32 0.0, %v639
        %v641 = vpop.f32.mrb[0].mxu0
        %642 = vmatprep.mubr.bf16.mxu0 0
        %643 = vmatmul.mubr.bf16.gmra.mrb[0].mxu0 %v390
        %v644 = vpop.f32.mrb[0].mxu0
        %v645 = vadd.f32 0.0, %v644
        %v646 = vpop.f32.mrb[0].mxu0
        %v647 = vpop.f32.mrb[0].mxu0
        %v648 = vadd.f32 0.0, %v647
        %v649 = vpop.f32.mrb[0].mxu0
        %650 = vmatprep.mubr.bf16.mxu0 0
        %651 = vmatmul.mubr.bf16.gmra.mrb[0].mxu0 %v391
        %v652 = vpop.f32.mrb[0].mxu0
        %v653 = vadd.f32 0.0, %v652
        %v654 = vpop.f32.mrb[0].mxu0
        %v655 = vpop.f32.mrb[0].mxu0
        %v656 = vadd.f32 0.0, %v655
        %v657 = vpop.f32.mrb[0].mxu0
        %658 = vmatprep.mubr.bf16.mxu0 0
        %659 = vmatmul.mubr.bf16.gmra.mrb[0].mxu0 %v392
        %v660 = vpop.f32.mrb[0].mxu0
        %v661 = vadd.f32 0.0, %v660
        %v662 = vpop.f32.mrb[0].mxu0
        %v663 = vpop.f32.mrb[0].mxu0
        %v664 = vadd.f32 0.0, %v663
        %v665 = vpop.f32.mrb[0].mxu0
        %666 = vmatprep.mubr.bf16.mxu0 0
        %667 = vmatmul.mubr.bf16.gmra.mrb[0].mxu0 %v393
        %v668 = vpop.f32.mrb[0].mxu0
        %v669 = vadd.f32 0.0, %v668
        %v670 = vpop.f32.mrb[0].mxu0
        %v671 = vpop.f32.mrb[0].mxu0
        %v672 = vadd.f32 0.0, %v671
        %v673 = vpop.f32.mrb[0].mxu0
        %674 = vmatprep.mubr.bf16.mxu0 0
        %675 = vmatmul.mubr.bf16.gmra.mrb[0].mxu0 %v394
        %v676 = vpop.f32.mrb[0].mxu0
        %v677 = vadd.f32 0.0, %v676
        %v678 = vpop.f32.mrb[0].mxu0
        %v679 = vpop.f32.mrb[0].mxu0
        %v680 = vadd.f32 0.0, %v679
        %v681 = vpop.f32.mrb[0].mxu0
        %682 = vmatprep.mubr.bf16.mxu0 0
        %683 = vmatmul.mubr.bf16.gmra.mrb[0].mxu0 %v395
        %v684 = vpop.f32.mrb[0].mxu0
        %v685 = vadd.f32 0.0, %v684
        %v686 = vpop.f32.mrb[0].mxu0
        %v687 = vpop.f32.mrb[0].mxu0
        %v688 = vadd.f32 0.0, %v687
        %v689 = vpop.f32.mrb[0].mxu0
        %690 = vmatprep.mubr.bf16.mxu0 0
        %691 = vmatmul.mubr.bf16.gmra.mrb[0].mxu0 %v396
        %v692 = vpop.f32.mrb[0].mxu0
        %v693 = vadd.f32 0.0, %v692
        %v694 = vpop.f32.mrb[0].mxu0
        %v695 = vpop.f32.mrb[0].mxu0
        %v696 = vadd.f32 0.0, %v695
        %v697 = vpop.f32.mrb[0].mxu0
        %698 = vmatprep.mubr.bf16.mxu0 0
        %699 = vmatmul.mubr.bf16.gmra.mrb[0].mxu0 %v397
        %v700 = vpop.f32.mrb[0].mxu0
        %v701 = vadd.f32 0.0, %v700
        %v702 = vpop.f32.mrb[0].mxu0
        %v703 = vpop.f32.mrb[0].mxu0
        %v704 = vadd.f32 0.0, %v703
        %v705 = vpop.f32.mrb[0].mxu0
        %706 = vmatprep.mubr.bf16.mxu0 0
        %707 = vmatmul.mubr.bf16.gmra.mrb[0].mxu0 %v398
        %v708 = vpop.f32.mrb[0].mxu0
        %v709 = vadd.f32 0.0, %v708
        %v710 = vpop.f32.mrb[0].mxu0
        %v711 = vpop.f32.mrb[0].mxu0
        %v712 = vadd.f32 0.0, %v711
        %v713 = vpop.f32.mrb[0].mxu0
        %714 = vmatprep.mubr.bf16.mxu0 0
        %715 = vmatmul.mubr.bf16.gmra.mrb[0].mxu0 %v399
        %v716 = vpop.f32.mrb[0].mxu0
        %v717 = vadd.f32 0.0, %v716
        %v718 = vpop.f32.mrb[0].mxu0
        %v719 = vpop.f32.mrb[0].mxu0
        %v720 = vadd.f32 0.0, %v719
        %v721 = vpop.f32.mrb[0].mxu0
        %722 = vmatprep.mubr.bf16.mxu0 0
        %723 = vmatmul.mubr.bf16.gmra.mrb[0].mxu0 %v400
        %v724 = vpop.f32.mrb[0].mxu0
        %v725 = vadd.f32 0.0, %v724
        %v726 = vpop.f32.mrb[0].mxu0
        %v727 = vpop.f32.mrb[0].mxu0
        %v728 = vadd.f32 0.0, %v727
        %v729 = vpop.f32.mrb[0].mxu0
        %730 = vmatprep.mubr.bf16.mxu0 0
        %731 = vmatmul.mubr.bf16.gmra.mrb[0].mxu0 %v401
        %v732 = vpop.f32.mrb[0].mxu0
        %v733 = vadd.f32 0.0, %v732
        %v734 = vpop.f32.mrb[0].mxu0
        %v735 = vpop.f32.mrb[0].mxu0
        %v736 = vadd.f32 0.0, %v735
        %v737 = vpop.f32.mrb[0].mxu0
        %738 = vmatprep.mubr.bf16.mxu0 0
        %739 = vmatmul.mubr.bf16.gmra.mrb[0].mxu0 %v402
        %v740 = vpop.f32.mrb[0].mxu0
        %v741 = vadd.f32 0.0, %v740
        %v742 = vpop.f32.mrb[0].mxu0
        %v743 = vpop.f32.mrb[0].mxu0
        %v744 = vadd.f32 0.0, %v743
        %v745 = vpop.f32.mrb[0].mxu0
        %746 = vmatprep.mubr.bf16.mxu0 0
        %747 = vmatmul.mubr.bf16.gmra.mrb[0].mxu0 %v403
        %v748 = vpop.f32.mrb[0].mxu0
        %v749 = vadd.f32 0.0, %v748
        %v750 = vpop.f32.mrb[0].mxu0
        %v751 = vpop.f32.mrb[0].mxu0
        %v752 = vadd.f32 0.0, %v751
        %v753 = vpop.f32.mrb[0].mxu0
        %754 = vmatprep.mubr.bf16.mxu0 0
        %755 = vmatmul.mubr.bf16.gmra.mrb[0].mxu0 %v404
        %v756 = vpop.f32.mrb[0].mxu0
        %v757 = vadd.f32 0.0, %v756
        %v758 = vpop.f32.mrb[0].mxu0
        %v759 = vpop.f32.mrb[0].mxu0
        %v760 = vadd.f32 0.0, %v759
        %v761 = vpop.f32.mrb[0].mxu0
        %762 = vmatprep.mubr.bf16.mxu0 0
        %763 = vmatmul.mubr.bf16.gmra.mrb[0].mxu0 %v405
        %v764 = vpop.f32.mrb[0].mxu0
        %v765 = vadd.f32 0.0, %v764
        %v766 = vpop.f32.mrb[0].mxu0
        %v767 = vpop.f32.mrb[0].mxu0
        %v768 = vadd.f32 0.0, %v767
        %v769 = vpop.f32.mrb[0].mxu0
        %770 = vmatprep.mubr.bf16.mxu0 0
        %771 = vmatmul.mubr.bf16.gmra.mrb[0].mxu0 %v406
        %v772 = vpop.f32.mrb[0].mxu0
        %v773 = vadd.f32 0.0, %v772
        %v774 = vpop.f32.mrb[0].mxu0
        %v775 = vpop.f32.mrb[0].mxu0
        %v776 = vadd.f32 0.0, %v775
        %v777 = vpop.f32.mrb[0].mxu0
        %778 = vmatprep.mubr.bf16.mxu0 0
        %779 = vmatmul.mubr.bf16.gmra.mrb[0].mxu0 %v407
        %v780 = vpop.f32.mrb[0].mxu0
        %v781 = vadd.f32 0.0, %v780
        %v782 = vpop.f32.mrb[0].mxu0
        %v783 = vpop.f32.mrb[0].mxu0
        %v784 = vadd.f32 0.0, %v783
        %v785 = vpop.f32.mrb[0].mxu0
        %786 = vmatprep.mubr.bf16.mxu0 0
        %787 = vmatmul.mubr.bf16.gmra.mrb[0].mxu0 %v408
        %v788 = vpop.f32.mrb[0].mxu0
        %v789 = vadd.f32 0.0, %v788
        %v790 = vpop.f32.mrb[0].mxu0
        %v791 = vpop.f32.mrb[0].mxu0
        %v792 = vadd.f32 0.0, %v791
        %v793 = vpop.f32.mrb[0].mxu0
        %794 = vmatprep.mubr.bf16.mxu0 0
        %795 = vmatmul.mubr.bf16.gmra.mrb[0].mxu0 %v409
        %v796 = vpop.f32.mrb[0].mxu0
        %v797 = vadd.f32 0.0, %v796
        %v798 = vpop.f32.mrb[0].mxu0
        %v799 = vpop.f32.mrb[0].mxu0
        %v800 = vadd.f32 0.0, %v799
        %v801 = vpop.f32.mrb[0].mxu0
        %802 = vmatprep.mubr.bf16.mxu0 0
        %803 = vmatmul.mubr.bf16.gmra.mrb[0].mxu0 %v410
        %v804 = vpop.f32.mrb[0].mxu0
        %v805 = vadd.f32 0.0, %v804
        %v806 = vpop.f32.mrb[0].mxu0
        %v807 = vpop.f32.mrb[0].mxu0
        %v808 = vadd.f32 0.0, %v807
        %v809 = vpop.f32.mrb[0].mxu0
        %810 = vmatprep.mubr.bf16.mxu0 0
        %811 = vmatmul.mubr.bf16.gmra.mrb[0].mxu0 %v411
        %v812 = vpop.f32.mrb[0].mxu0
        %v813 = vadd.f32 0.0, %v812
        %v814 = vpop.f32.mrb[0].mxu0
        %v815 = vpop.f32.mrb[0].mxu0
        %v816 = vadd.f32 0.0, %v815
        %v817 = vpop.f32.mrb[0].mxu0
        %818 = vmatprep.mubr.bf16.mxu0 0
        %819 = vmatmul.mubr.bf16.gmra.mrb[0].mxu0 %v412
        %v820 = vpop.f32.mrb[0].mxu0
        %v821 = vadd.f32 0.0, %v820
        %v822 = vpop.f32.mrb[0].mxu0
        %v823 = vpop.f32.mrb[0].mxu0
        %v824 = vadd.f32 0.0, %v823
        %v825 = vpop.f32.mrb[0].mxu0
        %826 = vmatprep.mubr.bf16.mxu0 0
        %827 = vmatmul.mubr.bf16.gmra.mrb[0].mxu0 %v413
        %v828 = vpop.f32.mrb[0].mxu0
        %v829 = vadd.f32 0.0, %v828
        %v830 = vpop.f32.mrb[0].mxu0
        %v831 = vpop.f32.mrb[0].mxu0
        %v832 = vadd.f32 0.0, %v831
        %v833 = vpop.f32.mrb[0].mxu0
        %834 = vmatprep.mubr.bf16.mxu0 0
        %835 = vmatmul.mubr.bf16.gmra.mrb[0].mxu0 %v414
        %v836 = vpop.f32.mrb[0].mxu0
        %v837 = vadd.f32 0.0, %v836
        %v838 = vpop.f32.mrb[0].mxu0
        %v839 = vpop.f32.mrb[0].mxu0
        %v840 = vadd.f32 0.0, %v839
        %v841 = vpop.f32.mrb[0].mxu0
        %842 = vmatprep.mubr.bf16.mxu0 0
        %843 = vmatmul.mubr.bf16.gmra.mrb[0].mxu0 %v415
        %v844 = vpop.f32.mrb[0].mxu0
        %v845 = vadd.f32 0.0, %v844
        %v846 = vpop.f32.mrb[0].mxu0
        %v847 = vpop.f32.mrb[0].mxu0
        %v848 = vadd.f32 0.0, %v847
        %v849 = vpop.f32.mrb[0].mxu0
        %850 = vmatprep.mubr.bf16.mxu0 0
        %851 = vmatmul.mubr.bf16.gmra.mrb[0].mxu0 %v416
        %v852 = vpop.f32.mrb[0].mxu0
        %v853 = vadd.f32 0.0, %v852
        %v854 = vpop.f32.mrb[0].mxu0
        %v855 = vpop.f32.mrb[0].mxu0
        %v856 = vadd.f32 0.0, %v855
        %v857 = vpop.f32.mrb[0].mxu0
        %858 = vmatprep.mubr.bf16.mxu0 0
        %859 = vmatmul.mubr.bf16.gmra.mrb[0].mxu0 %v417
        %v860 = vpop.f32.mrb[0].mxu0
        %v861 = vadd.f32 0.0, %v860
        %v862 = vpop.f32.mrb[0].mxu0
        %v863 = vpop.f32.mrb[0].mxu0
        %v864 = vadd.f32 0.0, %v863
        %v865 = vpop.f32.mrb[0].mxu0
        %866 = vmatprep.mubr.bf16.mxu0 0
        %867 = vmatmul.mubr.bf16.gmra.mrb[0].mxu0 %v418
        %v868 = vpop.f32.mrb[0].mxu0
        %v869 = vadd.f32 0.0, %v868
        %v870 = vpop.f32.mrb[0].mxu0
        %v871 = vpop.f32.mrb[0].mxu0
        %v872 = vadd.f32 0.0, %v871
        %v873 = vpop.f32.mrb[0].mxu0
        %874 = vmatprep.mubr.bf16.mxu0 0
        %875 = vmatmul.mubr.bf16.gmra.mrb[0].mxu0 %v419
        %v876 = vpop.f32.mrb[0].mxu0
        %v877 = vadd.f32 0.0, %v876
        %v878 = vpop.f32.mrb[0].mxu0
        %v879 = vpop.f32.mrb[0].mxu0
        %v880 = vadd.f32 0.0, %v879
        %v881 = vpop.f32.mrb[0].mxu0
        %882 = vmatprep.mubr.bf16.mxu0 0
        %883 = vmatmul.mubr.bf16.gmra.mrb[0].mxu0 %v420
        %v884 = vpop.f32.mrb[0].mxu0
        %v885 = vadd.f32 0.0, %v884
        %v886 = vpop.f32.mrb[0].mxu0
        %v887 = vpop.f32.mrb[0].mxu0
        %v888 = vadd.f32 0.0, %v887
        %v889 = vpop.f32.mrb[0].mxu0
        %890 = vmatprep.mubr.bf16.mxu0 0
        %891 = vmatmul.mubr.bf16.gmra.mrb[0].mxu0 %v421
        %v892 = vpop.f32.mrb[0].mxu0
        %v893 = vadd.f32 0.0, %v892
        %v894 = vpop.f32.mrb[0].mxu0
        %v895 = vpop.f32.mrb[0].mxu0
        %v896 = vadd.f32 0.0, %v895
        %v897 = vpop.f32.mrb[0].mxu0
        %898 = vmatprep.mubr.bf16.mxu0 0
        %899 = vmatmul.mubr.bf16.gmra.mrb[0].mxu0 %v422
        %v900 = vpop.f32.mrb[0].mxu0
        %v901 = vadd.f32 0.0, %v900
        %v902 = vpop.f32.mrb[0].mxu0
        %v903 = vpop.f32.mrb[0].mxu0
        %v904 = vadd.f32 0.0, %v903
        %v905 = vpop.f32.mrb[0].mxu0
        %906 = vmatprep.mubr.bf16.mxu0 0
        %907 = vmatmul.mubr.bf16.gmra.mrb[0].mxu0 %v423
        %v908 = vpop.f32.mrb[0].mxu0
        %v909 = vadd.f32 0.0, %v908
        %v910 = vpop.f32.mrb[0].mxu0
        %v911 = vpop.f32.mrb[0].mxu0
        %v912 = vadd.f32 0.0, %v911
        %v913 = vpop.f32.mrb[0].mxu0
        %914 = vmatprep.mubr.bf16.mxu0 0
        %915 = vmatmul.mubr.bf16.gmra.mrb[0].mxu0 %v424
        %v916 = vpop.f32.mrb[0].mxu0
        %v917 = vadd.f32 0.0, %v916
        %v918 = vpop.f32.mrb[0].mxu0
        %v919 = vpop.f32.mrb[0].mxu0
        %v920 = vadd.f32 0.0, %v919
        %v921 = vpop.f32.mrb[0].mxu0
        %922 = vmatprep.mubr.bf16.mxu0 0
        %923 = vmatmul.mubr.bf16.gmra.mrb[0].mxu0 %v425
        %v924 = vpop.f32.mrb[0].mxu0
        %v925 = vadd.f32 0.0, %v924
        %v926 = vpop.f32.mrb[0].mxu0
        %v927 = vpop.f32.mrb[0].mxu0
        %v928 = vadd.f32 0.0, %v927
        %v929 = vpop.f32.mrb[0].mxu0
        %930 = vmatprep.mubr.bf16.mxu0 0
        %931 = vmatmul.mubr.bf16.gmra.mrb[0].mxu0 %v426
        %v932 = vpop.f32.mrb[0].mxu0
        %v933 = vadd.f32 0.0, %v932
        %v934 = vpop.f32.mrb[0].mxu0
        %v935 = vpop.f32.mrb[0].mxu0
        %v936 = vadd.f32 0.0, %v935
        %v937 = vpop.f32.mrb[0].mxu0
        %938 = vmatprep.mubr.bf16.mxu0 0
        %939 = vmatmul.mubr.bf16.gmra.mrb[0].mxu0 %v427
        %v940 = vpop.f32.mrb[0].mxu0
        %v941 = vadd.f32 0.0, %v940
        %v942 = vpop.f32.mrb[0].mxu0
        %v943 = vpop.f32.mrb[0].mxu0
        %v944 = vadd.f32 0.0, %v943
        %v945 = vpop.f32.mrb[0].mxu0
        %946 = vmatprep.mubr.bf16.mxu0 0
        %947 = vmatmul.mubr.bf16.gmra.mrb[0].mxu0 %v428
        %v948 = vpop.f32.mrb[0].mxu0
        %v949 = vadd.f32 0.0, %v948
        %v950 = vpop.f32.mrb[0].mxu0
        %v951 = vpop.f32.mrb[0].mxu0
        %v952 = vadd.f32 0.0, %v951
        %v953 = vpop.f32.mrb[0].mxu0
        %954 = vmatprep.mubr.bf16.mxu0 0
        %955 = vmatmul.mubr.bf16.gmra.mrb[0].mxu0 %v429
        %v956 = vpop.f32.mrb[0].mxu0
        %v957 = vadd.f32 0.0, %v956
        %v958 = vpop.f32.mrb[0].mxu0
        %v959 = vpop.f32.mrb[0].mxu0
        %v960 = vadd.f32 0.0, %v959
        %v961 = vpop.f32.mrb[0].mxu0
        %962 = vmatprep.mubr.bf16.mxu0 0
        %963 = vmatmul.mubr.bf16.gmra.mrb[0].mxu0 %v430
        %v964 = vpop.f32.mrb[0].mxu0
        %v965 = vadd.f32 0.0, %v964
        %v966 = vpop.f32.mrb[0].mxu0
        %v967 = vpop.f32.mrb[0].mxu0
        %v968 = vadd.f32 0.0, %v967
        %v969 = vpop.f32.mrb[0].mxu0
        %970 = vmatprep.mubr.bf16.mxu0 0
        %971 = vmatmul.mubr.bf16.gmra.mrb[0].mxu0 %v431
        %v972 = vpop.f32.mrb[0].mxu0
        %v973 = vadd.f32 0.0, %v972
        %v974 = vpop.f32.mrb[0].mxu0
        %v975 = vpop.f32.mrb[0].mxu0
        %v976 = vadd.f32 0.0, %v975
        %v977 = vpop.f32.mrb[0].mxu0
        %978 = vmatprep.mubr.bf16.mxu0 0
        %979 = vmatmul.mubr.bf16.gmra.mrb[0].mxu0 %v432
        %v980 = vpop.f32.mrb[0].mxu0
        %v981 = vadd.f32 0.0, %v980
        %v982 = vpop.f32.mrb[0].mxu0
        %v983 = vpop.f32.mrb[0].mxu0
        %v984 = vadd.f32 0.0, %v983
        %v985 = vpop.f32.mrb[0].mxu0
        %986 = vmatprep.mubr.bf16.mxu0 0
        %987 = vmatmul.mubr.bf16.gmra.mrb[0].mxu0 %v433
        %v988 = vpop.f32.mrb[0].mxu0
        %v989 = vadd.f32 0.0, %v988
        %v990 = vpop.f32.mrb[0].mxu0
        %v991 = vpop.f32.mrb[0].mxu0
        %v992 = vadd.f32 0.0, %v991
        %v993 = vpop.f32.mrb[0].mxu0
        %994 = vmatprep.mubr.bf16.mxu0 0
        %995 = vmatmul.mubr.bf16.gmra.mrb[0].mxu0 %v434
        %v996 = vpop.f32.mrb[0].mxu0
        %v997 = vadd.f32 0.0, %v996
        %v998 = vpop.f32.mrb[0].mxu0
        %v999 = vpop.f32.mrb[0].mxu0
        %v1000 = vadd.f32 0.0, %v999
        %v1001 = vpop.f32.mrb[0].mxu0
        %1002 = vmatprep.mubr.bf16.mxu0 0
        %1003 = vmatmul.mubr.bf16.gmra.mrb[0].mxu0 %v435
        %v1004 = vpop.f32.mrb[0].mxu0
        %v1005 = vadd.f32 0.0, %v1004
        %v1006 = vpop.f32.mrb[0].mxu0
        %v1007 = vpop.f32.mrb[0].mxu0
        %v1008 = vadd.f32 0.0, %v1007
        %v1009 = vpop.f32.mrb[0].mxu0
        %1010 = vmatprep.mubr.bf16.mxu0 0
        %1011 = vmatmul.mubr.bf16.gmra.mrb[0].mxu0 %v436
        %v1012 = vpop.f32.mrb[0].mxu0
        %v1013 = vadd.f32 0.0, %v1012
        %v1014 = vpop.f32.mrb[0].mxu0
        %v1015 = vpop.f32.mrb[0].mxu0
        %v1016 = vadd.f32 0.0, %v1015
        %v1017 = vpop.f32.mrb[0].mxu0
        %1018 = vmatprep.mubr.bf16.mxu0 0
        %1019 = vmatmul.mubr.bf16.gmra.mrb[0].mxu0 %v437
        %v1020 = vpop.f32.mrb[0].mxu0
        %v1021 = vadd.f32 0.0, %v1020
        %v1022 = vpop.f32.mrb[0].mxu0
        %v1023 = vpop.f32.mrb[0].mxu0
        %v1024 = vadd.f32 0.0, %v1023
        %v1025 = vpop.f32.mrb[0].mxu0
        %1026 = vmatprep.mubr.bf16.mxu0 0
        %1027 = vmatmul.mubr.bf16.gmra.mrb[0].mxu0 %v438
        %v1028 = vpop.f32.mrb[0].mxu0
        %v1029 = vadd.f32 0.0, %v1028
        %v1030 = vpop.f32.mrb[0].mxu0
        %v1031 = vpop.f32.mrb[0].mxu0
        %v1032 = vadd.f32 0.0, %v1031
        %v1033 = vpop.f32.mrb[0].mxu0
        %1034 = vmatprep.mubr.bf16.mxu0 0
        %1035 = vmatmul.mubr.bf16.gmra.mrb[0].mxu0 %v439
        %v1036 = vpop.f32.mrb[0].mxu0
        %v1037 = vadd.f32 0.0, %v1036
        %v1038 = vpop.f32.mrb[0].mxu0
        %v1039 = vpop.f32.mrb[0].mxu0
        %v1040 = vadd.f32 0.0, %v1039
        %v1041 = vpop.f32.mrb[0].mxu0
        %1042 = vmatprep.mubr.bf16.mxu0 0
        %1043 = vmatmul.mubr.bf16.gmra.mrb[0].mxu0 %v440
        %v1044 = vpop.f32.mrb[0].mxu0
        %v1045 = vadd.f32 0.0, %v1044
        %v1046 = vpop.f32.mrb[0].mxu0
        %v1047 = vpop.f32.mrb[0].mxu0
        %v1048 = vadd.f32 0.0, %v1047
        %v1049 = vpop.f32.mrb[0].mxu0
        %1050 = vdwg.mxu0
        %vm1051 = vcmask 261120
        %1052 = vst.msk [vmem:[#allocation2] sm:$0xff] %vm1051, %v541
        %1053 = vst.msk [vmem:[#allocation2 + $0x8] sm:$0xff] %vm1051, %v544
        %1054 = vst.msk [vmem:[#allocation2 + $0x10] sm:$0xff] %vm1051, %v549
        %1055 = vst.msk [vmem:[#allocation2 + $0x18] sm:$0xff] %vm1051, %v552
        %1056 = vst.msk [vmem:[#allocation2 + $0x20] sm:$0xff] %vm1051, %v557
        %1057 = vst.msk [vmem:[#allocation2 + $0x28] sm:$0xff] %vm1051, %v560
        %1058 = vst.msk [vmem:[#allocation2 + $0x30] sm:$0xff] %vm1051, %v565
        %1059 = vst.msk [vmem:[#allocation2 + $0x38] sm:$0xff] %vm1051, %v568
        %1060 = vst.msk [vmem:[#allocation2 + $0x40] sm:$0xff] %vm1051, %v573
        %1061 = vst.msk [vmem:[#allocation2 + $0x48] sm:$0xff] %vm1051, %v576
        %1062 = vst.msk [vmem:[#allocation2 + $0x50] sm:$0xff] %vm1051, %v581
        %1063 = vst.msk [vmem:[#allocation2 + $0x58] sm:$0xff] %vm1051, %v584
        %1064 = vst.msk [vmem:[#allocation2 + $0x60] sm:$0xff] %vm1051, %v589
        %1065 = vst.msk [vmem:[#allocation2 + $0x68] sm:$0xff] %vm1051, %v592
        %1066 = vst.msk [vmem:[#allocation2 + $0x70] sm:$0xff] %vm1051, %v597
        %1067 = vst.msk [vmem:[#allocation2 + $0x78] sm:$0xff] %vm1051, %v600
        %1068 = vst.msk [vmem:[#allocation2 + $0x80] sm:$0xff] %vm1051, %v605
        %1069 = vst.msk [vmem:[#allocation2 + $0x88] sm:$0xff] %vm1051, %v608
        %1070 = vst.msk [vmem:[#allocation2 + $0x90] sm:$0xff] %vm1051, %v613
        %1071 = vst.msk [vmem:[#allocation2 + $0x98] sm:$0xff] %vm1051, %v616
        %1072 = vst.msk [vmem:[#allocation2 + $0xa0] sm:$0xff] %vm1051, %v621
        %1073 = vst.msk [vmem:[#allocation2 + $0xa8] sm:$0xff] %vm1051, %v624
        %1074 = vst.msk [vmem:[#allocation2 + $0xb0] sm:$0xff] %vm1051, %v629
        %1075 = vst.msk [vmem:[#allocation2 + $0xb8] sm:$0xff] %vm1051, %v632
        %1076 = vst.msk [vmem:[#allocation2 + $0xc0] sm:$0xff] %vm1051, %v637
        %1077 = vst.msk [vmem:[#allocation2 + $0xc8] sm:$0xff] %vm1051, %v640
        %1078 = vst.msk [vmem:[#allocation2 + $0xd0] sm:$0xff] %vm1051, %v645
        %1079 = vst.msk [vmem:[#allocation2 + $0xd8] sm:$0xff] %vm1051, %v648
        %1080 = vst.msk [vmem:[#allocation2 + $0xe0] sm:$0xff] %vm1051, %v653
        %1081 = vst.msk [vmem:[#allocation2 + $0xe8] sm:$0xff] %vm1051, %v656
        %1082 = vst.msk [vmem:[#allocation2 + $0xf0] sm:$0xff] %vm1051, %v661
        %1083 = vst.msk [vmem:[#allocation2 + $0xf8] sm:$0xff] %vm1051, %v664
        %1084 = vst.msk [vmem:[#allocation2 + $0x100] sm:$0xff] %vm1051, %v669
        %1085 = vst.msk [vmem:[#allocation2 + $0x108] sm:$0xff] %vm1051, %v672
        %1086 = vst.msk [vmem:[#allocation2 + $0x110] sm:$0xff] %vm1051, %v677
        %1087 = vst.msk [vmem:[#allocation2 + $0x118] sm:$0xff] %vm1051, %v680
        %1088 = vst.msk [vmem:[#allocation2 + $0x120] sm:$0xff] %vm1051, %v685
        %1089 = vst.msk [vmem:[#allocation2 + $0x128] sm:$0xff] %vm1051, %v688
        %1090 = vst.msk [vmem:[#allocation2 + $0x130] sm:$0xff] %vm1051, %v693
        %1091 = vst.msk [vmem:[#allocation2 + $0x138] sm:$0xff] %vm1051, %v696
        %1092 = vst.msk [vmem:[#allocation2 + $0x140] sm:$0xff] %vm1051, %v701
        %1093 = vst.msk [vmem:[#allocation2 + $0x148] sm:$0xff] %vm1051, %v704
        %1094 = vst.msk [vmem:[#allocation2 + $0x150] sm:$0xff] %vm1051, %v709
        %1095 = vst.msk [vmem:[#allocation2 + $0x158] sm:$0xff] %vm1051, %v712
        %1096 = vst.msk [vmem:[#allocation2 + $0x160] sm:$0xff] %vm1051, %v717
        %1097 = vst.msk [vmem:[#allocation2 + $0x168] sm:$0xff] %vm1051, %v720
        %1098 = vst.msk [vmem:[#allocation2 + $0x170] sm:$0xff] %vm1051, %v725
        %1099 = vst.msk [vmem:[#allocation2 + $0x178] sm:$0xff] %vm1051, %v728
        %1100 = vst.msk [vmem:[#allocation2 + $0x180] sm:$0xff] %vm1051, %v733
        %1101 = vst.msk [vmem:[#allocation2 + $0x188] sm:$0xff] %vm1051, %v736
        %1102 = vst.msk [vmem:[#allocation2 + $0x190] sm:$0xff] %vm1051, %v741
        %1103 = vst.msk [vmem:[#allocation2 + $0x198] sm:$0xff] %vm1051, %v744
        %1104 = vst.msk [vmem:[#allocation2 + $0x1a0] sm:$0xff] %vm1051, %v749
        %1105 = vst.msk [vmem:[#allocation2 + $0x1a8] sm:$0xff] %vm1051, %v752
        %1106 = vst.msk [vmem:[#allocation2 + $0x1b0] sm:$0xff] %vm1051, %v757
        %1107 = vst.msk [vmem:[#allocation2 + $0x1b8] sm:$0xff] %vm1051, %v760
        %1108 = vst.msk [vmem:[#allocation2 + $0x1c0] sm:$0xff] %vm1051, %v765
        %1109 = vst.msk [vmem:[#allocation2 + $0x1c8] sm:$0xff] %vm1051, %v768
        %1110 = vst.msk [vmem:[#allocation2 + $0x1d0] sm:$0xff] %vm1051, %v773
        %1111 = vst.msk [vmem:[#allocation2 + $0x1d8] sm:$0xff] %vm1051, %v776
        %1112 = vst.msk [vmem:[#allocation2 + $0x1e0] sm:$0xff] %vm1051, %v781
        %1113 = vst.msk [vmem:[#allocation2 + $0x1e8] sm:$0xff] %vm1051, %v784
        %1114 = vst.msk [vmem:[#allocation2 + $0x1f0] sm:$0xff] %vm1051, %v789
        %1115 = vst.msk [vmem:[#allocation2 + $0x1f8] sm:$0xff] %vm1051, %v792
        %1116 = vst.msk [vmem:[#allocation2 + $0x200] sm:$0xff] %vm1051, %v797
        %1117 = vst.msk [vmem:[#allocation2 + $0x208] sm:$0xff] %vm1051, %v800
        %1118 = vst.msk [vmem:[#allocation2 + $0x210] sm:$0xff] %vm1051, %v805
        %1119 = vst.msk [vmem:[#allocation2 + $0x218] sm:$0xff] %vm1051, %v808
        %1120 = vst.msk [vmem:[#allocation2 + $0x220] sm:$0xff] %vm1051, %v813
        %1121 = vst.msk [vmem:[#allocation2 + $0x228] sm:$0xff] %vm1051, %v816
        %1122 = vst.msk [vmem:[#allocation2 + $0x230] sm:$0xff] %vm1051, %v821
        %1123 = vst.msk [vmem:[#allocation2 + $0x238] sm:$0xff] %vm1051, %v824
        %1124 = vst.msk [vmem:[#allocation2 + $0x240] sm:$0xff] %vm1051, %v829
        %1125 = vst.msk [vmem:[#allocation2 + $0x248] sm:$0xff] %vm1051, %v832
        %1126 = vst.msk [vmem:[#allocation2 + $0x250] sm:$0xff] %vm1051, %v837
        %1127 = vst.msk [vmem:[#allocation2 + $0x258] sm:$0xff] %vm1051, %v840
        %1128 = vst.msk [vmem:[#allocation2 + $0x260] sm:$0xff] %vm1051, %v845
        %1129 = vst.msk [vmem:[#allocation2 + $0x268] sm:$0xff] %vm1051, %v848
        %1130 = vst.msk [vmem:[#allocation2 + $0x270] sm:$0xff] %vm1051, %v853
        %1131 = vst.msk [vmem:[#allocation2 + $0x278] sm:$0xff] %vm1051, %v856
        %1132 = vst.msk [vmem:[#allocation2 + $0x280] sm:$0xff] %vm1051, %v861
        %1133 = vst.msk [vmem:[#allocation2 + $0x288] sm:$0xff] %vm1051, %v864
        %1134 = vst.msk [vmem:[#allocation2 + $0x290] sm:$0xff] %vm1051, %v869
        %1135 = vst.msk [vmem:[#allocation2 + $0x298] sm:$0xff] %vm1051, %v872
        %1136 = vst.msk [vmem:[#allocation2 + $0x2a0] sm:$0xff] %vm1051, %v877
        %1137 = vst.msk [vmem:[#allocation2 + $0x2a8] sm:$0xff] %vm1051, %v880
        %1138 = vst.msk [vmem:[#allocation2 + $0x2b0] sm:$0xff] %vm1051, %v885
        %1139 = vst.msk [vmem:[#allocation2 + $0x2b8] sm:$0xff] %vm1051, %v888
        %1140 = vst.msk [vmem:[#allocation2 + $0x2c0] sm:$0xff] %vm1051, %v893
        %1141 = vst.msk [vmem:[#allocation2 + $0x2c8] sm:$0xff] %vm1051, %v896
        %1142 = vst.msk [vmem:[#allocation2 + $0x2d0] sm:$0xff] %vm1051, %v901
        %1143 = vst.msk [vmem:[#allocation2 + $0x2d8] sm:$0xff] %vm1051, %v904
        %1144 = vst.msk [vmem:[#allocation2 + $0x2e0] sm:$0xff] %vm1051, %v909
        %1145 = vst.msk [vmem:[#allocation2 + $0x2e8] sm:$0xff] %vm1051, %v912
        %1146 = vst.msk [vmem:[#allocation2 + $0x2f0] sm:$0xff] %vm1051, %v917
        %1147 = vst.msk [vmem:[#allocation2 + $0x2f8] sm:$0xff] %vm1051, %v920
        %1148 = vst.msk [vmem:[#allocation2 + $0x300] sm:$0xff] %vm1051, %v925
        %1149 = vst.msk [vmem:[#allocation2 + $0x308] sm:$0xff] %vm1051, %v928
        %1150 = vst.msk [vmem:[#allocation2 + $0x310] sm:$0xff] %vm1051, %v933
        %1151 = vst.msk [vmem:[#allocation2 + $0x318] sm:$0xff] %vm1051, %v936
        %1152 = vst.msk [vmem:[#allocation2 + $0x320] sm:$0xff] %vm1051, %v941
        %1153 = vst.msk [vmem:[#allocation2 + $0x328] sm:$0xff] %vm1051, %v944
        %1154 = vst.msk [vmem:[#allocation2 + $0x330] sm:$0xff] %vm1051, %v949
        %1155 = vst.msk [vmem:[#allocation2 + $0x338] sm:$0xff] %vm1051, %v952
        %1156 = vst.msk [vmem:[#allocation2 + $0x340] sm:$0xff] %vm1051, %v957
        %1157 = vst.msk [vmem:[#allocation2 + $0x348] sm:$0xff] %vm1051, %v960
        %1158 = vst.msk [vmem:[#allocation2 + $0x350] sm:$0xff] %vm1051, %v965
        %1159 = vst.msk [vmem:[#allocation2 + $0x358] sm:$0xff] %vm1051, %v968
        %1160 = vst.msk [vmem:[#allocation2 + $0x360] sm:$0xff] %vm1051, %v973
        %1161 = vst.msk [vmem:[#allocation2 + $0x368] sm:$0xff] %vm1051, %v976
        %1162 = vst.msk [vmem:[#allocation2 + $0x370] sm:$0xff] %vm1051, %v981
        %1163 = vst.msk [vmem:[#allocation2 + $0x378] sm:$0xff] %vm1051, %v984
        %1164 = vst.msk [vmem:[#allocation2 + $0x380] sm:$0xff] %vm1051, %v989
        %1165 = vst.msk [vmem:[#allocation2 + $0x388] sm:$0xff] %vm1051, %v992
        %1166 = vst.msk [vmem:[#allocation2 + $0x390] sm:$0xff] %vm1051, %v997
        %1167 = vst.msk [vmem:[#allocation2 + $0x398] sm:$0xff] %vm1051, %v1000
        %1168 = vst.msk [vmem:[#allocation2 + $0x3a0] sm:$0xff] %vm1051, %v1005
        %1169 = vst.msk [vmem:[#allocation2 + $0x3a8] sm:$0xff] %vm1051, %v1008
        %1170 = vst.msk [vmem:[#allocation2 + $0x3b0] sm:$0xff] %vm1051, %v1013
        %1171 = vst.msk [vmem:[#allocation2 + $0x3b8] sm:$0xff] %vm1051, %v1016
        %1172 = vst.msk [vmem:[#allocation2 + $0x3c0] sm:$0xff] %vm1051, %v1021
        %1173 = vst.msk [vmem:[#allocation2 + $0x3c8] sm:$0xff] %vm1051, %v1024
        %1174 = vst.msk [vmem:[#allocation2 + $0x3d0] sm:$0xff] %vm1051, %v1029
        %1175 = vst.msk [vmem:[#allocation2 + $0x3d8] sm:$0xff] %vm1051, %v1032
        %1176 = vst.msk [vmem:[#allocation2 + $0x3e0] sm:$0xff] %vm1051, %v1037
        %1177 = vst.msk [vmem:[#allocation2 + $0x3e8] sm:$0xff] %vm1051, %v1040
        %1178 = vst.msk [vmem:[#allocation2 + $0x3f0] sm:$0xff] %vm1051, %v1045
        %1179 = vst.msk [vmem:[#allocation2 + $0x3f8] sm:$0xff] %vm1051, %v1048
        %v1180 = vld [vmem:[%s1] sm:$0xf]
        %v1181 = vld [vmem:[%s1 + $0x4] sm:$0xf]
        %v1182 = vld [vmem:[%s1 + $0x8] sm:$0xf]
        %v1183 = vld [vmem:[%s1 + $0xc] sm:$0xf]
        %v1184 = vld [vmem:[%s1 + $0x10] sm:$0xf]
        %v1185 = vld [vmem:[%s1 + $0x14] sm:$0xf]
        %v1186 = vld [vmem:[%s1 + $0x18] sm:$0xf]
        %v1187 = vld [vmem:[%s1 + $0x1c] sm:$0xf]
        %v1188 = vld [vmem:[%s1 + $0x20] sm:$0xf]
        %v1189 = vld [vmem:[%s1 + $0x24] sm:$0xf]
        %v1190 = vld [vmem:[%s1 + $0x28] sm:$0xf]
        %v1191 = vld [vmem:[%s1 + $0x2c] sm:$0xf]
        %v1192 = vld [vmem:[%s1 + $0x30] sm:$0xf]
        %v1193 = vld [vmem:[%s1 + $0x34] sm:$0xf]
        %v1194 = vld [vmem:[%s1 + $0x38] sm:$0xf]
        %v1195 = vld [vmem:[%s1 + $0x3c] sm:$0xf]
        %v1212 = vunpack.c.l.b16 %v1180
        %v1213 = vunpack.c.l.b16 %v1181
        %v1214 = vunpack.c.l.b16 %v1182
        %v1215 = vunpack.c.l.b16 %v1183
        %v1216 = vunpack.c.l.b16 %v1184
        %v1217 = vunpack.c.l.b16 %v1185
        %v1218 = vunpack.c.l.b16 %v1186
        %v1219 = vunpack.c.l.b16 %v1187
        %v1220 = vunpack.c.l.b16 %v1188
        %v1221 = vunpack.c.l.b16 %v1189
        %v1222 = vunpack.c.l.b16 %v1190
        %v1223 = vunpack.c.l.b16 %v1191
        %v1224 = vunpack.c.l.b16 %v1192
        %v1225 = vunpack.c.l.b16 %v1193
        %v1226 = vunpack.c.l.b16 %v1194
        %v1227 = vunpack.c.l.b16 %v1195
        %v1228 = vpack.c.b16 %v1213, %v1212
        %v1229 = vpack.c.b16 %v1215, %v1214
        %v1230 = vpack.c.b16 %v1217, %v1216
        %v1231 = vpack.c.b16 %v1219, %v1218
        %v1232 = vpack.c.b16 %v1221, %v1220
        %v1233 = vpack.c.b16 %v1223, %v1222
        %v1234 = vpack.c.b16 %v1225, %v1224
        %v1235 = vpack.c.b16 %v1227, %v1226
        %1244 = vmatprep.subr.bf16.mxu0 0
        %1245 = vmatpush1.bf16.msra.mxu0 %v1228
        %1246 = vmatprep.subr.bf16.mxu0 0
        %1247 = vmatpush1.bf16.msra.mxu0 %v1229
        %1248 = vmatprep.subr.bf16.mxu0 0
        %1249 = vmatpush1.bf16.msra.mxu0 %v1230
        %1250 = vmatprep.subr.bf16.mxu0 0
        %1251 = vmatpush1.bf16.msra.mxu0 %v1231
        %1252 = vmatprep.subr.bf16.mxu0 0
        %1253 = vmatpush1.bf16.msra.mxu0 %v1232
        %1254 = vmatprep.subr.bf16.mxu0 0
        %1255 = vmatpush1.bf16.msra.mxu0 %v1233
        %1256 = vmatprep.subr.bf16.mxu0 0
        %1257 = vmatpush1.bf16.msra.mxu0 %v1234
        %1258 = vmatprep.subr.bf16.mxu0 0
        %1259 = vmatpush1.bf16.msra.mxu0 %v1235
        %1260 = vmatprep.subr.bf16.mxu0 0
        %1261 = vmatpush1.bf16.msra.mxu0 0
        %1262 = vmatprep.subr.bf16.mxu0 0
        %1263 = vmatpush1.bf16.msra.mxu0 0
        %1264 = vmatprep.subr.bf16.mxu0 0
        %1265 = vmatpush1.bf16.msra.mxu0 0
        %1266 = vmatprep.subr.bf16.mxu0 0
        %1267 = vmatpush1.bf16.msra.mxu0 0
        %1268 = vmatprep.subr.bf16.mxu0 0
        %1269 = vmatpush1.bf16.msra.mxu0 0
        %1270 = vmatprep.subr.bf16.mxu0 0
        %1271 = vmatpush1.bf16.msra.mxu0 0
        %1272 = vmatprep.subr.bf16.mxu0 0
        %1273 = vmatpush1.bf16.msra.mxu0 0
        %1274 = vmatprep.subr.bf16.mxu0 0
        %1275 = vmatpush1.bf16.msra.mxu0 0
        %1276 = vmatprep.mubr.bf16.mxu0 0
        %1277 = vmatmul.mubr.bf16.gmra.mrb[0].mxu0 %v377
        %v1278 = vpop.f32.mrb[0].mxu0
        %v1279 = vadd.f32 0.0, %v1278
        %v1280 = vpop.f32.mrb[0].mxu0
        %v1281 = vpop.f32.mrb[0].mxu0
        %v1282 = vadd.f32 0.0, %v1281
        %v1283 = vpop.f32.mrb[0].mxu0
        %1284 = vmatprep.mubr.bf16.mxu0 0
        %1285 = vmatmul.mubr.bf16.gmra.mrb[0].mxu0 %v378
        %v1286 = vpop.f32.mrb[0].mxu0
        %v1287 = vadd.f32 0.0, %v1286
        %v1288 = vpop.f32.mrb[0].mxu0
        %v1289 = vpop.f32.mrb[0].mxu0
        %v1290 = vadd.f32 0.0, %v1289
        %v1291 = vpop.f32.mrb[0].mxu0
        %1292 = vmatprep.mubr.bf16.mxu0 0
        %1293 = vmatmul.mubr.bf16.gmra.mrb[0].mxu0 %v379
        %v1294 = vpop.f32.mrb[0].mxu0
        %v1295 = vadd.f32 0.0, %v1294
        %v1296 = vpop.f32.mrb[0].mxu0
        %v1297 = vpop.f32.mrb[0].mxu0
        %v1298 = vadd.f32 0.0, %v1297
        %v1299 = vpop.f32.mrb[0].mxu0
        %1300 = vmatprep.mubr.bf16.mxu0 0
        %1301 = vmatmul.mubr.bf16.gmra.mrb[0].mxu0 %v380
        %v1302 = vpop.f32.mrb[0].mxu0
        %v1303 = vadd.f32 0.0, %v1302
        %v1304 = vpop.f32.mrb[0].mxu0
        %v1305 = vpop.f32.mrb[0].mxu0
        %v1306 = vadd.f32 0.0, %v1305
        %v1307 = vpop.f32.mrb[0].mxu0
        %1308 = vmatprep.mubr.bf16.mxu0 0
        %1309 = vmatmul.mubr.bf16.gmra.mrb[0].mxu0 %v381
        %v1310 = vpop.f32.mrb[0].mxu0
        %v1311 = vadd.f32 0.0, %v1310
        %v1312 = vpop.f32.mrb[0].mxu0
        %v1313 = vpop.f32.mrb[0].mxu0
        %v1314 = vadd.f32 0.0, %v1313
        %v1315 = vpop.f32.mrb[0].mxu0
        %1316 = vmatprep.mubr.bf16.mxu0 0
        %1317 = vmatmul.mubr.bf16.gmra.mrb[0].mxu0 %v382
        %v1318 = vpop.f32.mrb[0].mxu0
        %v1319 = vadd.f32 0.0, %v1318
        %v1320 = vpop.f32.mrb[0].mxu0
        %v1321 = vpop.f32.mrb[0].mxu0
        %v1322 = vadd.f32 0.0, %v1321
        %v1323 = vpop.f32.mrb[0].mxu0
        %1324 = vmatprep.mubr.bf16.mxu0 0
        %1325 = vmatmul.mubr.bf16.gmra.mrb[0].mxu0 %v383
        %v1326 = vpop.f32.mrb[0].mxu0
        %v1327 = vadd.f32 0.0, %v1326
        %v1328 = vpop.f32.mrb[0].mxu0
        %v1329 = vpop.f32.mrb[0].mxu0
        %v1330 = vadd.f32 0.0, %v1329
        %v1331 = vpop.f32.mrb[0].mxu0
        %1332 = vmatprep.mubr.bf16.mxu0 0
        %1333 = vmatmul.mubr.bf16.gmra.mrb[0].mxu0 %v384
        %v1334 = vpop.f32.mrb[0].mxu0
        %v1335 = vadd.f32 0.0, %v1334
        %v1336 = vpop.f32.mrb[0].mxu0
        %v1337 = vpop.f32.mrb[0].mxu0
        %v1338 = vadd.f32 0.0, %v1337
        %v1339 = vpop.f32.mrb[0].mxu0
        %1340 = vmatprep.mubr.bf16.mxu0 0
        %1341 = vmatmul.mubr.bf16.gmra.mrb[0].mxu0 %v385
        %v1342 = vpop.f32.mrb[0].mxu0
        %v1343 = vadd.f32 0.0, %v1342
        %v1344 = vpop.f32.mrb[0].mxu0
        %v1345 = vpop.f32.mrb[0].mxu0
        %v1346 = vadd.f32 0.0, %v1345
        %v1347 = vpop.f32.mrb[0].mxu0
        %1348 = vmatprep.mubr.bf16.mxu0 0
        %1349 = vmatmul.mubr.bf16.gmra.mrb[0].mxu0 %v386
        %v1350 = vpop.f32.mrb[0].mxu0
        %v1351 = vadd.f32 0.0, %v1350
        %v1352 = vpop.f32.mrb[0].mxu0
        %v1353 = vpop.f32.mrb[0].mxu0
        %v1354 = vadd.f32 0.0, %v1353
        %v1355 = vpop.f32.mrb[0].mxu0
        %1356 = vmatprep.mubr.bf16.mxu0 0
        %1357 = vmatmul.mubr.bf16.gmra.mrb[0].mxu0 %v387
        %v1358 = vpop.f32.mrb[0].mxu0
        %v1359 = vadd.f32 0.0, %v1358
        %v1360 = vpop.f32.mrb[0].mxu0
        %v1361 = vpop.f32.mrb[0].mxu0
        %v1362 = vadd.f32 0.0, %v1361
        %v1363 = vpop.f32.mrb[0].mxu0
        %1364 = vmatprep.mubr.bf16.mxu0 0
        %1365 = vmatmul.mubr.bf16.gmra.mrb[0].mxu0 %v388
        %v1366 = vpop.f32.mrb[0].mxu0
        %v1367 = vadd.f32 0.0, %v1366
        %v1368 = vpop.f32.mrb[0].mxu0
        %v1369 = vpop.f32.mrb[0].mxu0
        %v1370 = vadd.f32 0.0, %v1369
        %v1371 = vpop.f32.mrb[0].mxu0
        %1372 = vmatprep.mubr.bf16.mxu0 0
        %1373 = vmatmul.mubr.bf16.gmra.mrb[0].mxu0 %v389
        %v1374 = vpop.f32.mrb[0].mxu0
        %v1375 = vadd.f32 0.0, %v1374
        %v1376 = vpop.f32.mrb[0].mxu0
        %v1377 = vpop.f32.mrb[0].mxu0
        %v1378 = vadd.f32 0.0, %v1377
        %v1379 = vpop.f32.mrb[0].mxu0
        %1380 = vmatprep.mubr.bf16.mxu0 0
        %1381 = vmatmul.mubr.bf16.gmra.mrb[0].mxu0 %v390
        %v1382 = vpop.f32.mrb[0].mxu0
        %v1383 = vadd.f32 0.0, %v1382
        %v1384 = vpop.f32.mrb[0].mxu0
        %v1385 = vpop.f32.mrb[0].mxu0
        %v1386 = vadd.f32 0.0, %v1385
        %v1387 = vpop.f32.mrb[0].mxu0
        %1388 = vmatprep.mubr.bf16.mxu0 0
        %1389 = vmatmul.mubr.bf16.gmra.mrb[0].mxu0 %v391
        %v1390 = vpop.f32.mrb[0].mxu0
        %v1391 = vadd.f32 0.0, %v1390
        %v1392 = vpop.f32.mrb[0].mxu0
        %v1393 = vpop.f32.mrb[0].mxu0
        %v1394 = vadd.f32 0.0, %v1393
        %v1395 = vpop.f32.mrb[0].mxu0
        %1396 = vmatprep.mubr.bf16.mxu0 0
        %1397 = vmatmul.mubr.bf16.gmra.mrb[0].mxu0 %v392
        %v1398 = vpop.f32.mrb[0].mxu0
        %v1399 = vadd.f32 0.0, %v1398
        %v1400 = vpop.f32.mrb[0].mxu0
        %v1401 = vpop.f32.mrb[0].mxu0
        %v1402 = vadd.f32 0.0, %v1401
        %v1403 = vpop.f32.mrb[0].mxu0
        %1404 = vmatprep.mubr.bf16.mxu0 0
        %1405 = vmatmul.mubr.bf16.gmra.mrb[0].mxu0 %v393
        %v1406 = vpop.f32.mrb[0].mxu0
        %v1407 = vadd.f32 0.0, %v1406
        %v1408 = vpop.f32.mrb[0].mxu0
        %v1409 = vpop.f32.mrb[0].mxu0
        %v1410 = vadd.f32 0.0, %v1409
        %v1411 = vpop.f32.mrb[0].mxu0
        %1412 = vmatprep.mubr.bf16.mxu0 0
        %1413 = vmatmul.mubr.bf16.gmra.mrb[0].mxu0 %v394
        %v1414 = vpop.f32.mrb[0].mxu0
        %v1415 = vadd.f32 0.0, %v1414
        %v1416 = vpop.f32.mrb[0].mxu0
        %v1417 = vpop.f32.mrb[0].mxu0
        %v1418 = vadd.f32 0.0, %v1417
        %v1419 = vpop.f32.mrb[0].mxu0
        %1420 = vmatprep.mubr.bf16.mxu0 0
        %1421 = vmatmul.mubr.bf16.gmra.mrb[0].mxu0 %v395
        %v1422 = vpop.f32.mrb[0].mxu0
        %v1423 = vadd.f32 0.0, %v1422
        %v1424 = vpop.f32.mrb[0].mxu0
        %v1425 = vpop.f32.mrb[0].mxu0
        %v1426 = vadd.f32 0.0, %v1425
        %v1427 = vpop.f32.mrb[0].mxu0
        %1428 = vmatprep.mubr.bf16.mxu0 0
        %1429 = vmatmul.mubr.bf16.gmra.mrb[0].mxu0 %v396
        %v1430 = vpop.f32.mrb[0].mxu0
        %v1431 = vadd.f32 0.0, %v1430
        %v1432 = vpop.f32.mrb[0].mxu0
        %v1433 = vpop.f32.mrb[0].mxu0
        %v1434 = vadd.f32 0.0, %v1433
        %v1435 = vpop.f32.mrb[0].mxu0
        %1436 = vmatprep.mubr.bf16.mxu0 0
        %1437 = vmatmul.mubr.bf16.gmra.mrb[0].mxu0 %v397
        %v1438 = vpop.f32.mrb[0].mxu0
        %v1439 = vadd.f32 0.0, %v1438
        %v1440 = vpop.f32.mrb[0].mxu0
        %v1441 = vpop.f32.mrb[0].mxu0
        %v1442 = vadd.f32 0.0, %v1441
        %v1443 = vpop.f32.mrb[0].mxu0
        %1444 = vmatprep.mubr.bf16.mxu0 0
        %1445 = vmatmul.mubr.bf16.gmra.mrb[0].mxu0 %v398
        %v1446 = vpop.f32.mrb[0].mxu0
        %v1447 = vadd.f32 0.0, %v1446
        %v1448 = vpop.f32.mrb[0].mxu0
        %v1449 = vpop.f32.mrb[0].mxu0
        %v1450 = vadd.f32 0.0, %v1449
        %v1451 = vpop.f32.mrb[0].mxu0
        %1452 = vmatprep.mubr.bf16.mxu0 0
        %1453 = vmatmul.mubr.bf16.gmra.mrb[0].mxu0 %v399
        %v1454 = vpop.f32.mrb[0].mxu0
        %v1455 = vadd.f32 0.0, %v1454
        %v1456 = vpop.f32.mrb[0].mxu0
        %v1457 = vpop.f32.mrb[0].mxu0
        %v1458 = vadd.f32 0.0, %v1457
        %v1459 = vpop.f32.mrb[0].mxu0
        %1460 = vmatprep.mubr.bf16.mxu0 0
        %1461 = vmatmul.mubr.bf16.gmra.mrb[0].mxu0 %v400
        %v1462 = vpop.f32.mrb[0].mxu0
        %v1463 = vadd.f32 0.0, %v1462
        %v1464 = vpop.f32.mrb[0].mxu0
        %v1465 = vpop.f32.mrb[0].mxu0
        %v1466 = vadd.f32 0.0, %v1465
        %v1467 = vpop.f32.mrb[0].mxu0
        %1468 = vmatprep.mubr.bf16.mxu0 0
        %1469 = vmatmul.mubr.bf16.gmra.mrb[0].mxu0 %v401
        %v1470 = vpop.f32.mrb[0].mxu0
        %v1471 = vadd.f32 0.0, %v1470
        %v1472 = vpop.f32.mrb[0].mxu0
        %v1473 = vpop.f32.mrb[0].mxu0
        %v1474 = vadd.f32 0.0, %v1473
        %v1475 = vpop.f32.mrb[0].mxu0
        %1476 = vmatprep.mubr.bf16.mxu0 0
        %1477 = vmatmul.mubr.bf16.gmra.mrb[0].mxu0 %v402
        %v1478 = vpop.f32.mrb[0].mxu0
        %v1479 = vadd.f32 0.0, %v1478
        %v1480 = vpop.f32.mrb[0].mxu0
        %v1481 = vpop.f32.mrb[0].mxu0
        %v1482 = vadd.f32 0.0, %v1481
        %v1483 = vpop.f32.mrb[0].mxu0
        %1484 = vmatprep.mubr.bf16.mxu0 0
        %1485 = vmatmul.mubr.bf16.gmra.mrb[0].mxu0 %v403
        %v1486 = vpop.f32.mrb[0].mxu0
        %v1487 = vadd.f32 0.0, %v1486
        %v1488 = vpop.f32.mrb[0].mxu0
        %v1489 = vpop.f32.mrb[0].mxu0
        %v1490 = vadd.f32 0.0, %v1489
        %v1491 = vpop.f32.mrb[0].mxu0
        %1492 = vmatprep.mubr.bf16.mxu0 0
        %1493 = vmatmul.mubr.bf16.gmra.mrb[0].mxu0 %v404
        %v1494 = vpop.f32.mrb[0].mxu0
        %v1495 = vadd.f32 0.0, %v1494
        %v1496 = vpop.f32.mrb[0].mxu0
        %v1497 = vpop.f32.mrb[0].mxu0
        %v1498 = vadd.f32 0.0, %v1497
        %v1499 = vpop.f32.mrb[0].mxu0
        %1500 = vmatprep.mubr.bf16.mxu0 0
        %1501 = vmatmul.mubr.bf16.gmra.mrb[0].mxu0 %v405
        %v1502 = vpop.f32.mrb[0].mxu0
        %v1503 = vadd.f32 0.0, %v1502
        %v1504 = vpop.f32.mrb[0].mxu0
        %v1505 = vpop.f32.mrb[0].mxu0
        %v1506 = vadd.f32 0.0, %v1505
        %v1507 = vpop.f32.mrb[0].mxu0
        %1508 = vmatprep.mubr.bf16.mxu0 0
        %1509 = vmatmul.mubr.bf16.gmra.mrb[0].mxu0 %v406
        %v1510 = vpop.f32.mrb[0].mxu0
        %v1511 = vadd.f32 0.0, %v1510
        %v1512 = vpop.f32.mrb[0].mxu0
        %v1513 = vpop.f32.mrb[0].mxu0
        %v1514 = vadd.f32 0.0, %v1513
        %v1515 = vpop.f32.mrb[0].mxu0
        %1516 = vmatprep.mubr.bf16.mxu0 0
        %1517 = vmatmul.mubr.bf16.gmra.mrb[0].mxu0 %v407
        %v1518 = vpop.f32.mrb[0].mxu0
        %v1519 = vadd.f32 0.0, %v1518
        %v1520 = vpop.f32.mrb[0].mxu0
        %v1521 = vpop.f32.mrb[0].mxu0
        %v1522 = vadd.f32 0.0, %v1521
        %v1523 = vpop.f32.mrb[0].mxu0
        %1524 = vmatprep.mubr.bf16.mxu0 0
        %1525 = vmatmul.mubr.bf16.gmra.mrb[0].mxu0 %v408
        %v1526 = vpop.f32.mrb[0].mxu0
        %v1527 = vadd.f32 0.0, %v1526
        %v1528 = vpop.f32.mrb[0].mxu0
        %v1529 = vpop.f32.mrb[0].mxu0
        %v1530 = vadd.f32 0.0, %v1529
        %v1531 = vpop.f32.mrb[0].mxu0
        %1532 = vmatprep.mubr.bf16.mxu0 0
        %1533 = vmatmul.mubr.bf16.gmra.mrb[0].mxu0 %v409
        %v1534 = vpop.f32.mrb[0].mxu0
        %v1535 = vadd.f32 0.0, %v1534
        %v1536 = vpop.f32.mrb[0].mxu0
        %v1537 = vpop.f32.mrb[0].mxu0
        %v1538 = vadd.f32 0.0, %v1537
        %v1539 = vpop.f32.mrb[0].mxu0
        %1540 = vmatprep.mubr.bf16.mxu0 0
        %1541 = vmatmul.mubr.bf16.gmra.mrb[0].mxu0 %v410
        %v1542 = vpop.f32.mrb[0].mxu0
        %v1543 = vadd.f32 0.0, %v1542
        %v1544 = vpop.f32.mrb[0].mxu0
        %v1545 = vpop.f32.mrb[0].mxu0
        %v1546 = vadd.f32 0.0, %v1545
        %v1547 = vpop.f32.mrb[0].mxu0
        %1548 = vmatprep.mubr.bf16.mxu0 0
        %1549 = vmatmul.mubr.bf16.gmra.mrb[0].mxu0 %v411
        %v1550 = vpop.f32.mrb[0].mxu0
        %v1551 = vadd.f32 0.0, %v1550
        %v1552 = vpop.f32.mrb[0].mxu0
        %v1553 = vpop.f32.mrb[0].mxu0
        %v1554 = vadd.f32 0.0, %v1553
        %v1555 = vpop.f32.mrb[0].mxu0
        %1556 = vmatprep.mubr.bf16.mxu0 0
        %1557 = vmatmul.mubr.bf16.gmra.mrb[0].mxu0 %v412
        %v1558 = vpop.f32.mrb[0].mxu0
        %v1559 = vadd.f32 0.0, %v1558
        %v1560 = vpop.f32.mrb[0].mxu0
        %v1561 = vpop.f32.mrb[0].mxu0
        %v1562 = vadd.f32 0.0, %v1561
        %v1563 = vpop.f32.mrb[0].mxu0
        %1564 = vmatprep.mubr.bf16.mxu0 0
        %1565 = vmatmul.mubr.bf16.gmra.mrb[0].mxu0 %v413
        %v1566 = vpop.f32.mrb[0].mxu0
        %v1567 = vadd.f32 0.0, %v1566
        %v1568 = vpop.f32.mrb[0].mxu0
        %v1569 = vpop.f32.mrb[0].mxu0
        %v1570 = vadd.f32 0.0, %v1569
        %v1571 = vpop.f32.mrb[0].mxu0
        %1572 = vmatprep.mubr.bf16.mxu0 0
        %1573 = vmatmul.mubr.bf16.gmra.mrb[0].mxu0 %v414
        %v1574 = vpop.f32.mrb[0].mxu0
        %v1575 = vadd.f32 0.0, %v1574
        %v1576 = vpop.f32.mrb[0].mxu0
        %v1577 = vpop.f32.mrb[0].mxu0
        %v1578 = vadd.f32 0.0, %v1577
        %v1579 = vpop.f32.mrb[0].mxu0
        %1580 = vmatprep.mubr.bf16.mxu0 0
        %1581 = vmatmul.mubr.bf16.gmra.mrb[0].mxu0 %v415
        %v1582 = vpop.f32.mrb[0].mxu0
        %v1583 = vadd.f32 0.0, %v1582
        %v1584 = vpop.f32.mrb[0].mxu0
        %v1585 = vpop.f32.mrb[0].mxu0
        %v1586 = vadd.f32 0.0, %v1585
        %v1587 = vpop.f32.mrb[0].mxu0
        %1588 = vmatprep.mubr.bf16.mxu0 0
        %1589 = vmatmul.mubr.bf16.gmra.mrb[0].mxu0 %v416
        %v1590 = vpop.f32.mrb[0].mxu0
        %v1591 = vadd.f32 0.0, %v1590
        %v1592 = vpop.f32.mrb[0].mxu0
        %v1593 = vpop.f32.mrb[0].mxu0
        %v1594 = vadd.f32 0.0, %v1593
        %v1595 = vpop.f32.mrb[0].mxu0
        %1596 = vmatprep.mubr.bf16.mxu0 0
        %1597 = vmatmul.mubr.bf16.gmra.mrb[0].mxu0 %v417
        %v1598 = vpop.f32.mrb[0].mxu0
        %v1599 = vadd.f32 0.0, %v1598
        %v1600 = vpop.f32.mrb[0].mxu0
        %v1601 = vpop.f32.mrb[0].mxu0
        %v1602 = vadd.f32 0.0, %v1601
        %v1603 = vpop.f32.mrb[0].mxu0
        %1604 = vmatprep.mubr.bf16.mxu0 0
        %1605 = vmatmul.mubr.bf16.gmra.mrb[0].mxu0 %v418
        %v1606 = vpop.f32.mrb[0].mxu0
        %v1607 = vadd.f32 0.0, %v1606
        %v1608 = vpop.f32.mrb[0].mxu0
        %v1609 = vpop.f32.mrb[0].mxu0
        %v1610 = vadd.f32 0.0, %v1609
        %v1611 = vpop.f32.mrb[0].mxu0
        %1612 = vmatprep.mubr.bf16.mxu0 0
        %1613 = vmatmul.mubr.bf16.gmra.mrb[0].mxu0 %v419
        %v1614 = vpop.f32.mrb[0].mxu0
        %v1615 = vadd.f32 0.0, %v1614
        %v1616 = vpop.f32.mrb[0].mxu0
        %v1617 = vpop.f32.mrb[0].mxu0
        %v1618 = vadd.f32 0.0, %v1617
        %v1619 = vpop.f32.mrb[0].mxu0
        %1620 = vmatprep.mubr.bf16.mxu0 0
        %1621 = vmatmul.mubr.bf16.gmra.mrb[0].mxu0 %v420
        %v1622 = vpop.f32.mrb[0].mxu0
        %v1623 = vadd.f32 0.0, %v1622
        %v1624 = vpop.f32.mrb[0].mxu0
        %v1625 = vpop.f32.mrb[0].mxu0
        %v1626 = vadd.f32 0.0, %v1625
        %v1627 = vpop.f32.mrb[0].mxu0
        %1628 = vmatprep.mubr.bf16.mxu0 0
        %1629 = vmatmul.mubr.bf16.gmra.mrb[0].mxu0 %v421
        %v1630 = vpop.f32.mrb[0].mxu0
        %v1631 = vadd.f32 0.0, %v1630
        %v1632 = vpop.f32.mrb[0].mxu0
        %v1633 = vpop.f32.mrb[0].mxu0
        %v1634 = vadd.f32 0.0, %v1633
        %v1635 = vpop.f32.mrb[0].mxu0
        %1636 = vmatprep.mubr.bf16.mxu0 0
        %1637 = vmatmul.mubr.bf16.gmra.mrb[0].mxu0 %v422
        %v1638 = vpop.f32.mrb[0].mxu0
        %v1639 = vadd.f32 0.0, %v1638
        %v1640 = vpop.f32.mrb[0].mxu0
        %v1641 = vpop.f32.mrb[0].mxu0
        %v1642 = vadd.f32 0.0, %v1641
        %v1643 = vpop.f32.mrb[0].mxu0
        %1644 = vmatprep.mubr.bf16.mxu0 0
        %1645 = vmatmul.mubr.bf16.gmra.mrb[0].mxu0 %v423
        %v1646 = vpop.f32.mrb[0].mxu0
        %v1647 = vadd.f32 0.0, %v1646
        %v1648 = vpop.f32.mrb[0].mxu0
        %v1649 = vpop.f32.mrb[0].mxu0
        %v1650 = vadd.f32 0.0, %v1649
        %v1651 = vpop.f32.mrb[0].mxu0
        %1652 = vmatprep.mubr.bf16.mxu0 0
        %1653 = vmatmul.mubr.bf16.gmra.mrb[0].mxu0 %v424
        %v1654 = vpop.f32.mrb[0].mxu0
        %v1655 = vadd.f32 0.0, %v1654
        %v1656 = vpop.f32.mrb[0].mxu0
        %v1657 = vpop.f32.mrb[0].mxu0
        %v1658 = vadd.f32 0.0, %v1657
        %v1659 = vpop.f32.mrb[0].mxu0
        %1660 = vmatprep.mubr.bf16.mxu0 0
        %1661 = vmatmul.mubr.bf16.gmra.mrb[0].mxu0 %v425
        %v1662 = vpop.f32.mrb[0].mxu0
        %v1663 = vadd.f32 0.0, %v1662
        %v1664 = vpop.f32.mrb[0].mxu0
        %v1665 = vpop.f32.mrb[0].mxu0
        %v1666 = vadd.f32 0.0, %v1665
        %v1667 = vpop.f32.mrb[0].mxu0
        %1668 = vmatprep.mubr.bf16.mxu0 0
        %1669 = vmatmul.mubr.bf16.gmra.mrb[0].mxu0 %v426
        %v1670 = vpop.f32.mrb[0].mxu0
        %v1671 = vadd.f32 0.0, %v1670
        %v1672 = vpop.f32.mrb[0].mxu0
        %v1673 = vpop.f32.mrb[0].mxu0
        %v1674 = vadd.f32 0.0, %v1673
        %v1675 = vpop.f32.mrb[0].mxu0
        %1676 = vmatprep.mubr.bf16.mxu0 0
        %1677 = vmatmul.mubr.bf16.gmra.mrb[0].mxu0 %v427
        %v1678 = vpop.f32.mrb[0].mxu0
        %v1679 = vadd.f32 0.0, %v1678
        %v1680 = vpop.f32.mrb[0].mxu0
        %v1681 = vpop.f32.mrb[0].mxu0
        %v1682 = vadd.f32 0.0, %v1681
        %v1683 = vpop.f32.mrb[0].mxu0
        %1684 = vmatprep.mubr.bf16.mxu0 0
        %1685 = vmatmul.mubr.bf16.gmra.mrb[0].mxu0 %v428
        %v1686 = vpop.f32.mrb[0].mxu0
        %v1687 = vadd.f32 0.0, %v1686
        %v1688 = vpop.f32.mrb[0].mxu0
        %v1689 = vpop.f32.mrb[0].mxu0
        %v1690 = vadd.f32 0.0, %v1689
        %v1691 = vpop.f32.mrb[0].mxu0
        %1692 = vmatprep.mubr.bf16.mxu0 0
        %1693 = vmatmul.mubr.bf16.gmra.mrb[0].mxu0 %v429
        %v1694 = vpop.f32.mrb[0].mxu0
        %v1695 = vadd.f32 0.0, %v1694
        %v1696 = vpop.f32.mrb[0].mxu0
        %v1697 = vpop.f32.mrb[0].mxu0
        %v1698 = vadd.f32 0.0, %v1697
        %v1699 = vpop.f32.mrb[0].mxu0
        %1700 = vmatprep.mubr.bf16.mxu0 0
        %1701 = vmatmul.mubr.bf16.gmra.mrb[0].mxu0 %v430
        %v1702 = vpop.f32.mrb[0].mxu0
        %v1703 = vadd.f32 0.0, %v1702
        %v1704 = vpop.f32.mrb[0].mxu0
        %v1705 = vpop.f32.mrb[0].mxu0
        %v1706 = vadd.f32 0.0, %v1705
        %v1707 = vpop.f32.mrb[0].mxu0
        %1708 = vmatprep.mubr.bf16.mxu0 0
        %1709 = vmatmul.mubr.bf16.gmra.mrb[0].mxu0 %v431
        %v1710 = vpop.f32.mrb[0].mxu0
        %v1711 = vadd.f32 0.0, %v1710
        %v1712 = vpop.f32.mrb[0].mxu0
        %v1713 = vpop.f32.mrb[0].mxu0
        %v1714 = vadd.f32 0.0, %v1713
        %v1715 = vpop.f32.mrb[0].mxu0
        %1716 = vmatprep.mubr.bf16.mxu0 0
        %1717 = vmatmul.mubr.bf16.gmra.mrb[0].mxu0 %v432
        %v1718 = vpop.f32.mrb[0].mxu0
        %v1719 = vadd.f32 0.0, %v1718
        %v1720 = vpop.f32.mrb[0].mxu0
        %v1721 = vpop.f32.mrb[0].mxu0
        %v1722 = vadd.f32 0.0, %v1721
        %v1723 = vpop.f32.mrb[0].mxu0
        %1724 = vdwg.mxu0
        %s1725 = scalar_lea.vmem [#allocation2], 128
        %v1726 = vld [vmem:[%s1725] sm:$0xff]
        %v1727 = vld [vmem:[%s1725 + $0x8] sm:$0xff]
        %v1728 = vld [vmem:[%s1725 + $0x10] sm:$0xff]
        %v1729 = vld [vmem:[%s1725 + $0x18] sm:$0xff]
        %v1730 = vld [vmem:[%s1725 + $0x20] sm:$0xff]
        %v1731 = vld [vmem:[%s1725 + $0x28] sm:$0xff]
        %v1732 = vld [vmem:[%s1725 + $0x30] sm:$0xff]
        %v1733 = vld [vmem:[%s1725 + $0x38] sm:$0xff]
        %v1734 = vld [vmem:[%s1725 + $0x40] sm:$0xff]
        %v1735 = vld [vmem:[%s1725 + $0x48] sm:$0xff]
        %v1736 = vld [vmem:[%s1725 + $0x50] sm:$0xff]
        %v1737 = vld [vmem:[%s1725 + $0x58] sm:$0xff]
        %v1738 = vld [vmem:[%s1725 + $0x60] sm:$0xff]
        %v1739 = vld [vmem:[%s1725 + $0x68] sm:$0xff]
        %v1740 = vld [vmem:[%s1725 + $0x70] sm:$0xff]
        %v1741 = vld [vmem:[%s1725 + $0x78] sm:$0xff]
        %v1742 = vld [vmem:[%s1725 + $0x80] sm:$0xff]
        %v1743 = vld [vmem:[%s1725 + $0x88] sm:$0xff]
        %v1744 = vld [vmem:[%s1725 + $0x90] sm:$0xff]
        %v1745 = vld [vmem:[%s1725 + $0x98] sm:$0xff]
        %v1746 = vld [vmem:[%s1725 + $0xa0] sm:$0xff]
        %v1747 = vld [vmem:[%s1725 + $0xa8] sm:$0xff]
        %v1748 = vld [vmem:[%s1725 + $0xb0] sm:$0xff]
        %v1749 = vld [vmem:[%s1725 + $0xb8] sm:$0xff]
        %v1750 = vld [vmem:[%s1725 + $0xc0] sm:$0xff]
        %v1751 = vld [vmem:[%s1725 + $0xc8] sm:$0xff]
        %v1752 = vld [vmem:[%s1725 + $0xd0] sm:$0xff]
        %v1753 = vld [vmem:[%s1725 + $0xd8] sm:$0xff]
        %v1754 = vld [vmem:[%s1725 + $0xe0] sm:$0xff]
        %v1755 = vld [vmem:[%s1725 + $0xe8] sm:$0xff]
        %v1756 = vld [vmem:[%s1725 + $0xf0] sm:$0xff]
        %v1757 = vld [vmem:[%s1725 + $0xf8] sm:$0xff]
        %v1758 = vld [vmem:[%s1725 + $0x100] sm:$0xff]
        %v1759 = vld [vmem:[%s1725 + $0x108] sm:$0xff]
        %v1760 = vld [vmem:[%s1725 + $0x110] sm:$0xff]
        %v1761 = vld [vmem:[%s1725 + $0x118] sm:$0xff]
        %v1762 = vld [vmem:[%s1725 + $0x120] sm:$0xff]
        %v1763 = vld [vmem:[%s1725 + $0x128] sm:$0xff]
        %v1764 = vld [vmem:[%s1725 + $0x130] sm:$0xff]
        %v1765 = vld [vmem:[%s1725 + $0x138] sm:$0xff]
        %v1766 = vld [vmem:[%s1725 + $0x140] sm:$0xff]
        %v1767 = vld [vmem:[%s1725 + $0x148] sm:$0xff]
        %v1768 = vld [vmem:[%s1725 + $0x150] sm:$0xff]
        %v1769 = vld [vmem:[%s1725 + $0x158] sm:$0xff]
        %v1770 = vld [vmem:[%s1725 + $0x160] sm:$0xff]
        %v1771 = vld [vmem:[%s1725 + $0x168] sm:$0xff]
        %v1772 = vld [vmem:[%s1725 + $0x170] sm:$0xff]
        %v1773 = vld [vmem:[%s1725 + $0x178] sm:$0xff]
        %v1774 = vld [vmem:[%s1725 + $0x180] sm:$0xff]
        %v1775 = vld [vmem:[%s1725 + $0x188] sm:$0xff]
        %v1776 = vld [vmem:[%s1725 + $0x190] sm:$0xff]
        %v1777 = vld [vmem:[%s1725 + $0x198] sm:$0xff]
        %v1778 = vld [vmem:[%s1725 + $0x1a0] sm:$0xff]
        %v1779 = vld [vmem:[%s1725 + $0x1a8] sm:$0xff]
        %v1780 = vld [vmem:[%s1725 + $0x1b0] sm:$0xff]
        %v1781 = vld [vmem:[%s1725 + $0x1b8] sm:$0xff]
        %v1782 = vld [vmem:[%s1725 + $0x1c0] sm:$0xff]
        %v1783 = vld [vmem:[%s1725 + $0x1c8] sm:$0xff]
        %v1784 = vld [vmem:[%s1725 + $0x1d0] sm:$0xff]
        %v1785 = vld [vmem:[%s1725 + $0x1d8] sm:$0xff]
        %v1786 = vld [vmem:[%s1725 + $0x1e0] sm:$0xff]
        %v1787 = vld [vmem:[%s1725 + $0x1e8] sm:$0xff]
        %v1788 = vld [vmem:[%s1725 + $0x1f0] sm:$0xff]
        %v1789 = vld [vmem:[%s1725 + $0x1f8] sm:$0xff]
        %v1790 = vld [vmem:[%s1725 + $0x200] sm:$0xff]
        %v1791 = vld [vmem:[%s1725 + $0x208] sm:$0xff]
        %v1792 = vld [vmem:[%s1725 + $0x210] sm:$0xff]
        %v1793 = vld [vmem:[%s1725 + $0x218] sm:$0xff]
        %v1794 = vld [vmem:[%s1725 + $0x220] sm:$0xff]
        %v1795 = vld [vmem:[%s1725 + $0x228] sm:$0xff]
        %v1796 = vld [vmem:[%s1725 + $0x230] sm:$0xff]
        %v1797 = vld [vmem:[%s1725 + $0x238] sm:$0xff]
        %v1798 = vld [vmem:[%s1725 + $0x240] sm:$0xff]
        %v1799 = vld [vmem:[%s1725 + $0x248] sm:$0xff]
        %v1800 = vld [vmem:[%s1725 + $0x250] sm:$0xff]
        %v1801 = vld [vmem:[%s1725 + $0x258] sm:$0xff]
        %v1802 = vld [vmem:[%s1725 + $0x260] sm:$0xff]
        %v1803 = vld [vmem:[%s1725 + $0x268] sm:$0xff]
        %v1804 = vld [vmem:[%s1725 + $0x270] sm:$0xff]
        %v1805 = vld [vmem:[%s1725 + $0x278] sm:$0xff]
        %v1806 = vld [vmem:[%s1725 + $0x280] sm:$0xff]
        %v1807 = vld [vmem:[%s1725 + $0x288] sm:$0xff]
        %v1808 = vld [vmem:[%s1725 + $0x290] sm:$0xff]
        %v1809 = vld [vmem:[%s1725 + $0x298] sm:$0xff]
        %v1810 = vld [vmem:[%s1725 + $0x2a0] sm:$0xff]
        %v1811 = vld [vmem:[%s1725 + $0x2a8] sm:$0xff]
        %v1812 = vld [vmem:[%s1725 + $0x2b0] sm:$0xff]
        %v1813 = vld [vmem:[%s1725 + $0x2b8] sm:$0xff]
        %v1814 = vld [vmem:[%s1725 + $0x2c0] sm:$0xff]
        %v1815 = vld [vmem:[%s1725 + $0x2c8] sm:$0xff]
        %v1816 = vld [vmem:[%s1725 + $0x2d0] sm:$0xff]
        %v1817 = vld [vmem:[%s1725 + $0x2d8] sm:$0xff]
        %v1818 = vld [vmem:[%s1725 + $0x2e0] sm:$0xff]
        %v1819 = vld [vmem:[%s1725 + $0x2e8] sm:$0xff]
        %v1820 = vld [vmem:[%s1725 + $0x2f0] sm:$0xff]
        %v1821 = vld [vmem:[%s1725 + $0x2f8] sm:$0xff]
        %v1822 = vld [vmem:[%s1725 + $0x300] sm:$0xff]
        %v1823 = vld [vmem:[%s1725 + $0x308] sm:$0xff]
        %v1824 = vld [vmem:[%s1725 + $0x310] sm:$0xff]
        %v1825 = vld [vmem:[%s1725 + $0x318] sm:$0xff]
        %v1826 = vld [vmem:[%s1725 + $0x320] sm:$0xff]
        %v1827 = vld [vmem:[%s1725 + $0x328] sm:$0xff]
        %v1828 = vld [vmem:[%s1725 + $0x330] sm:$0xff]
        %v1829 = vld [vmem:[%s1725 + $0x338] sm:$0xff]
        %v1830 = vld [vmem:[%s1725 + $0x340] sm:$0xff]
        %v1831 = vld [vmem:[%s1725 + $0x348] sm:$0xff]
        %v1832 = vld [vmem:[%s1725 + $0x350] sm:$0xff]
        %v1833 = vld [vmem:[%s1725 + $0x358] sm:$0xff]
        %v1834 = vld [vmem:[%s1725 + $0x360] sm:$0xff]
        %v1835 = vld [vmem:[%s1725 + $0x368] sm:$0xff]
        %v1836 = vld [vmem:[%s1725 + $0x370] sm:$0xff]
        %v1837 = vld [vmem:[%s1725 + $0x378] sm:$0xff]
        %v1838 = vadd.f32 %v1726, %v1279
        %v1839 = vadd.f32 %v1727, %v1282
        %v1840 = vadd.f32 %v1728, %v1287
        %v1841 = vadd.f32 %v1729, %v1290
        %v1842 = vadd.f32 %v1730, %v1295
        %v1843 = vadd.f32 %v1731, %v1298
        %v1844 = vadd.f32 %v1732, %v1303
        %v1845 = vadd.f32 %v1733, %v1306
        %v1846 = vadd.f32 %v1734, %v1311
        %v1847 = vadd.f32 %v1735, %v1314
        %v1848 = vadd.f32 %v1736, %v1319
        %v1849 = vadd.f32 %v1737, %v1322
        %v1850 = vadd.f32 %v1738, %v1327
        %v1851 = vadd.f32 %v1739, %v1330
        %v1852 = vadd.f32 %v1740, %v1335
        %v1853 = vadd.f32 %v1741, %v1338
        %v1854 = vadd.f32 %v1742, %v1343
        %v1855 = vadd.f32 %v1743, %v1346
        %v1856 = vadd.f32 %v1744, %v1351
        %v1857 = vadd.f32 %v1745, %v1354
        %v1858 = vadd.f32 %v1746, %v1359
        %v1859 = vadd.f32 %v1747, %v1362
        %v1860 = vadd.f32 %v1748, %v1367
        %v1861 = vadd.f32 %v1749, %v1370
        %v1862 = vadd.f32 %v1750, %v1375
        %v1863 = vadd.f32 %v1751, %v1378
        %v1864 = vadd.f32 %v1752, %v1383
        %v1865 = vadd.f32 %v1753, %v1386
        %v1866 = vadd.f32 %v1754, %v1391
        %v1867 = vadd.f32 %v1755, %v1394
        %v1868 = vadd.f32 %v1756, %v1399
        %v1869 = vadd.f32 %v1757, %v1402
        %v1870 = vadd.f32 %v1758, %v1407
        %v1871 = vadd.f32 %v1759, %v1410
        %v1872 = vadd.f32 %v1760, %v1415
        %v1873 = vadd.f32 %v1761, %v1418
        %v1874 = vadd.f32 %v1762, %v1423
        %v1875 = vadd.f32 %v1763, %v1426
        %v1876 = vadd.f32 %v1764, %v1431
        %v1877 = vadd.f32 %v1765, %v1434
        %v1878 = vadd.f32 %v1766, %v1439
        %v1879 = vadd.f32 %v1767, %v1442
        %v1880 = vadd.f32 %v1768, %v1447
        %v1881 = vadd.f32 %v1769, %v1450
        %v1882 = vadd.f32 %v1770, %v1455
        %v1883 = vadd.f32 %v1771, %v1458
        %v1884 = vadd.f32 %v1772, %v1463
        %v1885 = vadd.f32 %v1773, %v1466
        %v1886 = vadd.f32 %v1774, %v1471
        %v1887 = vadd.f32 %v1775, %v1474
        %v1888 = vadd.f32 %v1776, %v1479
        %v1889 = vadd.f32 %v1777, %v1482
        %v1890 = vadd.f32 %v1778, %v1487
        %v1891 = vadd.f32 %v1779, %v1490
        %v1892 = vadd.f32 %v1780, %v1495
        %v1893 = vadd.f32 %v1781, %v1498
        %v1894 = vadd.f32 %v1782, %v1503
        %v1895 = vadd.f32 %v1783, %v1506
        %v1896 = vadd.f32 %v1784, %v1511
        %v1897 = vadd.f32 %v1785, %v1514
        %v1898 = vadd.f32 %v1786, %v1519
        %v1899 = vadd.f32 %v1787, %v1522
        %v1900 = vadd.f32 %v1788, %v1527
        %v1901 = vadd.f32 %v1789, %v1530
        %v1902 = vadd.f32 %v1790, %v1535
        %v1903 = vadd.f32 %v1791, %v1538
        %v1904 = vadd.f32 %v1792, %v1543
        %v1905 = vadd.f32 %v1793, %v1546
        %v1906 = vadd.f32 %v1794, %v1551
        %v1907 = vadd.f32 %v1795, %v1554
        %v1908 = vadd.f32 %v1796, %v1559
        %v1909 = vadd.f32 %v1797, %v1562
        %v1910 = vadd.f32 %v1798, %v1567
        %v1911 = vadd.f32 %v1799, %v1570
        %v1912 = vadd.f32 %v1800, %v1575
        %v1913 = vadd.f32 %v1801, %v1578
        %v1914 = vadd.f32 %v1802, %v1583
        %v1915 = vadd.f32 %v1803, %v1586
        %v1916 = vadd.f32 %v1804, %v1591
        %v1917 = vadd.f32 %v1805, %v1594
        %v1918 = vadd.f32 %v1806, %v1599
        %v1919 = vadd.f32 %v1807, %v1602
        %v1920 = vadd.f32 %v1808, %v1607
        %v1921 = vadd.f32 %v1809, %v1610
        %v1922 = vadd.f32 %v1810, %v1615
        %v1923 = vadd.f32 %v1811, %v1618
        %v1924 = vadd.f32 %v1812, %v1623
        %v1925 = vadd.f32 %v1813, %v1626
        %v1926 = vadd.f32 %v1814, %v1631
        %v1927 = vadd.f32 %v1815, %v1634
        %v1928 = vadd.f32 %v1816, %v1639
        %v1929 = vadd.f32 %v1817, %v1642
        %v1930 = vadd.f32 %v1818, %v1647
        %v1931 = vadd.f32 %v1819, %v1650
        %v1932 = vadd.f32 %v1820, %v1655
        %v1933 = vadd.f32 %v1821, %v1658
        %v1934 = vadd.f32 %v1822, %v1663
        %v1935 = vadd.f32 %v1823, %v1666
        %v1936 = vadd.f32 %v1824, %v1671
        %v1937 = vadd.f32 %v1825, %v1674
        %v1938 = vadd.f32 %v1826, %v1679
        %v1939 = vadd.f32 %v1827, %v1682
        %v1940 = vadd.f32 %v1828, %v1687
        %v1941 = vadd.f32 %v1829, %v1690
        %v1942 = vadd.f32 %v1830, %v1695
        %v1943 = vadd.f32 %v1831, %v1698
        %v1944 = vadd.f32 %v1832, %v1703
        %v1945 = vadd.f32 %v1833, %v1706
        %v1946 = vadd.f32 %v1834, %v1711
        %v1947 = vadd.f32 %v1835, %v1714
        %v1948 = vadd.f32 %v1836, %v1719
        %v1949 = vadd.f32 %v1837, %v1722
        %1950 = vst.msk [vmem:[%s1725] sm:$0xff] %vm1051, %v1838
        %1951 = vst.msk [vmem:[%s1725 + $0x8] sm:$0xff] %vm1051, %v1839
        %1952 = vst.msk [vmem:[%s1725 + $0x10] sm:$0xff] %vm1051, %v1840
        %1953 = vst.msk [vmem:[%s1725 + $0x18] sm:$0xff] %vm1051, %v1841
        %1954 = vst.msk [vmem:[%s1725 + $0x20] sm:$0xff] %vm1051, %v1842
        %1955 = vst.msk [vmem:[%s1725 + $0x28] sm:$0xff] %vm1051, %v1843
        %1956 = vst.msk [vmem:[%s1725 + $0x30] sm:$0xff] %vm1051, %v1844
        %1957 = vst.msk [vmem:[%s1725 + $0x38] sm:$0xff] %vm1051, %v1845
        %1958 = vst.msk [vmem:[%s1725 + $0x40] sm:$0xff] %vm1051, %v1846
        %1959 = vst.msk [vmem:[%s1725 + $0x48] sm:$0xff] %vm1051, %v1847
        %1960 = vst.msk [vmem:[%s1725 + $0x50] sm:$0xff] %vm1051, %v1848
        %1961 = vst.msk [vmem:[%s1725 + $0x58] sm:$0xff] %vm1051, %v1849
        %1962 = vst.msk [vmem:[%s1725 + $0x60] sm:$0xff] %vm1051, %v1850
        %1963 = vst.msk [vmem:[%s1725 + $0x68] sm:$0xff] %vm1051, %v1851
        %1964 = vst.msk [vmem:[%s1725 + $0x70] sm:$0xff] %vm1051, %v1852
        %1965 = vst.msk [vmem:[%s1725 + $0x78] sm:$0xff] %vm1051, %v1853
        %1966 = vst.msk [vmem:[%s1725 + $0x80] sm:$0xff] %vm1051, %v1854
        %1967 = vst.msk [vmem:[%s1725 + $0x88] sm:$0xff] %vm1051, %v1855
        %1968 = vst.msk [vmem:[%s1725 + $0x90] sm:$0xff] %vm1051, %v1856
        %1969 = vst.msk [vmem:[%s1725 + $0x98] sm:$0xff] %vm1051, %v1857
        %1970 = vst.msk [vmem:[%s1725 + $0xa0] sm:$0xff] %vm1051, %v1858
        %1971 = vst.msk [vmem:[%s1725 + $0xa8] sm:$0xff] %vm1051, %v1859
        %1972 = vst.msk [vmem:[%s1725 + $0xb0] sm:$0xff] %vm1051, %v1860
        %1973 = vst.msk [vmem:[%s1725 + $0xb8] sm:$0xff] %vm1051, %v1861
        %1974 = vst.msk [vmem:[%s1725 + $0xc0] sm:$0xff] %vm1051, %v1862
        %1975 = vst.msk [vmem:[%s1725 + $0xc8] sm:$0xff] %vm1051, %v1863
        %1976 = vst.msk [vmem:[%s1725 + $0xd0] sm:$0xff] %vm1051, %v1864
        %1977 = vst.msk [vmem:[%s1725 + $0xd8] sm:$0xff] %vm1051, %v1865
        %1978 = vst.msk [vmem:[%s1725 + $0xe0] sm:$0xff] %vm1051, %v1866
        %1979 = vst.msk [vmem:[%s1725 + $0xe8] sm:$0xff] %vm1051, %v1867
        %1980 = vst.msk [vmem:[%s1725 + $0xf0] sm:$0xff] %vm1051, %v1868
        %1981 = vst.msk [vmem:[%s1725 + $0xf8] sm:$0xff] %vm1051, %v1869
        %1982 = vst.msk [vmem:[%s1725 + $0x100] sm:$0xff] %vm1051, %v1870
        %1983 = vst.msk [vmem:[%s1725 + $0x108] sm:$0xff] %vm1051, %v1871
        %1984 = vst.msk [vmem:[%s1725 + $0x110] sm:$0xff] %vm1051, %v1872
        %1985 = vst.msk [vmem:[%s1725 + $0x118] sm:$0xff] %vm1051, %v1873
        %1986 = vst.msk [vmem:[%s1725 + $0x120] sm:$0xff] %vm1051, %v1874
        %1987 = vst.msk [vmem:[%s1725 + $0x128] sm:$0xff] %vm1051, %v1875
        %1988 = vst.msk [vmem:[%s1725 + $0x130] sm:$0xff] %vm1051, %v1876
        %1989 = vst.msk [vmem:[%s1725 + $0x138] sm:$0xff] %vm1051, %v1877
        %1990 = vst.msk [vmem:[%s1725 + $0x140] sm:$0xff] %vm1051, %v1878
        %1991 = vst.msk [vmem:[%s1725 + $0x148] sm:$0xff] %vm1051, %v1879
        %1992 = vst.msk [vmem:[%s1725 + $0x150] sm:$0xff] %vm1051, %v1880
        %1993 = vst.msk [vmem:[%s1725 + $0x158] sm:$0xff] %vm1051, %v1881
        %1994 = vst.msk [vmem:[%s1725 + $0x160] sm:$0xff] %vm1051, %v1882
        %1995 = vst.msk [vmem:[%s1725 + $0x168] sm:$0xff] %vm1051, %v1883
        %1996 = vst.msk [vmem:[%s1725 + $0x170] sm:$0xff] %vm1051, %v1884
        %1997 = vst.msk [vmem:[%s1725 + $0x178] sm:$0xff] %vm1051, %v1885
        %1998 = vst.msk [vmem:[%s1725 + $0x180] sm:$0xff] %vm1051, %v1886
        %1999 = vst.msk [vmem:[%s1725 + $0x188] sm:$0xff] %vm1051, %v1887
        %2000 = vst.msk [vmem:[%s1725 + $0x190] sm:$0xff] %vm1051, %v1888
        %2001 = vst.msk [vmem:[%s1725 + $0x198] sm:$0xff] %vm1051, %v1889
        %2002 = vst.msk [vmem:[%s1725 + $0x1a0] sm:$0xff] %vm1051, %v1890
        %2003 = vst.msk [vmem:[%s1725 + $0x1a8] sm:$0xff] %vm1051, %v1891
        %2004 = vst.msk [vmem:[%s1725 + $0x1b0] sm:$0xff] %vm1051, %v1892
        %2005 = vst.msk [vmem:[%s1725 + $0x1b8] sm:$0xff] %vm1051, %v1893
        %2006 = vst.msk [vmem:[%s1725 + $0x1c0] sm:$0xff] %vm1051, %v1894
        %2007 = vst.msk [vmem:[%s1725 + $0x1c8] sm:$0xff] %vm1051, %v1895
        %2008 = vst.msk [vmem:[%s1725 + $0x1d0] sm:$0xff] %vm1051, %v1896
        %2009 = vst.msk [vmem:[%s1725 + $0x1d8] sm:$0xff] %vm1051, %v1897
        %2010 = vst.msk [vmem:[%s1725 + $0x1e0] sm:$0xff] %vm1051, %v1898
        %2011 = vst.msk [vmem:[%s1725 + $0x1e8] sm:$0xff] %vm1051, %v1899
        %2012 = vst.msk [vmem:[%s1725 + $0x1f0] sm:$0xff] %vm1051, %v1900
        %2013 = vst.msk [vmem:[%s1725 + $0x1f8] sm:$0xff] %vm1051, %v1901
        %2014 = vst.msk [vmem:[%s1725 + $0x200] sm:$0xff] %vm1051, %v1902
        %2015 = vst.msk [vmem:[%s1725 + $0x208] sm:$0xff] %vm1051, %v1903
        %2016 = vst.msk [vmem:[%s1725 + $0x210] sm:$0xff] %vm1051, %v1904
        %2017 = vst.msk [vmem:[%s1725 + $0x218] sm:$0xff] %vm1051, %v1905
        %2018 = vst.msk [vmem:[%s1725 + $0x220] sm:$0xff] %vm1051, %v1906
        %2019 = vst.msk [vmem:[%s1725 + $0x228] sm:$0xff] %vm1051, %v1907
        %2020 = vst.msk [vmem:[%s1725 + $0x230] sm:$0xff] %vm1051, %v1908
        %2021 = vst.msk [vmem:[%s1725 + $0x238] sm:$0xff] %vm1051, %v1909
        %2022 = vst.msk [vmem:[%s1725 + $0x240] sm:$0xff] %vm1051, %v1910
        %2023 = vst.msk [vmem:[%s1725 + $0x248] sm:$0xff] %vm1051, %v1911
        %2024 = vst.msk [vmem:[%s1725 + $0x250] sm:$0xff] %vm1051, %v1912
        %2025 = vst.msk [vmem:[%s1725 + $0x258] sm:$0xff] %vm1051, %v1913
        %2026 = vst.msk [vmem:[%s1725 + $0x260] sm:$0xff] %vm1051, %v1914
        %2027 = vst.msk [vmem:[%s1725 + $0x268] sm:$0xff] %vm1051, %v1915
        %2028 = vst.msk [vmem:[%s1725 + $0x270] sm:$0xff] %vm1051, %v1916
        %2029 = vst.msk [vmem:[%s1725 + $0x278] sm:$0xff] %vm1051, %v1917
        %2030 = vst.msk [vmem:[%s1725 + $0x280] sm:$0xff] %vm1051, %v1918
        %2031 = vst.msk [vmem:[%s1725 + $0x288] sm:$0xff] %vm1051, %v1919
        %2032 = vst.msk [vmem:[%s1725 + $0x290] sm:$0xff] %vm1051, %v1920
        %2033 = vst.msk [vmem:[%s1725 + $0x298] sm:$0xff] %vm1051, %v1921
        %2034 = vst.msk [vmem:[%s1725 + $0x2a0] sm:$0xff] %vm1051, %v1922
        %2035 = vst.msk [vmem:[%s1725 + $0x2a8] sm:$0xff] %vm1051, %v1923
        %2036 = vst.msk [vmem:[%s1725 + $0x2b0] sm:$0xff] %vm1051, %v1924
        %2037 = vst.msk [vmem:[%s1725 + $0x2b8] sm:$0xff] %vm1051, %v1925
        %2038 = vst.msk [vmem:[%s1725 + $0x2c0] sm:$0xff] %vm1051, %v1926
        %2039 = vst.msk [vmem:[%s1725 + $0x2c8] sm:$0xff] %vm1051, %v1927
        %2040 = vst.msk [vmem:[%s1725 + $0x2d0] sm:$0xff] %vm1051, %v1928
        %2041 = vst.msk [vmem:[%s1725 + $0x2d8] sm:$0xff] %vm1051, %v1929
        %2042 = vst.msk [vmem:[%s1725 + $0x2e0] sm:$0xff] %vm1051, %v1930
        %2043 = vst.msk [vmem:[%s1725 + $0x2e8] sm:$0xff] %vm1051, %v1931
        %2044 = vst.msk [vmem:[%s1725 + $0x2f0] sm:$0xff] %vm1051, %v1932
        %2045 = vst.msk [vmem:[%s1725 + $0x2f8] sm:$0xff] %vm1051, %v1933
        %2046 = vst.msk [vmem:[%s1725 + $0x300] sm:$0xff] %vm1051, %v1934
        %2047 = vst.msk [vmem:[%s1725 + $0x308] sm:$0xff] %vm1051, %v1935
        %2048 = vst.msk [vmem:[%s1725 + $0x310] sm:$0xff] %vm1051, %v1936
        %2049 = vst.msk [vmem:[%s1725 + $0x318] sm:$0xff] %vm1051, %v1937
        %2050 = vst.msk [vmem:[%s1725 + $0x320] sm:$0xff] %vm1051, %v1938
        %2051 = vst.msk [vmem:[%s1725 + $0x328] sm:$0xff] %vm1051, %v1939
        %2052 = vst.msk [vmem:[%s1725 + $0x330] sm:$0xff] %vm1051, %v1940
        %2053 = vst.msk [vmem:[%s1725 + $0x338] sm:$0xff] %vm1051, %v1941
        %2054 = vst.msk [vmem:[%s1725 + $0x340] sm:$0xff] %vm1051, %v1942
        %2055 = vst.msk [vmem:[%s1725 + $0x348] sm:$0xff] %vm1051, %v1943
        %2056 = vst.msk [vmem:[%s1725 + $0x350] sm:$0xff] %vm1051, %v1944
        %2057 = vst.msk [vmem:[%s1725 + $0x358] sm:$0xff] %vm1051, %v1945
        %2058 = vst.msk [vmem:[%s1725 + $0x360] sm:$0xff] %vm1051, %v1946
        %2059 = vst.msk [vmem:[%s1725 + $0x368] sm:$0xff] %vm1051, %v1947
        %2060 = vst.msk [vmem:[%s1725 + $0x370] sm:$0xff] %vm1051, %v1948
        %2061 = vst.msk [vmem:[%s1725 + $0x378] sm:$0xff] %vm1051, %v1949
        %s2062 = scalar_lea.vmem %s1, 128
        %v2063 = vld [vmem:[%s2062] sm:$0xf]
        %v2064 = vld [vmem:[%s2062 + $0x4] sm:$0xf]
        %v2065 = vld [vmem:[%s2062 + $0x8] sm:$0xf]
        %v2066 = vld [vmem:[%s2062 + $0xc] sm:$0xf]
        %v2067 = vld [vmem:[%s2062 + $0x10] sm:$0xf]
        %v2068 = vld [vmem:[%s2062 + $0x14] sm:$0xf]
        %v2069 = vld [vmem:[%s2062 + $0x18] sm:$0xf]
        %v2070 = vld [vmem:[%s2062 + $0x1c] sm:$0xf]
        %v2071 = vld [vmem:[%s2062 + $0x20] sm:$0xf]
        %v2072 = vld [vmem:[%s2062 + $0x24] sm:$0xf]
        %v2073 = vld [vmem:[%s2062 + $0x28] sm:$0xf]
        %v2074 = vld [vmem:[%s2062 + $0x2c] sm:$0xf]
        %v2075 = vld [vmem:[%s2062 + $0x30] sm:$0xf]
        %v2076 = vld [vmem:[%s2062 + $0x34] sm:$0xf]
        %v2077 = vld [vmem:[%s2062 + $0x38] sm:$0xf]
        %v2078 = vld [vmem:[%s2062 + $0x3c] sm:$0xf]
        %v2095 = vunpack.c.l.b16 %v2063
        %v2096 = vunpack.c.l.b16 %v2064
        %v2097 = vunpack.c.l.b16 %v2065
        %v2098 = vunpack.c.l.b16 %v2066
        %v2099 = vunpack.c.l.b16 %v2067
        %v2100 = vunpack.c.l.b16 %v2068
        %v2101 = vunpack.c.l.b16 %v2069
        %v2102 = vunpack.c.l.b16 %v2070
        %v2103 = vunpack.c.l.b16 %v2071
        %v2104 = vunpack.c.l.b16 %v2072
        %v2105 = vunpack.c.l.b16 %v2073
        %v2106 = vunpack.c.l.b16 %v2074
        %v2107 = vunpack.c.l.b16 %v2075
        %v2108 = vunpack.c.l.b16 %v2076
        %v2109 = vunpack.c.l.b16 %v2077
        %v2110 = vunpack.c.l.b16 %v2078
        %v2111 = vpack.c.b16 %v2096, %v2095
        %v2112 = vpack.c.b16 %v2098, %v2097
        %v2113 = vpack.c.b16 %v2100, %v2099
        %v2114 = vpack.c.b16 %v2102, %v2101
        %v2115 = vpack.c.b16 %v2104, %v2103
        %v2116 = vpack.c.b16 %v2106, %v2105
        %v2117 = vpack.c.b16 %v2108, %v2107
        %v2118 = vpack.c.b16 %v2110, %v2109
        %2127 = vmatprep.subr.bf16.mxu0 0
        %2128 = vmatpush1.bf16.msra.mxu0 %v2111
        %2129 = vmatprep.subr.bf16.mxu0 0
        %2130 = vmatpush1.bf16.msra.mxu0 %v2112
        %2131 = vmatprep.subr.bf16.mxu0 0
        %2132 = vmatpush1.bf16.msra.mxu0 %v2113
        %2133 = vmatprep.subr.bf16.mxu0 0
        %2134 = vmatpush1.bf16.msra.mxu0 %v2114
        %2135 = vmatprep.subr.bf16.mxu0 0
        %2136 = vmatpush1.bf16.msra.mxu0 %v2115
        %2137 = vmatprep.subr.bf16.mxu0 0
        %2138 = vmatpush1.bf16.msra.mxu0 %v2116
        %2139 = vmatprep.subr.bf16.mxu0 0
        %2140 = vmatpush1.bf16.msra.mxu0 %v2117
        %2141 = vmatprep.subr.bf16.mxu0 0
        %2142 = vmatpush1.bf16.msra.mxu0 %v2118
        %2143 = vmatprep.subr.bf16.mxu0 0
        %2144 = vmatpush1.bf16.msra.mxu0 0
        %2145 = vmatprep.subr.bf16.mxu0 0
        %2146 = vmatpush1.bf16.msra.mxu0 0
        %2147 = vmatprep.subr.bf16.mxu0 0
        %2148 = vmatpush1.bf16.msra.mxu0 0
        %2149 = vmatprep.subr.bf16.mxu0 0
        %2150 = vmatpush1.bf16.msra.mxu0 0
        %2151 = vmatprep.subr.bf16.mxu0 0
        %2152 = vmatpush1.bf16.msra.mxu0 0
        %2153 = vmatprep.subr.bf16.mxu0 0
        %2154 = vmatpush1.bf16.msra.mxu0 0
        %2155 = vmatprep.subr.bf16.mxu0 0
        %2156 = vmatpush1.bf16.msra.mxu0 0
        %2157 = vmatprep.subr.bf16.mxu0 0
        %2158 = vmatpush1.bf16.msra.mxu0 0
        %2159 = vmatprep.mubr.bf16.mxu0 0
        %2160 = vmatmul.mubr.bf16.gmra.mrb[0].mxu0 %v385
        %v2161 = vpop.f32.mrb[0].mxu0
        %v2162 = vadd.f32 0.0, %v2161
        %v2163 = vpop.f32.mrb[0].mxu0
        %v2164 = vpop.f32.mrb[0].mxu0
        %v2165 = vadd.f32 0.0, %v2164
        %v2166 = vpop.f32.mrb[0].mxu0
        %2167 = vmatprep.mubr.bf16.mxu0 0
        %2168 = vmatmul.mubr.bf16.gmra.mrb[0].mxu0 %v386
        %v2169 = vpop.f32.mrb[0].mxu0
        %v2170 = vadd.f32 0.0, %v2169
        %v2171 = vpop.f32.mrb[0].mxu0
        %v2172 = vpop.f32.mrb[0].mxu0
        %v2173 = vadd.f32 0.0, %v2172
        %v2174 = vpop.f32.mrb[0].mxu0
        %2175 = vmatprep.mubr.bf16.mxu0 0
        %2176 = vmatmul.mubr.bf16.gmra.mrb[0].mxu0 %v387
        %v2177 = vpop.f32.mrb[0].mxu0
        %v2178 = vadd.f32 0.0, %v2177
        %v2179 = vpop.f32.mrb[0].mxu0
        %v2180 = vpop.f32.mrb[0].mxu0
        %v2181 = vadd.f32 0.0, %v2180
        %v2182 = vpop.f32.mrb[0].mxu0
        %2183 = vmatprep.mubr.bf16.mxu0 0
        %2184 = vmatmul.mubr.bf16.gmra.mrb[0].mxu0 %v388
        %v2185 = vpop.f32.mrb[0].mxu0
        %v2186 = vadd.f32 0.0, %v2185
        %v2187 = vpop.f32.mrb[0].mxu0
        %v2188 = vpop.f32.mrb[0].mxu0
        %v2189 = vadd.f32 0.0, %v2188
        %v2190 = vpop.f32.mrb[0].mxu0
        %2191 = vmatprep.mubr.bf16.mxu0 0
        %2192 = vmatmul.mubr.bf16.gmra.mrb[0].mxu0 %v389
        %v2193 = vpop.f32.mrb[0].mxu0
        %v2194 = vadd.f32 0.0, %v2193
        %v2195 = vpop.f32.mrb[0].mxu0
        %v2196 = vpop.f32.mrb[0].mxu0
        %v2197 = vadd.f32 0.0, %v2196
        %v2198 = vpop.f32.mrb[0].mxu0
        %2199 = vmatprep.mubr.bf16.mxu0 0
        %2200 = vmatmul.mubr.bf16.gmra.mrb[0].mxu0 %v390
        %v2201 = vpop.f32.mrb[0].mxu0
        %v2202 = vadd.f32 0.0, %v2201
        %v2203 = vpop.f32.mrb[0].mxu0
        %v2204 = vpop.f32.mrb[0].mxu0
        %v2205 = vadd.f32 0.0, %v2204
        %v2206 = vpop.f32.mrb[0].mxu0
        %2207 = vmatprep.mubr.bf16.mxu0 0
        %2208 = vmatmul.mubr.bf16.gmra.mrb[0].mxu0 %v391
        %v2209 = vpop.f32.mrb[0].mxu0
        %v2210 = vadd.f32 0.0, %v2209
        %v2211 = vpop.f32.mrb[0].mxu0
        %v2212 = vpop.f32.mrb[0].mxu0
        %v2213 = vadd.f32 0.0, %v2212
        %v2214 = vpop.f32.mrb[0].mxu0
        %2215 = vmatprep.mubr.bf16.mxu0 0
        %2216 = vmatmul.mubr.bf16.gmra.mrb[0].mxu0 %v392
        %v2217 = vpop.f32.mrb[0].mxu0
        %v2218 = vadd.f32 0.0, %v2217
        %v2219 = vpop.f32.mrb[0].mxu0
        %v2220 = vpop.f32.mrb[0].mxu0
        %v2221 = vadd.f32 0.0, %v2220
        %v2222 = vpop.f32.mrb[0].mxu0
        %2223 = vmatprep.mubr.bf16.mxu0 0
        %2224 = vmatmul.mubr.bf16.gmra.mrb[0].mxu0 %v393
        %v2225 = vpop.f32.mrb[0].mxu0
        %v2226 = vadd.f32 0.0, %v2225
        %v2227 = vpop.f32.mrb[0].mxu0
        %v2228 = vpop.f32.mrb[0].mxu0
        %v2229 = vadd.f32 0.0, %v2228
        %v2230 = vpop.f32.mrb[0].mxu0
        %2231 = vmatprep.mubr.bf16.mxu0 0
        %2232 = vmatmul.mubr.bf16.gmra.mrb[0].mxu0 %v394
        %v2233 = vpop.f32.mrb[0].mxu0
        %v2234 = vadd.f32 0.0, %v2233
        %v2235 = vpop.f32.mrb[0].mxu0
        %v2236 = vpop.f32.mrb[0].mxu0
        %v2237 = vadd.f32 0.0, %v2236
        %v2238 = vpop.f32.mrb[0].mxu0
        %2239 = vmatprep.mubr.bf16.mxu0 0
        %2240 = vmatmul.mubr.bf16.gmra.mrb[0].mxu0 %v395
        %v2241 = vpop.f32.mrb[0].mxu0
        %v2242 = vadd.f32 0.0, %v2241
        %v2243 = vpop.f32.mrb[0].mxu0
        %v2244 = vpop.f32.mrb[0].mxu0
        %v2245 = vadd.f32 0.0, %v2244
        %v2246 = vpop.f32.mrb[0].mxu0
        %2247 = vmatprep.mubr.bf16.mxu0 0
        %2248 = vmatmul.mubr.bf16.gmra.mrb[0].mxu0 %v396
        %v2249 = vpop.f32.mrb[0].mxu0
        %v2250 = vadd.f32 0.0, %v2249
        %v2251 = vpop.f32.mrb[0].mxu0
        %v2252 = vpop.f32.mrb[0].mxu0
        %v2253 = vadd.f32 0.0, %v2252
        %v2254 = vpop.f32.mrb[0].mxu0
        %2255 = vmatprep.mubr.bf16.mxu0 0
        %2256 = vmatmul.mubr.bf16.gmra.mrb[0].mxu0 %v397
        %v2257 = vpop.f32.mrb[0].mxu0
        %v2258 = vadd.f32 0.0, %v2257
        %v2259 = vpop.f32.mrb[0].mxu0
        %v2260 = vpop.f32.mrb[0].mxu0
        %v2261 = vadd.f32 0.0, %v2260
        %v2262 = vpop.f32.mrb[0].mxu0
        %2263 = vmatprep.mubr.bf16.mxu0 0
        %2264 = vmatmul.mubr.bf16.gmra.mrb[0].mxu0 %v398
        %v2265 = vpop.f32.mrb[0].mxu0
        %v2266 = vadd.f32 0.0, %v2265
        %v2267 = vpop.f32.mrb[0].mxu0
        %v2268 = vpop.f32.mrb[0].mxu0
        %v2269 = vadd.f32 0.0, %v2268
        %v2270 = vpop.f32.mrb[0].mxu0
        %2271 = vmatprep.mubr.bf16.mxu0 0
        %2272 = vmatmul.mubr.bf16.gmra.mrb[0].mxu0 %v399
        %v2273 = vpop.f32.mrb[0].mxu0
        %v2274 = vadd.f32 0.0, %v2273
        %v2275 = vpop.f32.mrb[0].mxu0
        %v2276 = vpop.f32.mrb[0].mxu0
        %v2277 = vadd.f32 0.0, %v2276
        %v2278 = vpop.f32.mrb[0].mxu0
        %2279 = vmatprep.mubr.bf16.mxu0 0
        %2280 = vmatmul.mubr.bf16.gmra.mrb[0].mxu0 %v400
        %v2281 = vpop.f32.mrb[0].mxu0
        %v2282 = vadd.f32 0.0, %v2281
        %v2283 = vpop.f32.mrb[0].mxu0
        %v2284 = vpop.f32.mrb[0].mxu0
        %v2285 = vadd.f32 0.0, %v2284
        %v2286 = vpop.f32.mrb[0].mxu0
        %2287 = vmatprep.mubr.bf16.mxu0 0
        %2288 = vmatmul.mubr.bf16.gmra.mrb[0].mxu0 %v401
        %v2289 = vpop.f32.mrb[0].mxu0
        %v2290 = vadd.f32 0.0, %v2289
        %v2291 = vpop.f32.mrb[0].mxu0
        %v2292 = vpop.f32.mrb[0].mxu0
        %v2293 = vadd.f32 0.0, %v2292
        %v2294 = vpop.f32.mrb[0].mxu0
        %2295 = vmatprep.mubr.bf16.mxu0 0
        %2296 = vmatmul.mubr.bf16.gmra.mrb[0].mxu0 %v402
        %v2297 = vpop.f32.mrb[0].mxu0
        %v2298 = vadd.f32 0.0, %v2297
        %v2299 = vpop.f32.mrb[0].mxu0
        %v2300 = vpop.f32.mrb[0].mxu0
        %v2301 = vadd.f32 0.0, %v2300
        %v2302 = vpop.f32.mrb[0].mxu0
        %2303 = vmatprep.mubr.bf16.mxu0 0
        %2304 = vmatmul.mubr.bf16.gmra.mrb[0].mxu0 %v403
        %v2305 = vpop.f32.mrb[0].mxu0
        %v2306 = vadd.f32 0.0, %v2305
        %v2307 = vpop.f32.mrb[0].mxu0
        %v2308 = vpop.f32.mrb[0].mxu0
        %v2309 = vadd.f32 0.0, %v2308
        %v2310 = vpop.f32.mrb[0].mxu0
        %2311 = vmatprep.mubr.bf16.mxu0 0
        %2312 = vmatmul.mubr.bf16.gmra.mrb[0].mxu0 %v404
        %v2313 = vpop.f32.mrb[0].mxu0
        %v2314 = vadd.f32 0.0, %v2313
        %v2315 = vpop.f32.mrb[0].mxu0
        %v2316 = vpop.f32.mrb[0].mxu0
        %v2317 = vadd.f32 0.0, %v2316
        %v2318 = vpop.f32.mrb[0].mxu0
        %2319 = vmatprep.mubr.bf16.mxu0 0
        %2320 = vmatmul.mubr.bf16.gmra.mrb[0].mxu0 %v405
        %v2321 = vpop.f32.mrb[0].mxu0
        %v2322 = vadd.f32 0.0, %v2321
        %v2323 = vpop.f32.mrb[0].mxu0
        %v2324 = vpop.f32.mrb[0].mxu0
        %v2325 = vadd.f32 0.0, %v2324
        %v2326 = vpop.f32.mrb[0].mxu0
        %2327 = vmatprep.mubr.bf16.mxu0 0
        %2328 = vmatmul.mubr.bf16.gmra.mrb[0].mxu0 %v406
        %v2329 = vpop.f32.mrb[0].mxu0
        %v2330 = vadd.f32 0.0, %v2329
        %v2331 = vpop.f32.mrb[0].mxu0
        %v2332 = vpop.f32.mrb[0].mxu0
        %v2333 = vadd.f32 0.0, %v2332
        %v2334 = vpop.f32.mrb[0].mxu0
        %2335 = vmatprep.mubr.bf16.mxu0 0
        %2336 = vmatmul.mubr.bf16.gmra.mrb[0].mxu0 %v407
        %v2337 = vpop.f32.mrb[0].mxu0
        %v2338 = vadd.f32 0.0, %v2337
        %v2339 = vpop.f32.mrb[0].mxu0
        %v2340 = vpop.f32.mrb[0].mxu0
        %v2341 = vadd.f32 0.0, %v2340
        %v2342 = vpop.f32.mrb[0].mxu0
        %2343 = vmatprep.mubr.bf16.mxu0 0
        %2344 = vmatmul.mubr.bf16.gmra.mrb[0].mxu0 %v408
        %v2345 = vpop.f32.mrb[0].mxu0
        %v2346 = vadd.f32 0.0, %v2345
        %v2347 = vpop.f32.mrb[0].mxu0
        %v2348 = vpop.f32.mrb[0].mxu0
        %v2349 = vadd.f32 0.0, %v2348
        %v2350 = vpop.f32.mrb[0].mxu0
        %2351 = vmatprep.mubr.bf16.mxu0 0
        %2352 = vmatmul.mubr.bf16.gmra.mrb[0].mxu0 %v409
        %v2353 = vpop.f32.mrb[0].mxu0
        %v2354 = vadd.f32 0.0, %v2353
        %v2355 = vpop.f32.mrb[0].mxu0
        %v2356 = vpop.f32.mrb[0].mxu0
        %v2357 = vadd.f32 0.0, %v2356
        %v2358 = vpop.f32.mrb[0].mxu0
        %2359 = vmatprep.mubr.bf16.mxu0 0
        %2360 = vmatmul.mubr.bf16.gmra.mrb[0].mxu0 %v410
        %v2361 = vpop.f32.mrb[0].mxu0
        %v2362 = vadd.f32 0.0, %v2361
        %v2363 = vpop.f32.mrb[0].mxu0
        %v2364 = vpop.f32.mrb[0].mxu0
        %v2365 = vadd.f32 0.0, %v2364
        %v2366 = vpop.f32.mrb[0].mxu0
        %2367 = vmatprep.mubr.bf16.mxu0 0
        %2368 = vmatmul.mubr.bf16.gmra.mrb[0].mxu0 %v411
        %v2369 = vpop.f32.mrb[0].mxu0
        %v2370 = vadd.f32 0.0, %v2369
        %v2371 = vpop.f32.mrb[0].mxu0
        %v2372 = vpop.f32.mrb[0].mxu0
        %v2373 = vadd.f32 0.0, %v2372
        %v2374 = vpop.f32.mrb[0].mxu0
        %2375 = vmatprep.mubr.bf16.mxu0 0
        %2376 = vmatmul.mubr.bf16.gmra.mrb[0].mxu0 %v412
        %v2377 = vpop.f32.mrb[0].mxu0
        %v2378 = vadd.f32 0.0, %v2377
        %v2379 = vpop.f32.mrb[0].mxu0
        %v2380 = vpop.f32.mrb[0].mxu0
        %v2381 = vadd.f32 0.0, %v2380
        %v2382 = vpop.f32.mrb[0].mxu0
        %2383 = vmatprep.mubr.bf16.mxu0 0
        %2384 = vmatmul.mubr.bf16.gmra.mrb[0].mxu0 %v413
        %v2385 = vpop.f32.mrb[0].mxu0
        %v2386 = vadd.f32 0.0, %v2385
        %v2387 = vpop.f32.mrb[0].mxu0
        %v2388 = vpop.f32.mrb[0].mxu0
        %v2389 = vadd.f32 0.0, %v2388
        %v2390 = vpop.f32.mrb[0].mxu0
        %2391 = vmatprep.mubr.bf16.mxu0 0
        %2392 = vmatmul.mubr.bf16.gmra.mrb[0].mxu0 %v414
        %v2393 = vpop.f32.mrb[0].mxu0
        %v2394 = vadd.f32 0.0, %v2393
        %v2395 = vpop.f32.mrb[0].mxu0
        %v2396 = vpop.f32.mrb[0].mxu0
        %v2397 = vadd.f32 0.0, %v2396
        %v2398 = vpop.f32.mrb[0].mxu0
        %2399 = vmatprep.mubr.bf16.mxu0 0
        %2400 = vmatmul.mubr.bf16.gmra.mrb[0].mxu0 %v415
        %v2401 = vpop.f32.mrb[0].mxu0
        %v2402 = vadd.f32 0.0, %v2401
        %v2403 = vpop.f32.mrb[0].mxu0
        %v2404 = vpop.f32.mrb[0].mxu0
        %v2405 = vadd.f32 0.0, %v2404
        %v2406 = vpop.f32.mrb[0].mxu0
        %2407 = vmatprep.mubr.bf16.mxu0 0
        %2408 = vmatmul.mubr.bf16.gmra.mrb[0].mxu0 %v416
        %v2409 = vpop.f32.mrb[0].mxu0
        %v2410 = vadd.f32 0.0, %v2409
        %v2411 = vpop.f32.mrb[0].mxu0
        %v2412 = vpop.f32.mrb[0].mxu0
        %v2413 = vadd.f32 0.0, %v2412
        %v2414 = vpop.f32.mrb[0].mxu0
        %2415 = vmatprep.mubr.bf16.mxu0 0
        %2416 = vmatmul.mubr.bf16.gmra.mrb[0].mxu0 %v417
        %v2417 = vpop.f32.mrb[0].mxu0
        %v2418 = vadd.f32 0.0, %v2417
        %v2419 = vpop.f32.mrb[0].mxu0
        %v2420 = vpop.f32.mrb[0].mxu0
        %v2421 = vadd.f32 0.0, %v2420
        %v2422 = vpop.f32.mrb[0].mxu0
        %2423 = vmatprep.mubr.bf16.mxu0 0
        %2424 = vmatmul.mubr.bf16.gmra.mrb[0].mxu0 %v418
        %v2425 = vpop.f32.mrb[0].mxu0
        %v2426 = vadd.f32 0.0, %v2425
        %v2427 = vpop.f32.mrb[0].mxu0
        %v2428 = vpop.f32.mrb[0].mxu0
        %v2429 = vadd.f32 0.0, %v2428
        %v2430 = vpop.f32.mrb[0].mxu0
        %2431 = vmatprep.mubr.bf16.mxu0 0
        %2432 = vmatmul.mubr.bf16.gmra.mrb[0].mxu0 %v419
        %v2433 = vpop.f32.mrb[0].mxu0
        %v2434 = vadd.f32 0.0, %v2433
        %v2435 = vpop.f32.mrb[0].mxu0
        %v2436 = vpop.f32.mrb[0].mxu0
        %v2437 = vadd.f32 0.0, %v2436
        %v2438 = vpop.f32.mrb[0].mxu0
        %2439 = vmatprep.mubr.bf16.mxu0 0
        %2440 = vmatmul.mubr.bf16.gmra.mrb[0].mxu0 %v420
        %v2441 = vpop.f32.mrb[0].mxu0
        %v2442 = vadd.f32 0.0, %v2441
        %v2443 = vpop.f32.mrb[0].mxu0
        %v2444 = vpop.f32.mrb[0].mxu0
        %v2445 = vadd.f32 0.0, %v2444
        %v2446 = vpop.f32.mrb[0].mxu0
        %2447 = vmatprep.mubr.bf16.mxu0 0
        %2448 = vmatmul.mubr.bf16.gmra.mrb[0].mxu0 %v421
        %v2449 = vpop.f32.mrb[0].mxu0
        %v2450 = vadd.f32 0.0, %v2449
        %v2451 = vpop.f32.mrb[0].mxu0
        %v2452 = vpop.f32.mrb[0].mxu0
        %v2453 = vadd.f32 0.0, %v2452
        %v2454 = vpop.f32.mrb[0].mxu0
        %2455 = vmatprep.mubr.bf16.mxu0 0
        %2456 = vmatmul.mubr.bf16.gmra.mrb[0].mxu0 %v422
        %v2457 = vpop.f32.mrb[0].mxu0
        %v2458 = vadd.f32 0.0, %v2457
        %v2459 = vpop.f32.mrb[0].mxu0
        %v2460 = vpop.f32.mrb[0].mxu0
        %v2461 = vadd.f32 0.0, %v2460
        %v2462 = vpop.f32.mrb[0].mxu0
        %2463 = vmatprep.mubr.bf16.mxu0 0
        %2464 = vmatmul.mubr.bf16.gmra.mrb[0].mxu0 %v423
        %v2465 = vpop.f32.mrb[0].mxu0
        %v2466 = vadd.f32 0.0, %v2465
        %v2467 = vpop.f32.mrb[0].mxu0
        %v2468 = vpop.f32.mrb[0].mxu0
        %v2469 = vadd.f32 0.0, %v2468
        %v2470 = vpop.f32.mrb[0].mxu0
        %2471 = vmatprep.mubr.bf16.mxu0 0
        %2472 = vmatmul.mubr.bf16.gmra.mrb[0].mxu0 %v424
        %v2473 = vpop.f32.mrb[0].mxu0
        %v2474 = vadd.f32 0.0, %v2473
        %v2475 = vpop.f32.mrb[0].mxu0
        %v2476 = vpop.f32.mrb[0].mxu0
        %v2477 = vadd.f32 0.0, %v2476
        %v2478 = vpop.f32.mrb[0].mxu0
        %2479 = vmatprep.mubr.bf16.mxu0 0
        %2480 = vmatmul.mubr.bf16.gmra.mrb[0].mxu0 %v425
        %v2481 = vpop.f32.mrb[0].mxu0
        %v2482 = vadd.f32 0.0, %v2481
        %v2483 = vpop.f32.mrb[0].mxu0
        %v2484 = vpop.f32.mrb[0].mxu0
        %v2485 = vadd.f32 0.0, %v2484
        %v2486 = vpop.f32.mrb[0].mxu0
        %2487 = vmatprep.mubr.bf16.mxu0 0
        %2488 = vmatmul.mubr.bf16.gmra.mrb[0].mxu0 %v426
        %v2489 = vpop.f32.mrb[0].mxu0
        %v2490 = vadd.f32 0.0, %v2489
        %v2491 = vpop.f32.mrb[0].mxu0
        %v2492 = vpop.f32.mrb[0].mxu0
        %v2493 = vadd.f32 0.0, %v2492
        %v2494 = vpop.f32.mrb[0].mxu0
        %2495 = vmatprep.mubr.bf16.mxu0 0
        %2496 = vmatmul.mubr.bf16.gmra.mrb[0].mxu0 %v427
        %v2497 = vpop.f32.mrb[0].mxu0
        %v2498 = vadd.f32 0.0, %v2497
        %v2499 = vpop.f32.mrb[0].mxu0
        %v2500 = vpop.f32.mrb[0].mxu0
        %v2501 = vadd.f32 0.0, %v2500
        %v2502 = vpop.f32.mrb[0].mxu0
        %2503 = vmatprep.mubr.bf16.mxu0 0
        %2504 = vmatmul.mubr.bf16.gmra.mrb[0].mxu0 %v428
        %v2505 = vpop.f32.mrb[0].mxu0
        %v2506 = vadd.f32 0.0, %v2505
        %v2507 = vpop.f32.mrb[0].mxu0
        %v2508 = vpop.f32.mrb[0].mxu0
        %v2509 = vadd.f32 0.0, %v2508
        %v2510 = vpop.f32.mrb[0].mxu0
        %2511 = vmatprep.mubr.bf16.mxu0 0
        %2512 = vmatmul.mubr.bf16.gmra.mrb[0].mxu0 %v429
        %v2513 = vpop.f32.mrb[0].mxu0
        %v2514 = vadd.f32 0.0, %v2513
        %v2515 = vpop.f32.mrb[0].mxu0
        %v2516 = vpop.f32.mrb[0].mxu0
        %v2517 = vadd.f32 0.0, %v2516
        %v2518 = vpop.f32.mrb[0].mxu0
        %2519 = vmatprep.mubr.bf16.mxu0 0
        %2520 = vmatmul.mubr.bf16.gmra.mrb[0].mxu0 %v430
        %v2521 = vpop.f32.mrb[0].mxu0
        %v2522 = vadd.f32 0.0, %v2521
        %v2523 = vpop.f32.mrb[0].mxu0
        %v2524 = vpop.f32.mrb[0].mxu0
        %v2525 = vadd.f32 0.0, %v2524
        %v2526 = vpop.f32.mrb[0].mxu0
        %2527 = vmatprep.mubr.bf16.mxu0 0
        %2528 = vmatmul.mubr.bf16.gmra.mrb[0].mxu0 %v431
        %v2529 = vpop.f32.mrb[0].mxu0
        %v2530 = vadd.f32 0.0, %v2529
        %v2531 = vpop.f32.mrb[0].mxu0
        %v2532 = vpop.f32.mrb[0].mxu0
        %v2533 = vadd.f32 0.0, %v2532
        %v2534 = vpop.f32.mrb[0].mxu0
        %2535 = vmatprep.mubr.bf16.mxu0 0
        %2536 = vmatmul.mubr.bf16.gmra.mrb[0].mxu0 %v432
        %v2537 = vpop.f32.mrb[0].mxu0
        %v2538 = vadd.f32 0.0, %v2537
        %v2539 = vpop.f32.mrb[0].mxu0
        %v2540 = vpop.f32.mrb[0].mxu0
        %v2541 = vadd.f32 0.0, %v2540
        %v2542 = vpop.f32.mrb[0].mxu0
        %2543 = vmatprep.mubr.bf16.mxu0 0
        %2544 = vmatmul.mubr.bf16.gmra.mrb[0].mxu0 %v433
        %v2545 = vpop.f32.mrb[0].mxu0
        %v2546 = vadd.f32 0.0, %v2545
        %v2547 = vpop.f32.mrb[0].mxu0
        %v2548 = vpop.f32.mrb[0].mxu0
        %v2549 = vadd.f32 0.0, %v2548
        %v2550 = vpop.f32.mrb[0].mxu0
        %2551 = vmatprep.mubr.bf16.mxu0 0
        %2552 = vmatmul.mubr.bf16.gmra.mrb[0].mxu0 %v434
        %v2553 = vpop.f32.mrb[0].mxu0
        %v2554 = vadd.f32 0.0, %v2553
        %v2555 = vpop.f32.mrb[0].mxu0
        %v2556 = vpop.f32.mrb[0].mxu0
        %v2557 = vadd.f32 0.0, %v2556
        %v2558 = vpop.f32.mrb[0].mxu0
        %2559 = vmatprep.mubr.bf16.mxu0 0
        %2560 = vmatmul.mubr.bf16.gmra.mrb[0].mxu0 %v435
        %v2561 = vpop.f32.mrb[0].mxu0
        %v2562 = vadd.f32 0.0, %v2561
        %v2563 = vpop.f32.mrb[0].mxu0
        %v2564 = vpop.f32.mrb[0].mxu0
        %v2565 = vadd.f32 0.0, %v2564
        %v2566 = vpop.f32.mrb[0].mxu0
        %2567 = vmatprep.mubr.bf16.mxu0 0
        %2568 = vmatmul.mubr.bf16.gmra.mrb[0].mxu0 %v436
        %v2569 = vpop.f32.mrb[0].mxu0
        %v2570 = vadd.f32 0.0, %v2569
        %v2571 = vpop.f32.mrb[0].mxu0
        %v2572 = vpop.f32.mrb[0].mxu0
        %v2573 = vadd.f32 0.0, %v2572
        %v2574 = vpop.f32.mrb[0].mxu0
        %2575 = vmatprep.mubr.bf16.mxu0 0
        %2576 = vmatmul.mubr.bf16.gmra.mrb[0].mxu0 %v437
        %v2577 = vpop.f32.mrb[0].mxu0
        %v2578 = vadd.f32 0.0, %v2577
        %v2579 = vpop.f32.mrb[0].mxu0
        %v2580 = vpop.f32.mrb[0].mxu0
        %v2581 = vadd.f32 0.0, %v2580
        %v2582 = vpop.f32.mrb[0].mxu0
        %2583 = vmatprep.mubr.bf16.mxu0 0
        %2584 = vmatmul.mubr.bf16.gmra.mrb[0].mxu0 %v438
        %v2585 = vpop.f32.mrb[0].mxu0
        %v2586 = vadd.f32 0.0, %v2585
        %v2587 = vpop.f32.mrb[0].mxu0
        %v2588 = vpop.f32.mrb[0].mxu0
        %v2589 = vadd.f32 0.0, %v2588
        %v2590 = vpop.f32.mrb[0].mxu0
        %2591 = vmatprep.mubr.bf16.mxu0 0
        %2592 = vmatmul.mubr.bf16.gmra.mrb[0].mxu0 %v439
        %v2593 = vpop.f32.mrb[0].mxu0
        %v2594 = vadd.f32 0.0, %v2593
        %v2595 = vpop.f32.mrb[0].mxu0
        %v2596 = vpop.f32.mrb[0].mxu0
        %v2597 = vadd.f32 0.0, %v2596
        %v2598 = vpop.f32.mrb[0].mxu0
        %2599 = vmatprep.mubr.bf16.mxu0 0
        %2600 = vmatmul.mubr.bf16.gmra.mrb[0].mxu0 %v440
        %v2601 = vpop.f32.mrb[0].mxu0
        %v2602 = vadd.f32 0.0, %v2601
        %v2603 = vpop.f32.mrb[0].mxu0
        %v2604 = vpop.f32.mrb[0].mxu0
        %v2605 = vadd.f32 0.0, %v2604
        %v2606 = vpop.f32.mrb[0].mxu0
        %2607 = vdwg.mxu0
        %v2608 = vld [vmem:[#allocation2] sm:$0xff]
        %v2609 = vld [vmem:[#allocation2 + $0x8] sm:$0xff]
        %v2610 = vld [vmem:[#allocation2 + $0x10] sm:$0xff]
        %v2611 = vld [vmem:[#allocation2 + $0x18] sm:$0xff]
        %v2612 = vld [vmem:[#allocation2 + $0x20] sm:$0xff]
        %v2613 = vld [vmem:[#allocation2 + $0x28] sm:$0xff]
        %v2614 = vld [vmem:[#allocation2 + $0x30] sm:$0xff]
        %v2615 = vld [vmem:[#allocation2 + $0x38] sm:$0xff]
        %v2616 = vld [vmem:[#allocation2 + $0x40] sm:$0xff]
        %v2617 = vld [vmem:[#allocation2 + $0x48] sm:$0xff]
        %v2618 = vld [vmem:[#allocation2 + $0x50] sm:$0xff]
        %v2619 = vld [vmem:[#allocation2 + $0x58] sm:$0xff]
        %v2620 = vld [vmem:[#allocation2 + $0x60] sm:$0xff]
        %v2621 = vld [vmem:[#allocation2 + $0x68] sm:$0xff]
        %v2622 = vld [vmem:[#allocation2 + $0x70] sm:$0xff]
        %v2623 = vld [vmem:[#allocation2 + $0x78] sm:$0xff]
        %v2624 = vld [vmem:[#allocation2 + $0x80] sm:$0xff]
        %v2625 = vld [vmem:[#allocation2 + $0x88] sm:$0xff]
        %v2626 = vld [vmem:[#allocation2 + $0x90] sm:$0xff]
        %v2627 = vld [vmem:[#allocation2 + $0x98] sm:$0xff]
        %v2628 = vld [vmem:[#allocation2 + $0xa0] sm:$0xff]
        %v2629 = vld [vmem:[#allocation2 + $0xa8] sm:$0xff]
        %v2630 = vld [vmem:[#allocation2 + $0xb0] sm:$0xff]
        %v2631 = vld [vmem:[#allocation2 + $0xb8] sm:$0xff]
        %v2632 = vld [vmem:[#allocation2 + $0xc0] sm:$0xff]
        %v2633 = vld [vmem:[#allocation2 + $0xc8] sm:$0xff]
        %v2634 = vld [vmem:[#allocation2 + $0xd0] sm:$0xff]
        %v2635 = vld [vmem:[#allocation2 + $0xd8] sm:$0xff]
        %v2636 = vld [vmem:[#allocation2 + $0xe0] sm:$0xff]
        %v2637 = vld [vmem:[#allocation2 + $0xe8] sm:$0xff]
        %v2638 = vld [vmem:[#allocation2 + $0xf0] sm:$0xff]
        %v2639 = vld [vmem:[#allocation2 + $0xf8] sm:$0xff]
        %v2640 = vld [vmem:[#allocation2 + $0x100] sm:$0xff]
        %v2641 = vld [vmem:[#allocation2 + $0x108] sm:$0xff]
        %v2642 = vld [vmem:[#allocation2 + $0x110] sm:$0xff]
        %v2643 = vld [vmem:[#allocation2 + $0x118] sm:$0xff]
        %v2644 = vld [vmem:[#allocation2 + $0x120] sm:$0xff]
        %v2645 = vld [vmem:[#allocation2 + $0x128] sm:$0xff]
        %v2646 = vld [vmem:[#allocation2 + $0x130] sm:$0xff]
        %v2647 = vld [vmem:[#allocation2 + $0x138] sm:$0xff]
        %v2648 = vld [vmem:[#allocation2 + $0x140] sm:$0xff]
        %v2649 = vld [vmem:[#allocation2 + $0x148] sm:$0xff]
        %v2650 = vld [vmem:[#allocation2 + $0x150] sm:$0xff]
        %v2651 = vld [vmem:[#allocation2 + $0x158] sm:$0xff]
        %v2652 = vld [vmem:[#allocation2 + $0x160] sm:$0xff]
        %v2653 = vld [vmem:[#allocation2 + $0x168] sm:$0xff]
        %v2654 = vld [vmem:[#allocation2 + $0x170] sm:$0xff]
        %v2655 = vld [vmem:[#allocation2 + $0x178] sm:$0xff]
        %v2656 = vld [vmem:[#allocation2 + $0x180] sm:$0xff]
        %v2657 = vld [vmem:[#allocation2 + $0x188] sm:$0xff]
        %v2658 = vld [vmem:[#allocation2 + $0x190] sm:$0xff]
        %v2659 = vld [vmem:[#allocation2 + $0x198] sm:$0xff]
        %v2660 = vld [vmem:[#allocation2 + $0x1a0] sm:$0xff]
        %v2661 = vld [vmem:[#allocation2 + $0x1a8] sm:$0xff]
        %v2662 = vld [vmem:[#allocation2 + $0x1b0] sm:$0xff]
        %v2663 = vld [vmem:[#allocation2 + $0x1b8] sm:$0xff]
        %v2664 = vld [vmem:[#allocation2 + $0x1c0] sm:$0xff]
        %v2665 = vld [vmem:[#allocation2 + $0x1c8] sm:$0xff]
        %v2666 = vld [vmem:[#allocation2 + $0x1d0] sm:$0xff]
        %v2667 = vld [vmem:[#allocation2 + $0x1d8] sm:$0xff]
        %v2668 = vld [vmem:[#allocation2 + $0x1e0] sm:$0xff]
        %v2669 = vld [vmem:[#allocation2 + $0x1e8] sm:$0xff]
        %v2670 = vld [vmem:[#allocation2 + $0x1f0] sm:$0xff]
        %v2671 = vld [vmem:[#allocation2 + $0x1f8] sm:$0xff]
        %v2672 = vld [vmem:[#allocation2 + $0x200] sm:$0xff]
        %v2673 = vld [vmem:[#allocation2 + $0x208] sm:$0xff]
        %v2674 = vld [vmem:[#allocation2 + $0x210] sm:$0xff]
        %v2675 = vld [vmem:[#allocation2 + $0x218] sm:$0xff]
        %v2676 = vld [vmem:[#allocation2 + $0x220] sm:$0xff]
        %v2677 = vld [vmem:[#allocation2 + $0x228] sm:$0xff]
        %v2678 = vld [vmem:[#allocation2 + $0x230] sm:$0xff]
        %v2679 = vld [vmem:[#allocation2 + $0x238] sm:$0xff]
        %v2680 = vld [vmem:[#allocation2 + $0x240] sm:$0xff]
        %v2681 = vld [vmem:[#allocation2 + $0x248] sm:$0xff]
        %v2682 = vld [vmem:[#allocation2 + $0x250] sm:$0xff]
        %v2683 = vld [vmem:[#allocation2 + $0x258] sm:$0xff]
        %v2684 = vld [vmem:[#allocation2 + $0x260] sm:$0xff]
        %v2685 = vld [vmem:[#allocation2 + $0x268] sm:$0xff]
        %v2686 = vld [vmem:[#allocation2 + $0x270] sm:$0xff]
        %v2687 = vld [vmem:[#allocation2 + $0x278] sm:$0xff]
        %v2688 = vld [vmem:[#allocation2 + $0x280] sm:$0xff]
        %v2689 = vld [vmem:[#allocation2 + $0x288] sm:$0xff]
        %v2690 = vld [vmem:[#allocation2 + $0x290] sm:$0xff]
        %v2691 = vld [vmem:[#allocation2 + $0x298] sm:$0xff]
        %v2692 = vld [vmem:[#allocation2 + $0x2a0] sm:$0xff]
        %v2693 = vld [vmem:[#allocation2 + $0x2a8] sm:$0xff]
        %v2694 = vld [vmem:[#allocation2 + $0x2b0] sm:$0xff]
        %v2695 = vld [vmem:[#allocation2 + $0x2b8] sm:$0xff]
        %v2696 = vld [vmem:[#allocation2 + $0x2c0] sm:$0xff]
        %v2697 = vld [vmem:[#allocation2 + $0x2c8] sm:$0xff]
        %v2698 = vld [vmem:[#allocation2 + $0x2d0] sm:$0xff]
        %v2699 = vld [vmem:[#allocation2 + $0x2d8] sm:$0xff]
        %v2700 = vld [vmem:[#allocation2 + $0x2e0] sm:$0xff]
        %v2701 = vld [vmem:[#allocation2 + $0x2e8] sm:$0xff]
        %v2702 = vld [vmem:[#allocation2 + $0x2f0] sm:$0xff]
        %v2703 = vld [vmem:[#allocation2 + $0x2f8] sm:$0xff]
        %v2704 = vld [vmem:[#allocation2 + $0x300] sm:$0xff]
        %v2705 = vld [vmem:[#allocation2 + $0x308] sm:$0xff]
        %v2706 = vld [vmem:[#allocation2 + $0x310] sm:$0xff]
        %v2707 = vld [vmem:[#allocation2 + $0x318] sm:$0xff]
        %v2708 = vld [vmem:[#allocation2 + $0x320] sm:$0xff]
        %v2709 = vld [vmem:[#allocation2 + $0x328] sm:$0xff]
        %v2710 = vld [vmem:[#allocation2 + $0x330] sm:$0xff]
        %v2711 = vld [vmem:[#allocation2 + $0x338] sm:$0xff]
        %v2712 = vld [vmem:[#allocation2 + $0x340] sm:$0xff]
        %v2713 = vld [vmem:[#allocation2 + $0x348] sm:$0xff]
        %v2714 = vld [vmem:[#allocation2 + $0x350] sm:$0xff]
        %v2715 = vld [vmem:[#allocation2 + $0x358] sm:$0xff]
        %v2716 = vld [vmem:[#allocation2 + $0x360] sm:$0xff]
        %v2717 = vld [vmem:[#allocation2 + $0x368] sm:$0xff]
        %v2718 = vld [vmem:[#allocation2 + $0x370] sm:$0xff]
        %v2719 = vld [vmem:[#allocation2 + $0x378] sm:$0xff]
        %v2720 = vadd.f32 %v2608, %v2162
        %v2721 = vadd.f32 %v2609, %v2165
        %v2722 = vadd.f32 %v2610, %v2170
        %v2723 = vadd.f32 %v2611, %v2173
        %v2724 = vadd.f32 %v2612, %v2178
        %v2725 = vadd.f32 %v2613, %v2181
        %v2726 = vadd.f32 %v2614, %v2186
        %v2727 = vadd.f32 %v2615, %v2189
        %v2728 = vadd.f32 %v2616, %v2194
        %v2729 = vadd.f32 %v2617, %v2197
        %v2730 = vadd.f32 %v2618, %v2202
        %v2731 = vadd.f32 %v2619, %v2205
        %v2732 = vadd.f32 %v2620, %v2210
        %v2733 = vadd.f32 %v2621, %v2213
        %v2734 = vadd.f32 %v2622, %v2218
        %v2735 = vadd.f32 %v2623, %v2221
        %v2736 = vadd.f32 %v2624, %v2226
        %v2737 = vadd.f32 %v2625, %v2229
        %v2738 = vadd.f32 %v2626, %v2234
        %v2739 = vadd.f32 %v2627, %v2237
        %v2740 = vadd.f32 %v2628, %v2242
        %v2741 = vadd.f32 %v2629, %v2245
        %v2742 = vadd.f32 %v2630, %v2250
        %v2743 = vadd.f32 %v2631, %v2253
        %v2744 = vadd.f32 %v2632, %v2258
        %v2745 = vadd.f32 %v2633, %v2261
        %v2746 = vadd.f32 %v2634, %v2266
        %v2747 = vadd.f32 %v2635, %v2269
        %v2748 = vadd.f32 %v2636, %v2274
        %v2749 = vadd.f32 %v2637, %v2277
        %v2750 = vadd.f32 %v2638, %v2282
        %v2751 = vadd.f32 %v2639, %v2285
        %v2752 = vadd.f32 %v2640, %v2290
        %v2753 = vadd.f32 %v2641, %v2293
        %v2754 = vadd.f32 %v2642, %v2298
        %v2755 = vadd.f32 %v2643, %v2301
        %v2756 = vadd.f32 %v2644, %v2306
        %v2757 = vadd.f32 %v2645, %v2309
        %v2758 = vadd.f32 %v2646, %v2314
        %v2759 = vadd.f32 %v2647, %v2317
        %v2760 = vadd.f32 %v2648, %v2322
        %v2761 = vadd.f32 %v2649, %v2325
        %v2762 = vadd.f32 %v2650, %v2330
        %v2763 = vadd.f32 %v2651, %v2333
        %v2764 = vadd.f32 %v2652, %v2338
        %v2765 = vadd.f32 %v2653, %v2341
        %v2766 = vadd.f32 %v2654, %v2346
        %v2767 = vadd.f32 %v2655, %v2349
        %v2768 = vadd.f32 %v2656, %v2354
        %v2769 = vadd.f32 %v2657, %v2357
        %v2770 = vadd.f32 %v2658, %v2362
        %v2771 = vadd.f32 %v2659, %v2365
        %v2772 = vadd.f32 %v2660, %v2370
        %v2773 = vadd.f32 %v2661, %v2373
        %v2774 = vadd.f32 %v2662, %v2378
        %v2775 = vadd.f32 %v2663, %v2381
        %v2776 = vadd.f32 %v2664, %v2386
        %v2777 = vadd.f32 %v2665, %v2389
        %v2778 = vadd.f32 %v2666, %v2394
        %v2779 = vadd.f32 %v2667, %v2397
        %v2780 = vadd.f32 %v2668, %v2402
        %v2781 = vadd.f32 %v2669, %v2405
        %v2782 = vadd.f32 %v2670, %v2410
        %v2783 = vadd.f32 %v2671, %v2413
        %v2784 = vadd.f32 %v2672, %v2418
        %v2785 = vadd.f32 %v2673, %v2421
        %v2786 = vadd.f32 %v2674, %v2426
        %v2787 = vadd.f32 %v2675, %v2429
        %v2788 = vadd.f32 %v2676, %v2434
        %v2789 = vadd.f32 %v2677, %v2437
        %v2790 = vadd.f32 %v2678, %v2442
        %v2791 = vadd.f32 %v2679, %v2445
        %v2792 = vadd.f32 %v2680, %v2450
        %v2793 = vadd.f32 %v2681, %v2453
        %v2794 = vadd.f32 %v2682, %v2458
        %v2795 = vadd.f32 %v2683, %v2461
        %v2796 = vadd.f32 %v2684, %v2466
        %v2797 = vadd.f32 %v2685, %v2469
        %v2798 = vadd.f32 %v2686, %v2474
        %v2799 = vadd.f32 %v2687, %v2477
        %v2800 = vadd.f32 %v2688, %v2482
        %v2801 = vadd.f32 %v2689, %v2485
        %v2802 = vadd.f32 %v2690, %v2490
        %v2803 = vadd.f32 %v2691, %v2493
        %v2804 = vadd.f32 %v2692, %v2498
        %v2805 = vadd.f32 %v2693, %v2501
        %v2806 = vadd.f32 %v2694, %v2506
        %v2807 = vadd.f32 %v2695, %v2509
        %v2808 = vadd.f32 %v2696, %v2514
        %v2809 = vadd.f32 %v2697, %v2517
        %v2810 = vadd.f32 %v2698, %v2522
        %v2811 = vadd.f32 %v2699, %v2525
        %v2812 = vadd.f32 %v2700, %v2530
        %v2813 = vadd.f32 %v2701, %v2533
        %v2814 = vadd.f32 %v2702, %v2538
        %v2815 = vadd.f32 %v2703, %v2541
        %v2816 = vadd.f32 %v2704, %v2546
        %v2817 = vadd.f32 %v2705, %v2549
        %v2818 = vadd.f32 %v2706, %v2554
        %v2819 = vadd.f32 %v2707, %v2557
        %v2820 = vadd.f32 %v2708, %v2562
        %v2821 = vadd.f32 %v2709, %v2565
        %v2822 = vadd.f32 %v2710, %v2570
        %v2823 = vadd.f32 %v2711, %v2573
        %v2824 = vadd.f32 %v2712, %v2578
        %v2825 = vadd.f32 %v2713, %v2581
        %v2826 = vadd.f32 %v2714, %v2586
        %v2827 = vadd.f32 %v2715, %v2589
        %v2828 = vadd.f32 %v2716, %v2594
        %v2829 = vadd.f32 %v2717, %v2597
        %v2830 = vadd.f32 %v2718, %v2602
        %v2831 = vadd.f32 %v2719, %v2605
        %2832 = vst.msk [vmem:[#allocation2] sm:$0xff] %vm1051, %v2720
        %2833 = vst.msk [vmem:[#allocation2 + $0x8] sm:$0xff] %vm1051, %v2721
        %2834 = vst.msk [vmem:[#allocation2 + $0x10] sm:$0xff] %vm1051, %v2722
        %2835 = vst.msk [vmem:[#allocation2 + $0x18] sm:$0xff] %vm1051, %v2723
        %2836 = vst.msk [vmem:[#allocation2 + $0x20] sm:$0xff] %vm1051, %v2724
        %2837 = vst.msk [vmem:[#allocation2 + $0x28] sm:$0xff] %vm1051, %v2725
        %2838 = vst.msk [vmem:[#allocation2 + $0x30] sm:$0xff] %vm1051, %v2726
        %2839 = vst.msk [vmem:[#allocation2 + $0x38] sm:$0xff] %vm1051, %v2727
        %2840 = vst.msk [vmem:[#allocation2 + $0x40] sm:$0xff] %vm1051, %v2728
        %2841 = vst.msk [vmem:[#allocation2 + $0x48] sm:$0xff] %vm1051, %v2729
        %2842 = vst.msk [vmem:[#allocation2 + $0x50] sm:$0xff] %vm1051, %v2730
        %2843 = vst.msk [vmem:[#allocation2 + $0x58] sm:$0xff] %vm1051, %v2731
        %2844 = vst.msk [vmem:[#allocation2 + $0x60] sm:$0xff] %vm1051, %v2732
        %2845 = vst.msk [vmem:[#allocation2 + $0x68] sm:$0xff] %vm1051, %v2733
        %2846 = vst.msk [vmem:[#allocation2 + $0x70] sm:$0xff] %vm1051, %v2734
        %2847 = vst.msk [vmem:[#allocation2 + $0x78] sm:$0xff] %vm1051, %v2735
        %2848 = vst.msk [vmem:[#allocation2 + $0x80] sm:$0xff] %vm1051, %v2736
        %2849 = vst.msk [vmem:[#allocation2 + $0x88] sm:$0xff] %vm1051, %v2737
        %2850 = vst.msk [vmem:[#allocation2 + $0x90] sm:$0xff] %vm1051, %v2738
        %2851 = vst.msk [vmem:[#allocation2 + $0x98] sm:$0xff] %vm1051, %v2739
        %2852 = vst.msk [vmem:[#allocation2 + $0xa0] sm:$0xff] %vm1051, %v2740
        %2853 = vst.msk [vmem:[#allocation2 + $0xa8] sm:$0xff] %vm1051, %v2741
        %2854 = vst.msk [vmem:[#allocation2 + $0xb0] sm:$0xff] %vm1051, %v2742
        %2855 = vst.msk [vmem:[#allocation2 + $0xb8] sm:$0xff] %vm1051, %v2743
        %2856 = vst.msk [vmem:[#allocation2 + $0xc0] sm:$0xff] %vm1051, %v2744
        %2857 = vst.msk [vmem:[#allocation2 + $0xc8] sm:$0xff] %vm1051, %v2745
        %2858 = vst.msk [vmem:[#allocation2 + $0xd0] sm:$0xff] %vm1051, %v2746
        %2859 = vst.msk [vmem:[#allocation2 + $0xd8] sm:$0xff] %vm1051, %v2747
        %2860 = vst.msk [vmem:[#allocation2 + $0xe0] sm:$0xff] %vm1051, %v2748
        %2861 = vst.msk [vmem:[#allocation2 + $0xe8] sm:$0xff] %vm1051, %v2749
        %2862 = vst.msk [vmem:[#allocation2 + $0xf0] sm:$0xff] %vm1051, %v2750
        %2863 = vst.msk [vmem:[#allocation2 + $0xf8] sm:$0xff] %vm1051, %v2751
        %2864 = vst.msk [vmem:[#allocation2 + $0x100] sm:$0xff] %vm1051, %v2752
        %2865 = vst.msk [vmem:[#allocation2 + $0x108] sm:$0xff] %vm1051, %v2753
        %2866 = vst.msk [vmem:[#allocation2 + $0x110] sm:$0xff] %vm1051, %v2754
        %2867 = vst.msk [vmem:[#allocation2 + $0x118] sm:$0xff] %vm1051, %v2755
        %2868 = vst.msk [vmem:[#allocation2 + $0x120] sm:$0xff] %vm1051, %v2756
        %2869 = vst.msk [vmem:[#allocation2 + $0x128] sm:$0xff] %vm1051, %v2757
        %2870 = vst.msk [vmem:[#allocation2 + $0x130] sm:$0xff] %vm1051, %v2758
        %2871 = vst.msk [vmem:[#allocation2 + $0x138] sm:$0xff] %vm1051, %v2759
        %2872 = vst.msk [vmem:[#allocation2 + $0x140] sm:$0xff] %vm1051, %v2760
        %2873 = vst.msk [vmem:[#allocation2 + $0x148] sm:$0xff] %vm1051, %v2761
        %2874 = vst.msk [vmem:[#allocation2 + $0x150] sm:$0xff] %vm1051, %v2762
        %2875 = vst.msk [vmem:[#allocation2 + $0x158] sm:$0xff] %vm1051, %v2763
        %2876 = vst.msk [vmem:[#allocation2 + $0x160] sm:$0xff] %vm1051, %v2764
        %2877 = vst.msk [vmem:[#allocation2 + $0x168] sm:$0xff] %vm1051, %v2765
        %2878 = vst.msk [vmem:[#allocation2 + $0x170] sm:$0xff] %vm1051, %v2766
        %2879 = vst.msk [vmem:[#allocation2 + $0x178] sm:$0xff] %vm1051, %v2767
        %2880 = vst.msk [vmem:[#allocation2 + $0x180] sm:$0xff] %vm1051, %v2768
        %2881 = vst.msk [vmem:[#allocation2 + $0x188] sm:$0xff] %vm1051, %v2769
        %2882 = vst.msk [vmem:[#allocation2 + $0x190] sm:$0xff] %vm1051, %v2770
        %2883 = vst.msk [vmem:[#allocation2 + $0x198] sm:$0xff] %vm1051, %v2771
        %2884 = vst.msk [vmem:[#allocation2 + $0x1a0] sm:$0xff] %vm1051, %v2772
        %2885 = vst.msk [vmem:[#allocation2 + $0x1a8] sm:$0xff] %vm1051, %v2773
        %2886 = vst.msk [vmem:[#allocation2 + $0x1b0] sm:$0xff] %vm1051, %v2774
        %2887 = vst.msk [vmem:[#allocation2 + $0x1b8] sm:$0xff] %vm1051, %v2775
        %2888 = vst.msk [vmem:[#allocation2 + $0x1c0] sm:$0xff] %vm1051, %v2776
        %2889 = vst.msk [vmem:[#allocation2 + $0x1c8] sm:$0xff] %vm1051, %v2777
        %2890 = vst.msk [vmem:[#allocation2 + $0x1d0] sm:$0xff] %vm1051, %v2778
        %2891 = vst.msk [vmem:[#allocation2 + $0x1d8] sm:$0xff] %vm1051, %v2779
        %2892 = vst.msk [vmem:[#allocation2 + $0x1e0] sm:$0xff] %vm1051, %v2780
        %2893 = vst.msk [vmem:[#allocation2 + $0x1e8] sm:$0xff] %vm1051, %v2781
        %2894 = vst.msk [vmem:[#allocation2 + $0x1f0] sm:$0xff] %vm1051, %v2782
        %2895 = vst.msk [vmem:[#allocation2 + $0x1f8] sm:$0xff] %vm1051, %v2783
        %2896 = vst.msk [vmem:[#allocation2 + $0x200] sm:$0xff] %vm1051, %v2784
        %2897 = vst.msk [vmem:[#allocation2 + $0x208] sm:$0xff] %vm1051, %v2785
        %2898 = vst.msk [vmem:[#allocation2 + $0x210] sm:$0xff] %vm1051, %v2786
        %2899 = vst.msk [vmem:[#allocation2 + $0x218] sm:$0xff] %vm1051, %v2787
        %2900 = vst.msk [vmem:[#allocation2 + $0x220] sm:$0xff] %vm1051, %v2788
        %2901 = vst.msk [vmem:[#allocation2 + $0x228] sm:$0xff] %vm1051, %v2789
        %2902 = vst.msk [vmem:[#allocation2 + $0x230] sm:$0xff] %vm1051, %v2790
        %2903 = vst.msk [vmem:[#allocation2 + $0x238] sm:$0xff] %vm1051, %v2791
        %2904 = vst.msk [vmem:[#allocation2 + $0x240] sm:$0xff] %vm1051, %v2792
        %2905 = vst.msk [vmem:[#allocation2 + $0x248] sm:$0xff] %vm1051, %v2793
        %2906 = vst.msk [vmem:[#allocation2 + $0x250] sm:$0xff] %vm1051, %v2794
        %2907 = vst.msk [vmem:[#allocation2 + $0x258] sm:$0xff] %vm1051, %v2795
        %2908 = vst.msk [vmem:[#allocation2 + $0x260] sm:$0xff] %vm1051, %v2796
        %2909 = vst.msk [vmem:[#allocation2 + $0x268] sm:$0xff] %vm1051, %v2797
        %2910 = vst.msk [vmem:[#allocation2 + $0x270] sm:$0xff] %vm1051, %v2798
        %2911 = vst.msk [vmem:[#allocation2 + $0x278] sm:$0xff] %vm1051, %v2799
        %2912 = vst.msk [vmem:[#allocation2 + $0x280] sm:$0xff] %vm1051, %v2800
        %2913 = vst.msk [vmem:[#allocation2 + $0x288] sm:$0xff] %vm1051, %v2801
        %2914 = vst.msk [vmem:[#allocation2 + $0x290] sm:$0xff] %vm1051, %v2802
        %2915 = vst.msk [vmem:[#allocation2 + $0x298] sm:$0xff] %vm1051, %v2803
        %2916 = vst.msk [vmem:[#allocation2 + $0x2a0] sm:$0xff] %vm1051, %v2804
        %2917 = vst.msk [vmem:[#allocation2 + $0x2a8] sm:$0xff] %vm1051, %v2805
        %2918 = vst.msk [vmem:[#allocation2 + $0x2b0] sm:$0xff] %vm1051, %v2806
        %2919 = vst.msk [vmem:[#allocation2 + $0x2b8] sm:$0xff] %vm1051, %v2807
        %2920 = vst.msk [vmem:[#allocation2 + $0x2c0] sm:$0xff] %vm1051, %v2808
        %2921 = vst.msk [vmem:[#allocation2 + $0x2c8] sm:$0xff] %vm1051, %v2809
        %2922 = vst.msk [vmem:[#allocation2 + $0x2d0] sm:$0xff] %vm1051, %v2810
        %2923 = vst.msk [vmem:[#allocation2 + $0x2d8] sm:$0xff] %vm1051, %v2811
        %2924 = vst.msk [vmem:[#allocation2 + $0x2e0] sm:$0xff] %vm1051, %v2812
        %2925 = vst.msk [vmem:[#allocation2 + $0x2e8] sm:$0xff] %vm1051, %v2813
        %2926 = vst.msk [vmem:[#allocation2 + $0x2f0] sm:$0xff] %vm1051, %v2814
        %2927 = vst.msk [vmem:[#allocation2 + $0x2f8] sm:$0xff] %vm1051, %v2815
        %2928 = vst.msk [vmem:[#allocation2 + $0x300] sm:$0xff] %vm1051, %v2816
        %2929 = vst.msk [vmem:[#allocation2 + $0x308] sm:$0xff] %vm1051, %v2817
        %2930 = vst.msk [vmem:[#allocation2 + $0x310] sm:$0xff] %vm1051, %v2818
        %2931 = vst.msk [vmem:[#allocation2 + $0x318] sm:$0xff] %vm1051, %v2819
        %2932 = vst.msk [vmem:[#allocation2 + $0x320] sm:$0xff] %vm1051, %v2820
        %2933 = vst.msk [vmem:[#allocation2 + $0x328] sm:$0xff] %vm1051, %v2821
        %2934 = vst.msk [vmem:[#allocation2 + $0x330] sm:$0xff] %vm1051, %v2822
        %2935 = vst.msk [vmem:[#allocation2 + $0x338] sm:$0xff] %vm1051, %v2823
        %2936 = vst.msk [vmem:[#allocation2 + $0x340] sm:$0xff] %vm1051, %v2824
        %2937 = vst.msk [vmem:[#allocation2 + $0x348] sm:$0xff] %vm1051, %v2825
        %2938 = vst.msk [vmem:[#allocation2 + $0x350] sm:$0xff] %vm1051, %v2826
        %2939 = vst.msk [vmem:[#allocation2 + $0x358] sm:$0xff] %vm1051, %v2827
        %2940 = vst.msk [vmem:[#allocation2 + $0x360] sm:$0xff] %vm1051, %v2828
        %2941 = vst.msk [vmem:[#allocation2 + $0x368] sm:$0xff] %vm1051, %v2829
        %2942 = vst.msk [vmem:[#allocation2 + $0x370] sm:$0xff] %vm1051, %v2830
        %2943 = vst.msk [vmem:[#allocation2 + $0x378] sm:$0xff] %vm1051, %v2831
        %v2944 = vld [vmem:[#allocation2] sm:$0xff]
        %v2945 = vld [vmem:[#allocation2 + $0x8] sm:$0xff]
        %v2946 = vld [vmem:[#allocation2 + $0x10] sm:$0xff]
        %v2947 = vld [vmem:[#allocation2 + $0x18] sm:$0xff]
        %v2948 = vld [vmem:[#allocation2 + $0x20] sm:$0xff]
        %v2949 = vld [vmem:[#allocation2 + $0x28] sm:$0xff]
        %v2950 = vld [vmem:[#allocation2 + $0x30] sm:$0xff]
        %v2951 = vld [vmem:[#allocation2 + $0x38] sm:$0xff]
        %v2952 = vld [vmem:[#allocation2 + $0x40] sm:$0xff]
        %v2953 = vld [vmem:[#allocation2 + $0x48] sm:$0xff]
        %v2954 = vld [vmem:[#allocation2 + $0x50] sm:$0xff]
        %v2955 = vld [vmem:[#allocation2 + $0x58] sm:$0xff]
        %v2956 = vld [vmem:[#allocation2 + $0x60] sm:$0xff]
        %v2957 = vld [vmem:[#allocation2 + $0x68] sm:$0xff]
        %v2958 = vld [vmem:[#allocation2 + $0x70] sm:$0xff]
        %v2959 = vld [vmem:[#allocation2 + $0x78] sm:$0xff]
        %v2960 = vld [vmem:[#allocation2 + $0x80] sm:$0xff]
        %v2961 = vld [vmem:[#allocation2 + $0x88] sm:$0xff]
        %v2962 = vld [vmem:[#allocation2 + $0x90] sm:$0xff]
        %v2963 = vld [vmem:[#allocation2 + $0x98] sm:$0xff]
        %v2964 = vld [vmem:[#allocation2 + $0xa0] sm:$0xff]
        %v2965 = vld [vmem:[#allocation2 + $0xa8] sm:$0xff]
        %v2966 = vld [vmem:[#allocation2 + $0xb0] sm:$0xff]
        %v2967 = vld [vmem:[#allocation2 + $0xb8] sm:$0xff]
        %v2968 = vld [vmem:[#allocation2 + $0xc0] sm:$0xff]
        %v2969 = vld [vmem:[#allocation2 + $0xc8] sm:$0xff]
        %v2970 = vld [vmem:[#allocation2 + $0xd0] sm:$0xff]
        %v2971 = vld [vmem:[#allocation2 + $0xd8] sm:$0xff]
        %v2972 = vld [vmem:[#allocation2 + $0xe0] sm:$0xff]
        %v2973 = vld [vmem:[#allocation2 + $0xe8] sm:$0xff]
        %v2974 = vld [vmem:[#allocation2 + $0xf0] sm:$0xff]
        %v2975 = vld [vmem:[#allocation2 + $0xf8] sm:$0xff]
        %v2976 = vld [vmem:[#allocation2 + $0x100] sm:$0xff]
        %v2977 = vld [vmem:[#allocation2 + $0x108] sm:$0xff]
        %v2978 = vld [vmem:[#allocation2 + $0x110] sm:$0xff]
        %v2979 = vld [vmem:[#allocation2 + $0x118] sm:$0xff]
        %v2980 = vld [vmem:[#allocation2 + $0x120] sm:$0xff]
        %v2981 = vld [vmem:[#allocation2 + $0x128] sm:$0xff]
        %v2982 = vld [vmem:[#allocation2 + $0x130] sm:$0xff]
        %v2983 = vld [vmem:[#allocation2 + $0x138] sm:$0xff]
        %v2984 = vld [vmem:[#allocation2 + $0x140] sm:$0xff]
        %v2985 = vld [vmem:[#allocation2 + $0x148] sm:$0xff]
        %v2986 = vld [vmem:[#allocation2 + $0x150] sm:$0xff]
        %v2987 = vld [vmem:[#allocation2 + $0x158] sm:$0xff]
        %v2988 = vld [vmem:[#allocation2 + $0x160] sm:$0xff]
        %v2989 = vld [vmem:[#allocation2 + $0x168] sm:$0xff]
        %v2990 = vld [vmem:[#allocation2 + $0x170] sm:$0xff]
        %v2991 = vld [vmem:[#allocation2 + $0x178] sm:$0xff]
        %v2992 = vld [vmem:[#allocation2 + $0x180] sm:$0xff]
        %v2993 = vld [vmem:[#allocation2 + $0x188] sm:$0xff]
        %v2994 = vld [vmem:[#allocation2 + $0x190] sm:$0xff]
        %v2995 = vld [vmem:[#allocation2 + $0x198] sm:$0xff]
        %v2996 = vld [vmem:[#allocation2 + $0x1a0] sm:$0xff]
        %v2997 = vld [vmem:[#allocation2 + $0x1a8] sm:$0xff]
        %v2998 = vld [vmem:[#allocation2 + $0x1b0] sm:$0xff]
        %v2999 = vld [vmem:[#allocation2 + $0x1b8] sm:$0xff]
        %v3000 = vld [vmem:[#allocation2 + $0x1c0] sm:$0xff]
        %v3001 = vld [vmem:[#allocation2 + $0x1c8] sm:$0xff]
        %v3002 = vld [vmem:[#allocation2 + $0x1d0] sm:$0xff]
        %v3003 = vld [vmem:[#allocation2 + $0x1d8] sm:$0xff]
        %v3004 = vld [vmem:[#allocation2 + $0x1e0] sm:$0xff]
        %v3005 = vld [vmem:[#allocation2 + $0x1e8] sm:$0xff]
        %v3006 = vld [vmem:[#allocation2 + $0x1f0] sm:$0xff]
        %v3007 = vld [vmem:[#allocation2 + $0x1f8] sm:$0xff]
        %v3008 = vld [vmem:[#allocation2 + $0x200] sm:$0xff]
        %v3009 = vld [vmem:[#allocation2 + $0x208] sm:$0xff]
        %v3010 = vld [vmem:[#allocation2 + $0x210] sm:$0xff]
        %v3011 = vld [vmem:[#allocation2 + $0x218] sm:$0xff]
        %v3012 = vld [vmem:[#allocation2 + $0x220] sm:$0xff]
        %v3013 = vld [vmem:[#allocation2 + $0x228] sm:$0xff]
        %v3014 = vld [vmem:[#allocation2 + $0x230] sm:$0xff]
        %v3015 = vld [vmem:[#allocation2 + $0x238] sm:$0xff]
        %v3016 = vld [vmem:[#allocation2 + $0x240] sm:$0xff]
        %v3017 = vld [vmem:[#allocation2 + $0x248] sm:$0xff]
        %v3018 = vld [vmem:[#allocation2 + $0x250] sm:$0xff]
        %v3019 = vld [vmem:[#allocation2 + $0x258] sm:$0xff]
        %v3020 = vld [vmem:[#allocation2 + $0x260] sm:$0xff]
        %v3021 = vld [vmem:[#allocation2 + $0x268] sm:$0xff]
        %v3022 = vld [vmem:[#allocation2 + $0x270] sm:$0xff]
        %v3023 = vld [vmem:[#allocation2 + $0x278] sm:$0xff]
        %v3024 = vld [vmem:[#allocation2 + $0x280] sm:$0xff]
        %v3025 = vld [vmem:[#allocation2 + $0x288] sm:$0xff]
        %v3026 = vld [vmem:[#allocation2 + $0x290] sm:$0xff]
        %v3027 = vld [vmem:[#allocation2 + $0x298] sm:$0xff]
        %v3028 = vld [vmem:[#allocation2 + $0x2a0] sm:$0xff]
        %v3029 = vld [vmem:[#allocation2 + $0x2a8] sm:$0xff]
        %v3030 = vld [vmem:[#allocation2 + $0x2b0] sm:$0xff]
        %v3031 = vld [vmem:[#allocation2 + $0x2b8] sm:$0xff]
        %v3032 = vld [vmem:[#allocation2 + $0x2c0] sm:$0xff]
        %v3033 = vld [vmem:[#allocation2 + $0x2c8] sm:$0xff]
        %v3034 = vld [vmem:[#allocation2 + $0x2d0] sm:$0xff]
        %v3035 = vld [vmem:[#allocation2 + $0x2d8] sm:$0xff]
        %v3036 = vld [vmem:[#allocation2 + $0x2e0] sm:$0xff]
        %v3037 = vld [vmem:[#allocation2 + $0x2e8] sm:$0xff]
        %v3038 = vld [vmem:[#allocation2 + $0x2f0] sm:$0xff]
        %v3039 = vld [vmem:[#allocation2 + $0x2f8] sm:$0xff]
        %v3040 = vld [vmem:[#allocation2 + $0x300] sm:$0xff]
        %v3041 = vld [vmem:[#allocation2 + $0x308] sm:$0xff]
        %v3042 = vld [vmem:[#allocation2 + $0x310] sm:$0xff]
        %v3043 = vld [vmem:[#allocation2 + $0x318] sm:$0xff]
        %v3044 = vld [vmem:[#allocation2 + $0x320] sm:$0xff]
        %v3045 = vld [vmem:[#allocation2 + $0x328] sm:$0xff]
        %v3046 = vld [vmem:[#allocation2 + $0x330] sm:$0xff]
        %v3047 = vld [vmem:[#allocation2 + $0x338] sm:$0xff]
        %v3048 = vld [vmem:[#allocation2 + $0x340] sm:$0xff]
        %v3049 = vld [vmem:[#allocation2 + $0x348] sm:$0xff]
        %v3050 = vld [vmem:[#allocation2 + $0x350] sm:$0xff]
        %v3051 = vld [vmem:[#allocation2 + $0x358] sm:$0xff]
        %v3052 = vld [vmem:[#allocation2 + $0x360] sm:$0xff]
        %v3053 = vld [vmem:[#allocation2 + $0x368] sm:$0xff]
        %v3054 = vld [vmem:[#allocation2 + $0x370] sm:$0xff]
        %v3055 = vld [vmem:[#allocation2 + $0x378] sm:$0xff]
        %v3056 = vld [vmem:[#allocation2 + $0x380] sm:$0xff]
        %v3057 = vld [vmem:[#allocation2 + $0x388] sm:$0xff]
        %v3058 = vld [vmem:[#allocation2 + $0x390] sm:$0xff]
        %v3059 = vld [vmem:[#allocation2 + $0x398] sm:$0xff]
        %v3060 = vld [vmem:[#allocation2 + $0x3a0] sm:$0xff]
        %v3061 = vld [vmem:[#allocation2 + $0x3a8] sm:$0xff]
        %v3062 = vld [vmem:[#allocation2 + $0x3b0] sm:$0xff]
        %v3063 = vld [vmem:[#allocation2 + $0x3b8] sm:$0xff]
        %v3064 = vld [vmem:[#allocation2 + $0x3c0] sm:$0xff]
        %v3065 = vld [vmem:[#allocation2 + $0x3c8] sm:$0xff]
        %v3066 = vld [vmem:[#allocation2 + $0x3d0] sm:$0xff]
        %v3067 = vld [vmem:[#allocation2 + $0x3d8] sm:$0xff]
        %v3068 = vld [vmem:[#allocation2 + $0x3e0] sm:$0xff]
        %v3069 = vld [vmem:[#allocation2 + $0x3e8] sm:$0xff]
        %v3070 = vld [vmem:[#allocation2 + $0x3f0] sm:$0xff]
        %v3071 = vld [vmem:[#allocation2 + $0x3f8] sm:$0xff]
        %v3072 = vld [vmem:[#allocation6] sm:$0x1]
        %v3074 = vlaneseq
        %v3075 = vshrl.u32 %v3074, 7
        %v3076 = vsub.s32 0, %v3075
        %v3077 = vrot.slane %v3072, %v3076
        %v3079 = vadd.f32 %v2944, %v3077
        %v3080 = vadd.f32 %v2945, %v3077
        %v3081 = vadd.f32 %v2946, %v3077
        %v3082 = vadd.f32 %v2947, %v3077
        %v3083 = vadd.f32 %v2948, %v3077
        %v3084 = vadd.f32 %v2949, %v3077
        %v3085 = vadd.f32 %v2950, %v3077
        %v3086 = vadd.f32 %v2951, %v3077
        %v3087 = vadd.f32 %v2952, %v3077
        %v3088 = vadd.f32 %v2953, %v3077
        %v3089 = vadd.f32 %v2954, %v3077
        %v3090 = vadd.f32 %v2955, %v3077
        %v3091 = vadd.f32 %v2956, %v3077
        %v3092 = vadd.f32 %v2957, %v3077
        %v3093 = vadd.f32 %v2958, %v3077
        %v3094 = vadd.f32 %v2959, %v3077
        %v3095 = vadd.f32 %v2960, %v3077
        %v3096 = vadd.f32 %v2961, %v3077
        %v3097 = vadd.f32 %v2962, %v3077
        %v3098 = vadd.f32 %v2963, %v3077
        %v3099 = vadd.f32 %v2964, %v3077
        %v3100 = vadd.f32 %v2965, %v3077
        %v3101 = vadd.f32 %v2966, %v3077
        %v3102 = vadd.f32 %v2967, %v3077
        %v3103 = vadd.f32 %v2968, %v3077
        %v3104 = vadd.f32 %v2969, %v3077
        %v3105 = vadd.f32 %v2970, %v3077
        %v3106 = vadd.f32 %v2971, %v3077
        %v3107 = vadd.f32 %v2972, %v3077
        %v3108 = vadd.f32 %v2973, %v3077
        %v3109 = vadd.f32 %v2974, %v3077
        %v3110 = vadd.f32 %v2975, %v3077
        %v3111 = vadd.f32 %v2976, %v3077
        %v3112 = vadd.f32 %v2977, %v3077
        %v3113 = vadd.f32 %v2978, %v3077
        %v3114 = vadd.f32 %v2979, %v3077
        %v3115 = vadd.f32 %v2980, %v3077
        %v3116 = vadd.f32 %v2981, %v3077
        %v3117 = vadd.f32 %v2982, %v3077
        %v3118 = vadd.f32 %v2983, %v3077
        %v3119 = vadd.f32 %v2984, %v3077
        %v3120 = vadd.f32 %v2985, %v3077
        %v3121 = vadd.f32 %v2986, %v3077
        %v3122 = vadd.f32 %v2987, %v3077
        %v3123 = vadd.f32 %v2988, %v3077
        %v3124 = vadd.f32 %v2989, %v3077
        %v3125 = vadd.f32 %v2990, %v3077
        %v3126 = vadd.f32 %v2991, %v3077
        %v3127 = vadd.f32 %v2992, %v3077
        %v3128 = vadd.f32 %v2993, %v3077
        %v3129 = vadd.f32 %v2994, %v3077
        %v3130 = vadd.f32 %v2995, %v3077
        %v3131 = vadd.f32 %v2996, %v3077
        %v3132 = vadd.f32 %v2997, %v3077
        %v3133 = vadd.f32 %v2998, %v3077
        %v3134 = vadd.f32 %v2999, %v3077
        %v3135 = vadd.f32 %v3000, %v3077
        %v3136 = vadd.f32 %v3001, %v3077
        %v3137 = vadd.f32 %v3002, %v3077
        %v3138 = vadd.f32 %v3003, %v3077
        %v3139 = vadd.f32 %v3004, %v3077
        %v3140 = vadd.f32 %v3005, %v3077
        %v3141 = vadd.f32 %v3006, %v3077
        %v3142 = vadd.f32 %v3007, %v3077
        %v3143 = vadd.f32 %v3008, %v3077
        %v3144 = vadd.f32 %v3009, %v3077
        %v3145 = vadd.f32 %v3010, %v3077
        %v3146 = vadd.f32 %v3011, %v3077
        %v3147 = vadd.f32 %v3012, %v3077
        %v3148 = vadd.f32 %v3013, %v3077
        %v3149 = vadd.f32 %v3014, %v3077
        %v3150 = vadd.f32 %v3015, %v3077
        %v3151 = vadd.f32 %v3016, %v3077
        %v3152 = vadd.f32 %v3017, %v3077
        %v3153 = vadd.f32 %v3018, %v3077
        %v3154 = vadd.f32 %v3019, %v3077
        %v3155 = vadd.f32 %v3020, %v3077
        %v3156 = vadd.f32 %v3021, %v3077
        %v3157 = vadd.f32 %v3022, %v3077
        %v3158 = vadd.f32 %v3023, %v3077
        %v3159 = vadd.f32 %v3024, %v3077
        %v3160 = vadd.f32 %v3025, %v3077
        %v3161 = vadd.f32 %v3026, %v3077
        %v3162 = vadd.f32 %v3027, %v3077
        %v3163 = vadd.f32 %v3028, %v3077
        %v3164 = vadd.f32 %v3029, %v3077
        %v3165 = vadd.f32 %v3030, %v3077
        %v3166 = vadd.f32 %v3031, %v3077
        %v3167 = vadd.f32 %v3032, %v3077
        %v3168 = vadd.f32 %v3033, %v3077
        %v3169 = vadd.f32 %v3034, %v3077
        %v3170 = vadd.f32 %v3035, %v3077
        %v3171 = vadd.f32 %v3036, %v3077
        %v3172 = vadd.f32 %v3037, %v3077
        %v3173 = vadd.f32 %v3038, %v3077
        %v3174 = vadd.f32 %v3039, %v3077
        %v3175 = vadd.f32 %v3040, %v3077
        %v3176 = vadd.f32 %v3041, %v3077
        %v3177 = vadd.f32 %v3042, %v3077
        %v3178 = vadd.f32 %v3043, %v3077
        %v3179 = vadd.f32 %v3044, %v3077
        %v3180 = vadd.f32 %v3045, %v3077
        %v3181 = vadd.f32 %v3046, %v3077
        %v3182 = vadd.f32 %v3047, %v3077
        %v3183 = vadd.f32 %v3048, %v3077
        %v3184 = vadd.f32 %v3049, %v3077
        %v3185 = vadd.f32 %v3050, %v3077
        %v3186 = vadd.f32 %v3051, %v3077
        %v3187 = vadd.f32 %v3052, %v3077
        %v3188 = vadd.f32 %v3053, %v3077
        %v3189 = vadd.f32 %v3054, %v3077
        %v3190 = vadd.f32 %v3055, %v3077
        %v3191 = vadd.f32 %v3056, %v3077
        %v3192 = vadd.f32 %v3057, %v3077
        %v3193 = vadd.f32 %v3058, %v3077
        %v3194 = vadd.f32 %v3059, %v3077
        %v3195 = vadd.f32 %v3060, %v3077
        %v3196 = vadd.f32 %v3061, %v3077
        %v3197 = vadd.f32 %v3062, %v3077
        %v3198 = vadd.f32 %v3063, %v3077
        %v3199 = vadd.f32 %v3064, %v3077
        %v3200 = vadd.f32 %v3065, %v3077
        %v3201 = vadd.f32 %v3066, %v3077
        %v3202 = vadd.f32 %v3067, %v3077
        %v3203 = vadd.f32 %v3068, %v3077
        %v3204 = vadd.f32 %v3069, %v3077
        %v3205 = vadd.f32 %v3070, %v3077
        %v3206 = vadd.f32 %v3071, %v3077
        %v3207 = vmax.f32 %v3079, 0.0
        %v3208 = vmax.f32 %v3080, 0.0
        %v3209 = vmax.f32 %v3081, 0.0
        %v3210 = vmax.f32 %v3082, 0.0
        %v3211 = vmax.f32 %v3083, 0.0
        %v3212 = vmax.f32 %v3084, 0.0
        %v3213 = vmax.f32 %v3085, 0.0
        %v3214 = vmax.f32 %v3086, 0.0
        %v3215 = vmax.f32 %v3087, 0.0
        %v3216 = vmax.f32 %v3088, 0.0
        %v3217 = vmax.f32 %v3089, 0.0
        %v3218 = vmax.f32 %v3090, 0.0
        %v3219 = vmax.f32 %v3091, 0.0
        %v3220 = vmax.f32 %v3092, 0.0
        %v3221 = vmax.f32 %v3093, 0.0
        %v3222 = vmax.f32 %v3094, 0.0
        %v3223 = vmax.f32 %v3095, 0.0
        %v3224 = vmax.f32 %v3096, 0.0
        %v3225 = vmax.f32 %v3097, 0.0
        %v3226 = vmax.f32 %v3098, 0.0
        %v3227 = vmax.f32 %v3099, 0.0
        %v3228 = vmax.f32 %v3100, 0.0
        %v3229 = vmax.f32 %v3101, 0.0
        %v3230 = vmax.f32 %v3102, 0.0
        %v3231 = vmax.f32 %v3103, 0.0
        %v3232 = vmax.f32 %v3104, 0.0
        %v3233 = vmax.f32 %v3105, 0.0
        %v3234 = vmax.f32 %v3106, 0.0
        %v3235 = vmax.f32 %v3107, 0.0
        %v3236 = vmax.f32 %v3108, 0.0
        %v3237 = vmax.f32 %v3109, 0.0
        %v3238 = vmax.f32 %v3110, 0.0
        %v3239 = vmax.f32 %v3111, 0.0
        %v3240 = vmax.f32 %v3112, 0.0
        %v3241 = vmax.f32 %v3113, 0.0
        %v3242 = vmax.f32 %v3114, 0.0
        %v3243 = vmax.f32 %v3115, 0.0
        %v3244 = vmax.f32 %v3116, 0.0
        %v3245 = vmax.f32 %v3117, 0.0
        %v3246 = vmax.f32 %v3118, 0.0
        %v3247 = vmax.f32 %v3119, 0.0
        %v3248 = vmax.f32 %v3120, 0.0
        %v3249 = vmax.f32 %v3121, 0.0
        %v3250 = vmax.f32 %v3122, 0.0
        %v3251 = vmax.f32 %v3123, 0.0
        %v3252 = vmax.f32 %v3124, 0.0
        %v3253 = vmax.f32 %v3125, 0.0
        %v3254 = vmax.f32 %v3126, 0.0
        %v3255 = vmax.f32 %v3127, 0.0
        %v3256 = vmax.f32 %v3128, 0.0
        %v3257 = vmax.f32 %v3129, 0.0
        %v3258 = vmax.f32 %v3130, 0.0
        %v3259 = vmax.f32 %v3131, 0.0
        %v3260 = vmax.f32 %v3132, 0.0
        %v3261 = vmax.f32 %v3133, 0.0
        %v3262 = vmax.f32 %v3134, 0.0
        %v3263 = vmax.f32 %v3135, 0.0
        %v3264 = vmax.f32 %v3136, 0.0
        %v3265 = vmax.f32 %v3137, 0.0
        %v3266 = vmax.f32 %v3138, 0.0
        %v3267 = vmax.f32 %v3139, 0.0
        %v3268 = vmax.f32 %v3140, 0.0
        %v3269 = vmax.f32 %v3141, 0.0
        %v3270 = vmax.f32 %v3142, 0.0
        %v3271 = vmax.f32 %v3143, 0.0
        %v3272 = vmax.f32 %v3144, 0.0
        %v3273 = vmax.f32 %v3145, 0.0
        %v3274 = vmax.f32 %v3146, 0.0
        %v3275 = vmax.f32 %v3147, 0.0
        %v3276 = vmax.f32 %v3148, 0.0
        %v3277 = vmax.f32 %v3149, 0.0
        %v3278 = vmax.f32 %v3150, 0.0
        %v3279 = vmax.f32 %v3151, 0.0
        %v3280 = vmax.f32 %v3152, 0.0
        %v3281 = vmax.f32 %v3153, 0.0
        %v3282 = vmax.f32 %v3154, 0.0
        %v3283 = vmax.f32 %v3155, 0.0
        %v3284 = vmax.f32 %v3156, 0.0
        %v3285 = vmax.f32 %v3157, 0.0
        %v3286 = vmax.f32 %v3158, 0.0
        %v3287 = vmax.f32 %v3159, 0.0
        %v3288 = vmax.f32 %v3160, 0.0
        %v3289 = vmax.f32 %v3161, 0.0
        %v3290 = vmax.f32 %v3162, 0.0
        %v3291 = vmax.f32 %v3163, 0.0
        %v3292 = vmax.f32 %v3164, 0.0
        %v3293 = vmax.f32 %v3165, 0.0
        %v3294 = vmax.f32 %v3166, 0.0
        %v3295 = vmax.f32 %v3167, 0.0
        %v3296 = vmax.f32 %v3168, 0.0
        %v3297 = vmax.f32 %v3169, 0.0
        %v3298 = vmax.f32 %v3170, 0.0
        %v3299 = vmax.f32 %v3171, 0.0
        %v3300 = vmax.f32 %v3172, 0.0
        %v3301 = vmax.f32 %v3173, 0.0
        %v3302 = vmax.f32 %v3174, 0.0
        %v3303 = vmax.f32 %v3175, 0.0
        %v3304 = vmax.f32 %v3176, 0.0
        %v3305 = vmax.f32 %v3177, 0.0
        %v3306 = vmax.f32 %v3178, 0.0
        %v3307 = vmax.f32 %v3179, 0.0
        %v3308 = vmax.f32 %v3180, 0.0
        %v3309 = vmax.f32 %v3181, 0.0
        %v3310 = vmax.f32 %v3182, 0.0
        %v3311 = vmax.f32 %v3183, 0.0
        %v3312 = vmax.f32 %v3184, 0.0
        %v3313 = vmax.f32 %v3185, 0.0
        %v3314 = vmax.f32 %v3186, 0.0
        %v3315 = vmax.f32 %v3187, 0.0
        %v3316 = vmax.f32 %v3188, 0.0
        %v3317 = vmax.f32 %v3189, 0.0
        %v3318 = vmax.f32 %v3190, 0.0
        %v3319 = vmax.f32 %v3191, 0.0
        %v3320 = vmax.f32 %v3192, 0.0
        %v3321 = vmax.f32 %v3193, 0.0
        %v3322 = vmax.f32 %v3194, 0.0
        %v3323 = vmax.f32 %v3195, 0.0
        %v3324 = vmax.f32 %v3196, 0.0
        %v3325 = vmax.f32 %v3197, 0.0
        %v3326 = vmax.f32 %v3198, 0.0
        %v3327 = vmax.f32 %v3199, 0.0
        %v3328 = vmax.f32 %v3200, 0.0
        %v3329 = vmax.f32 %v3201, 0.0
        %v3330 = vmax.f32 %v3202, 0.0
        %v3331 = vmax.f32 %v3203, 0.0
        %v3332 = vmax.f32 %v3204, 0.0
        %v3333 = vmax.f32 %v3205, 0.0
        %v3334 = vmax.f32 %v3206, 0.0
        %v3335 = vpack.c.bf16 %v3208, %v3207
        %v3336 = vpack.c.bf16 %v3210, %v3209
        %v3337 = vpack.c.bf16 %v3212, %v3211
        %v3338 = vpack.c.bf16 %v3214, %v3213
        %v3339 = vpack.c.bf16 %v3216, %v3215
        %v3340 = vpack.c.bf16 %v3218, %v3217
        %v3341 = vpack.c.bf16 %v3220, %v3219
        %v3342 = vpack.c.bf16 %v3222, %v3221
        %v3343 = vpack.c.bf16 %v3224, %v3223
        %v3344 = vpack.c.bf16 %v3226, %v3225
        %v3345 = vpack.c.bf16 %v3228, %v3227
        %v3346 = vpack.c.bf16 %v3230, %v3229
        %v3347 = vpack.c.bf16 %v3232, %v3231
        %v3348 = vpack.c.bf16 %v3234, %v3233
        %v3349 = vpack.c.bf16 %v3236, %v3235
        %v3350 = vpack.c.bf16 %v3238, %v3237
        %v3351 = vpack.c.bf16 %v3240, %v3239
        %v3352 = vpack.c.bf16 %v3242, %v3241
        %v3353 = vpack.c.bf16 %v3244, %v3243
        %v3354 = vpack.c.bf16 %v3246, %v3245
        %v3355 = vpack.c.bf16 %v3248, %v3247
        %v3356 = vpack.c.bf16 %v3250, %v3249
        %v3357 = vpack.c.bf16 %v3252, %v3251
        %v3358 = vpack.c.bf16 %v3254, %v3253
        %v3359 = vpack.c.bf16 %v3256, %v3255
        %v3360 = vpack.c.bf16 %v3258, %v3257
        %v3361 = vpack.c.bf16 %v3260, %v3259
        %v3362 = vpack.c.bf16 %v3262, %v3261
        %v3363 = vpack.c.bf16 %v3264, %v3263
        %v3364 = vpack.c.bf16 %v3266, %v3265
        %v3365 = vpack.c.bf16 %v3268, %v3267
        %v3366 = vpack.c.bf16 %v3270, %v3269
        %v3367 = vpack.c.bf16 %v3272, %v3271
        %v3368 = vpack.c.bf16 %v3274, %v3273
        %v3369 = vpack.c.bf16 %v3276, %v3275
        %v3370 = vpack.c.bf16 %v3278, %v3277
        %v3371 = vpack.c.bf16 %v3280, %v3279
        %v3372 = vpack.c.bf16 %v3282, %v3281
        %v3373 = vpack.c.bf16 %v3284, %v3283
        %v3374 = vpack.c.bf16 %v3286, %v3285
        %v3375 = vpack.c.bf16 %v3288, %v3287
        %v3376 = vpack.c.bf16 %v3290, %v3289
        %v3377 = vpack.c.bf16 %v3292, %v3291
        %v3378 = vpack.c.bf16 %v3294, %v3293
        %v3379 = vpack.c.bf16 %v3296, %v3295
        %v3380 = vpack.c.bf16 %v3298, %v3297
        %v3381 = vpack.c.bf16 %v3300, %v3299
        %v3382 = vpack.c.bf16 %v3302, %v3301
        %v3383 = vpack.c.bf16 %v3304, %v3303
        %v3384 = vpack.c.bf16 %v3306, %v3305
        %v3385 = vpack.c.bf16 %v3308, %v3307
        %v3386 = vpack.c.bf16 %v3310, %v3309
        %v3387 = vpack.c.bf16 %v3312, %v3311
        %v3388 = vpack.c.bf16 %v3314, %v3313
        %v3389 = vpack.c.bf16 %v3316, %v3315
        %v3390 = vpack.c.bf16 %v3318, %v3317
        %v3391 = vpack.c.bf16 %v3320, %v3319
        %v3392 = vpack.c.bf16 %v3322, %v3321
        %v3393 = vpack.c.bf16 %v3324, %v3323
        %v3394 = vpack.c.bf16 %v3326, %v3325
        %v3395 = vpack.c.bf16 %v3328, %v3327
        %v3396 = vpack.c.bf16 %v3330, %v3329
        %v3397 = vpack.c.bf16 %v3332, %v3331
        %v3398 = vpack.c.bf16 %v3334, %v3333
        %v3463 = vunpack.c.l.b16 %v3335
        %v3464 = vunpack.c.h.b16 %v3335
        %v3465 = vunpack.c.l.b16 %v3336
        %v3466 = vunpack.c.h.b16 %v3336
        %v3467 = vunpack.c.l.b16 %v3337
        %v3468 = vunpack.c.h.b16 %v3337
        %v3469 = vunpack.c.l.b16 %v3338
        %v3470 = vunpack.c.h.b16 %v3338
        %v3471 = vunpack.c.l.b16 %v3339
        %v3472 = vunpack.c.h.b16 %v3339
        %v3473 = vunpack.c.l.b16 %v3340
        %v3474 = vunpack.c.h.b16 %v3340
        %v3475 = vunpack.c.l.b16 %v3341
        %v3476 = vunpack.c.h.b16 %v3341
        %v3477 = vunpack.c.l.b16 %v3342
        %v3478 = vunpack.c.h.b16 %v3342
        %v3479 = vunpack.c.l.b16 %v3343
        %v3480 = vunpack.c.h.b16 %v3343
        %v3481 = vunpack.c.l.b16 %v3344
        %v3482 = vunpack.c.h.b16 %v3344
        %v3483 = vunpack.c.l.b16 %v3345
        %v3484 = vunpack.c.h.b16 %v3345
        %v3485 = vunpack.c.l.b16 %v3346
        %v3486 = vunpack.c.h.b16 %v3346
        %v3487 = vunpack.c.l.b16 %v3347
        %v3488 = vunpack.c.h.b16 %v3347
        %v3489 = vunpack.c.l.b16 %v3348
        %v3490 = vunpack.c.h.b16 %v3348
        %v3491 = vunpack.c.l.b16 %v3349
        %v3492 = vunpack.c.h.b16 %v3349
        %v3493 = vunpack.c.l.b16 %v3350
        %v3494 = vunpack.c.h.b16 %v3350
        %v3495 = vunpack.c.l.b16 %v3351
        %v3496 = vunpack.c.h.b16 %v3351
        %v3497 = vunpack.c.l.b16 %v3352
        %v3498 = vunpack.c.h.b16 %v3352
        %v3499 = vunpack.c.l.b16 %v3353
        %v3500 = vunpack.c.h.b16 %v3353
        %v3501 = vunpack.c.l.b16 %v3354
        %v3502 = vunpack.c.h.b16 %v3354
        %v3503 = vunpack.c.l.b16 %v3355
        %v3504 = vunpack.c.h.b16 %v3355
        %v3505 = vunpack.c.l.b16 %v3356
        %v3506 = vunpack.c.h.b16 %v3356
        %v3507 = vunpack.c.l.b16 %v3357
        %v3508 = vunpack.c.h.b16 %v3357
        %v3509 = vunpack.c.l.b16 %v3358
        %v3510 = vunpack.c.h.b16 %v3358
        %v3511 = vunpack.c.l.b16 %v3359
        %v3512 = vunpack.c.h.b16 %v3359
        %v3513 = vunpack.c.l.b16 %v3360
        %v3514 = vunpack.c.h.b16 %v3360
        %v3515 = vunpack.c.l.b16 %v3361
        %v3516 = vunpack.c.h.b16 %v3361
        %v3517 = vunpack.c.l.b16 %v3362
        %v3518 = vunpack.c.h.b16 %v3362
        %v3519 = vunpack.c.l.b16 %v3363
        %v3520 = vunpack.c.h.b16 %v3363
        %v3521 = vunpack.c.l.b16 %v3364
        %v3522 = vunpack.c.h.b16 %v3364
        %v3523 = vunpack.c.l.b16 %v3365
        %v3524 = vunpack.c.h.b16 %v3365
        %v3525 = vunpack.c.l.b16 %v3366
        %v3526 = vunpack.c.h.b16 %v3366
        %v3527 = vunpack.c.l.b16 %v3367
        %v3528 = vunpack.c.h.b16 %v3367
        %v3529 = vunpack.c.l.b16 %v3368
        %v3530 = vunpack.c.h.b16 %v3368
        %v3531 = vunpack.c.l.b16 %v3369
        %v3532 = vunpack.c.h.b16 %v3369
        %v3533 = vunpack.c.l.b16 %v3370
        %v3534 = vunpack.c.h.b16 %v3370
        %v3535 = vunpack.c.l.b16 %v3371
        %v3536 = vunpack.c.h.b16 %v3371
        %v3537 = vunpack.c.l.b16 %v3372
        %v3538 = vunpack.c.h.b16 %v3372
        %v3539 = vunpack.c.l.b16 %v3373
        %v3540 = vunpack.c.h.b16 %v3373
        %v3541 = vunpack.c.l.b16 %v3374
        %v3542 = vunpack.c.h.b16 %v3374
        %v3543 = vunpack.c.l.b16 %v3375
        %v3544 = vunpack.c.h.b16 %v3375
        %v3545 = vunpack.c.l.b16 %v3376
        %v3546 = vunpack.c.h.b16 %v3376
        %v3547 = vunpack.c.l.b16 %v3377
        %v3548 = vunpack.c.h.b16 %v3377
        %v3549 = vunpack.c.l.b16 %v3378
        %v3550 = vunpack.c.h.b16 %v3378
        %v3551 = vunpack.c.l.b16 %v3379
        %v3552 = vunpack.c.h.b16 %v3379
        %v3553 = vunpack.c.l.b16 %v3380
        %v3554 = vunpack.c.h.b16 %v3380
        %v3555 = vunpack.c.l.b16 %v3381
        %v3556 = vunpack.c.h.b16 %v3381
        %v3557 = vunpack.c.l.b16 %v3382
        %v3558 = vunpack.c.h.b16 %v3382
        %v3559 = vunpack.c.l.b16 %v3383
        %v3560 = vunpack.c.h.b16 %v3383
        %v3561 = vunpack.c.l.b16 %v3384
        %v3562 = vunpack.c.h.b16 %v3384
        %v3563 = vunpack.c.l.b16 %v3385
        %v3564 = vunpack.c.h.b16 %v3385
        %v3565 = vunpack.c.l.b16 %v3386
        %v3566 = vunpack.c.h.b16 %v3386
        %v3567 = vunpack.c.l.b16 %v3387
        %v3568 = vunpack.c.h.b16 %v3387
        %v3569 = vunpack.c.l.b16 %v3388
        %v3570 = vunpack.c.h.b16 %v3388
        %v3571 = vunpack.c.l.b16 %v3389
        %v3572 = vunpack.c.h.b16 %v3389
        %v3573 = vunpack.c.l.b16 %v3390
        %v3574 = vunpack.c.h.b16 %v3390
        %v3575 = vunpack.c.l.b16 %v3391
        %v3576 = vunpack.c.h.b16 %v3391
        %v3577 = vunpack.c.l.b16 %v3392
        %v3578 = vunpack.c.h.b16 %v3392
        %v3579 = vunpack.c.l.b16 %v3393
        %v3580 = vunpack.c.h.b16 %v3393
        %v3581 = vunpack.c.l.b16 %v3394
        %v3582 = vunpack.c.h.b16 %v3394
        %v3583 = vunpack.c.l.b16 %v3395
        %v3584 = vunpack.c.h.b16 %v3395
        %v3585 = vunpack.c.l.b16 %v3396
        %v3586 = vunpack.c.h.b16 %v3396
        %v3587 = vunpack.c.l.b16 %v3397
        %v3588 = vunpack.c.h.b16 %v3397
        %v3589 = vunpack.c.l.b16 %v3398
        %v3590 = vunpack.c.h.b16 %v3398
        %v3591 = vpack.c.b16 %v3463, %v3463
        %v3592 = vpack.c.b16 %v3464, %v3464
        %v3593 = vpack.c.b16 %v3465, %v3465
        %v3594 = vpack.c.b16 %v3466, %v3466
        %v3595 = vpack.c.b16 %v3467, %v3467
        %v3596 = vpack.c.b16 %v3468, %v3468
        %v3597 = vpack.c.b16 %v3469, %v3469
        %v3598 = vpack.c.b16 %v3470, %v3470
        %v3599 = vpack.c.b16 %v3471, %v3471
        %v3600 = vpack.c.b16 %v3472, %v3472
        %v3601 = vpack.c.b16 %v3473, %v3473
        %v3602 = vpack.c.b16 %v3474, %v3474
        %v3603 = vpack.c.b16 %v3475, %v3475
        %v3604 = vpack.c.b16 %v3476, %v3476
        %v3605 = vpack.c.b16 %v3477, %v3477
        %v3606 = vpack.c.b16 %v3478, %v3478
        %v3607 = vpack.c.b16 %v3479, %v3479
        %v3608 = vpack.c.b16 %v3480, %v3480
        %v3609 = vpack.c.b16 %v3481, %v3481
        %v3610 = vpack.c.b16 %v3482, %v3482
        %v3611 = vpack.c.b16 %v3483, %v3483
        %v3612 = vpack.c.b16 %v3484, %v3484
        %v3613 = vpack.c.b16 %v3485, %v3485
        %v3614 = vpack.c.b16 %v3486, %v3486
        %v3615 = vpack.c.b16 %v3487, %v3487
        %v3616 = vpack.c.b16 %v3488, %v3488
        %v3617 = vpack.c.b16 %v3489, %v3489
        %v3618 = vpack.c.b16 %v3490, %v3490
        %v3619 = vpack.c.b16 %v3491, %v3491
        %v3620 = vpack.c.b16 %v3492, %v3492
        %v3621 = vpack.c.b16 %v3493, %v3493
        %v3622 = vpack.c.b16 %v3494, %v3494
        %v3623 = vpack.c.b16 %v3495, %v3495
        %v3624 = vpack.c.b16 %v3496, %v3496
        %v3625 = vpack.c.b16 %v3497, %v3497
        %v3626 = vpack.c.b16 %v3498, %v3498
        %v3627 = vpack.c.b16 %v3499, %v3499
        %v3628 = vpack.c.b16 %v3500, %v3500
        %v3629 = vpack.c.b16 %v3501, %v3501
        %v3630 = vpack.c.b16 %v3502, %v3502
        %v3631 = vpack.c.b16 %v3503, %v3503
        %v3632 = vpack.c.b16 %v3504, %v3504
        %v3633 = vpack.c.b16 %v3505, %v3505
        %v3634 = vpack.c.b16 %v3506, %v3506
        %v3635 = vpack.c.b16 %v3507, %v3507
        %v3636 = vpack.c.b16 %v3508, %v3508
        %v3637 = vpack.c.b16 %v3509, %v3509
        %v3638 = vpack.c.b16 %v3510, %v3510
        %v3639 = vpack.c.b16 %v3511, %v3511
        %v3640 = vpack.c.b16 %v3512, %v3512
        %v3641 = vpack.c.b16 %v3513, %v3513
        %v3642 = vpack.c.b16 %v3514, %v3514
        %v3643 = vpack.c.b16 %v3515, %v3515
        %v3644 = vpack.c.b16 %v3516, %v3516
        %v3645 = vpack.c.b16 %v3517, %v3517
        %v3646 = vpack.c.b16 %v3518, %v3518
        %v3647 = vpack.c.b16 %v3519, %v3519
        %v3648 = vpack.c.b16 %v3520, %v3520
        %v3649 = vpack.c.b16 %v3521, %v3521
        %v3650 = vpack.c.b16 %v3522, %v3522
        %v3651 = vpack.c.b16 %v3523, %v3523
        %v3652 = vpack.c.b16 %v3524, %v3524
        %v3653 = vpack.c.b16 %v3525, %v3525
        %v3654 = vpack.c.b16 %v3526, %v3526
        %v3655 = vpack.c.b16 %v3527, %v3527
        %v3656 = vpack.c.b16 %v3528, %v3528
        %v3657 = vpack.c.b16 %v3529, %v3529
        %v3658 = vpack.c.b16 %v3530, %v3530
        %v3659 = vpack.c.b16 %v3531, %v3531
        %v3660 = vpack.c.b16 %v3532, %v3532
        %v3661 = vpack.c.b16 %v3533, %v3533
        %v3662 = vpack.c.b16 %v3534, %v3534
        %v3663 = vpack.c.b16 %v3535, %v3535
        %v3664 = vpack.c.b16 %v3536, %v3536
        %v3665 = vpack.c.b16 %v3537, %v3537
        %v3666 = vpack.c.b16 %v3538, %v3538
        %v3667 = vpack.c.b16 %v3539, %v3539
        %v3668 = vpack.c.b16 %v3540, %v3540
        %v3669 = vpack.c.b16 %v3541, %v3541
        %v3670 = vpack.c.b16 %v3542, %v3542
        %v3671 = vpack.c.b16 %v3543, %v3543
        %v3672 = vpack.c.b16 %v3544, %v3544
        %v3673 = vpack.c.b16 %v3545, %v3545
        %v3674 = vpack.c.b16 %v3546, %v3546
        %v3675 = vpack.c.b16 %v3547, %v3547
        %v3676 = vpack.c.b16 %v3548, %v3548
        %v3677 = vpack.c.b16 %v3549, %v3549
        %v3678 = vpack.c.b16 %v3550, %v3550
        %v3679 = vpack.c.b16 %v3551, %v3551
        %v3680 = vpack.c.b16 %v3552, %v3552
        %v3681 = vpack.c.b16 %v3553, %v3553
        %v3682 = vpack.c.b16 %v3554, %v3554
        %v3683 = vpack.c.b16 %v3555, %v3555
        %v3684 = vpack.c.b16 %v3556, %v3556
        %v3685 = vpack.c.b16 %v3557, %v3557
        %v3686 = vpack.c.b16 %v3558, %v3558
        %v3687 = vpack.c.b16 %v3559, %v3559
        %v3688 = vpack.c.b16 %v3560, %v3560
        %v3689 = vpack.c.b16 %v3561, %v3561
        %v3690 = vpack.c.b16 %v3562, %v3562
        %v3691 = vpack.c.b16 %v3563, %v3563
        %v3692 = vpack.c.b16 %v3564, %v3564
        %v3693 = vpack.c.b16 %v3565, %v3565
        %v3694 = vpack.c.b16 %v3566, %v3566
        %v3695 = vpack.c.b16 %v3567, %v3567
        %v3696 = vpack.c.b16 %v3568, %v3568
        %v3697 = vpack.c.b16 %v3569, %v3569
        %v3698 = vpack.c.b16 %v3570, %v3570
        %v3699 = vpack.c.b16 %v3571, %v3571
        %v3700 = vpack.c.b16 %v3572, %v3572
        %v3701 = vpack.c.b16 %v3573, %v3573
        %v3702 = vpack.c.b16 %v3574, %v3574
        %v3703 = vpack.c.b16 %v3575, %v3575
        %v3704 = vpack.c.b16 %v3576, %v3576
        %v3705 = vpack.c.b16 %v3577, %v3577
        %v3706 = vpack.c.b16 %v3578, %v3578
        %v3707 = vpack.c.b16 %v3579, %v3579
        %v3708 = vpack.c.b16 %v3580, %v3580
        %v3709 = vpack.c.b16 %v3581, %v3581
        %v3710 = vpack.c.b16 %v3582, %v3582
        %v3711 = vpack.c.b16 %v3583, %v3583
        %v3712 = vpack.c.b16 %v3584, %v3584
        %v3713 = vpack.c.b16 %v3585, %v3585
        %v3714 = vpack.c.b16 %v3586, %v3586
        %v3715 = vpack.c.b16 %v3587, %v3587
        %v3716 = vpack.c.b16 %v3588, %v3588
        %v3717 = vpack.c.b16 %v3589, %v3589
        %v3718 = vpack.c.b16 %v3590, %v3590
        %vm3847 = vcmask 257024
        %3848 = vst.msk [vmem:[%s245] sm:$0xf] %vm3847, %v3591
        %3849 = vst.msk [vmem:[%s245 + $0x4] sm:$0xf] %vm3847, %v3592
        %3850 = vst.msk [vmem:[%s245 + $0x8] sm:$0xf] %vm3847, %v3593
        %3851 = vst.msk [vmem:[%s245 + $0xc] sm:$0xf] %vm3847, %v3594
        %3852 = vst.msk [vmem:[%s245 + $0x10] sm:$0xf] %vm3847, %v3595
        %3853 = vst.msk [vmem:[%s245 + $0x14] sm:$0xf] %vm3847, %v3596
        %3854 = vst.msk [vmem:[%s245 + $0x18] sm:$0xf] %vm3847, %v3597
        %3855 = vst.msk [vmem:[%s245 + $0x1c] sm:$0xf] %vm3847, %v3598
        %3856 = vst.msk [vmem:[%s245 + $0x20] sm:$0xf] %vm3847, %v3599
        %3857 = vst.msk [vmem:[%s245 + $0x24] sm:$0xf] %vm3847, %v3600
        %3858 = vst.msk [vmem:[%s245 + $0x28] sm:$0xf] %vm3847, %v3601
        %3859 = vst.msk [vmem:[%s245 + $0x2c] sm:$0xf] %vm3847, %v3602
        %3860 = vst.msk [vmem:[%s245 + $0x30] sm:$0xf] %vm3847, %v3603
        %3861 = vst.msk [vmem:[%s245 + $0x34] sm:$0xf] %vm3847, %v3604
        %3862 = vst.msk [vmem:[%s245 + $0x38] sm:$0xf] %vm3847, %v3605
        %3863 = vst.msk [vmem:[%s245 + $0x3c] sm:$0xf] %vm3847, %v3606
        %3864 = vst.msk [vmem:[%s245 + $0x40] sm:$0xf] %vm3847, %v3607
        %3865 = vst.msk [vmem:[%s245 + $0x44] sm:$0xf] %vm3847, %v3608
        %3866 = vst.msk [vmem:[%s245 + $0x48] sm:$0xf] %vm3847, %v3609
        %3867 = vst.msk [vmem:[%s245 + $0x4c] sm:$0xf] %vm3847, %v3610
        %3868 = vst.msk [vmem:[%s245 + $0x50] sm:$0xf] %vm3847, %v3611
        %3869 = vst.msk [vmem:[%s245 + $0x54] sm:$0xf] %vm3847, %v3612
        %3870 = vst.msk [vmem:[%s245 + $0x58] sm:$0xf] %vm3847, %v3613
        %3871 = vst.msk [vmem:[%s245 + $0x5c] sm:$0xf] %vm3847, %v3614
        %3872 = vst.msk [vmem:[%s245 + $0x60] sm:$0xf] %vm3847, %v3615
        %3873 = vst.msk [vmem:[%s245 + $0x64] sm:$0xf] %vm3847, %v3616
        %3874 = vst.msk [vmem:[%s245 + $0x68] sm:$0xf] %vm3847, %v3617
        %3875 = vst.msk [vmem:[%s245 + $0x6c] sm:$0xf] %vm3847, %v3618
        %3876 = vst.msk [vmem:[%s245 + $0x70] sm:$0xf] %vm3847, %v3619
        %3877 = vst.msk [vmem:[%s245 + $0x74] sm:$0xf] %vm3847, %v3620
        %3878 = vst.msk [vmem:[%s245 + $0x78] sm:$0xf] %vm3847, %v3621
        %3879 = vst.msk [vmem:[%s245 + $0x7c] sm:$0xf] %vm3847, %v3622
        %3880 = vst.msk [vmem:[%s245 + $0x80] sm:$0xf] %vm3847, %v3623
        %3881 = vst.msk [vmem:[%s245 + $0x84] sm:$0xf] %vm3847, %v3624
        %3882 = vst.msk [vmem:[%s245 + $0x88] sm:$0xf] %vm3847, %v3625
        %3883 = vst.msk [vmem:[%s245 + $0x8c] sm:$0xf] %vm3847, %v3626
        %3884 = vst.msk [vmem:[%s245 + $0x90] sm:$0xf] %vm3847, %v3627
        %3885 = vst.msk [vmem:[%s245 + $0x94] sm:$0xf] %vm3847, %v3628
        %3886 = vst.msk [vmem:[%s245 + $0x98] sm:$0xf] %vm3847, %v3629
        %3887 = vst.msk [vmem:[%s245 + $0x9c] sm:$0xf] %vm3847, %v3630
        %3888 = vst.msk [vmem:[%s245 + $0xa0] sm:$0xf] %vm3847, %v3631
        %3889 = vst.msk [vmem:[%s245 + $0xa4] sm:$0xf] %vm3847, %v3632
        %3890 = vst.msk [vmem:[%s245 + $0xa8] sm:$0xf] %vm3847, %v3633
        %3891 = vst.msk [vmem:[%s245 + $0xac] sm:$0xf] %vm3847, %v3634
        %3892 = vst.msk [vmem:[%s245 + $0xb0] sm:$0xf] %vm3847, %v3635
        %3893 = vst.msk [vmem:[%s245 + $0xb4] sm:$0xf] %vm3847, %v3636
        %3894 = vst.msk [vmem:[%s245 + $0xb8] sm:$0xf] %vm3847, %v3637
        %3895 = vst.msk [vmem:[%s245 + $0xbc] sm:$0xf] %vm3847, %v3638
        %3896 = vst.msk [vmem:[%s245 + $0xc0] sm:$0xf] %vm3847, %v3639
        %3897 = vst.msk [vmem:[%s245 + $0xc4] sm:$0xf] %vm3847, %v3640
        %3898 = vst.msk [vmem:[%s245 + $0xc8] sm:$0xf] %vm3847, %v3641
        %3899 = vst.msk [vmem:[%s245 + $0xcc] sm:$0xf] %vm3847, %v3642
        %3900 = vst.msk [vmem:[%s245 + $0xd0] sm:$0xf] %vm3847, %v3643
        %3901 = vst.msk [vmem:[%s245 + $0xd4] sm:$0xf] %vm3847, %v3644
        %3902 = vst.msk [vmem:[%s245 + $0xd8] sm:$0xf] %vm3847, %v3645
        %3903 = vst.msk [vmem:[%s245 + $0xdc] sm:$0xf] %vm3847, %v3646
        %3904 = vst.msk [vmem:[%s245 + $0xe0] sm:$0xf] %vm3847, %v3647
        %3905 = vst.msk [vmem:[%s245 + $0xe4] sm:$0xf] %vm3847, %v3648
        %3906 = vst.msk [vmem:[%s245 + $0xe8] sm:$0xf] %vm3847, %v3649
        %3907 = vst.msk [vmem:[%s245 + $0xec] sm:$0xf] %vm3847, %v3650
        %3908 = vst.msk [vmem:[%s245 + $0xf0] sm:$0xf] %vm3847, %v3651
        %3909 = vst.msk [vmem:[%s245 + $0xf4] sm:$0xf] %vm3847, %v3652
        %3910 = vst.msk [vmem:[%s245 + $0xf8] sm:$0xf] %vm3847, %v3653
        %3911 = vst.msk [vmem:[%s245 + $0xfc] sm:$0xf] %vm3847, %v3654
        %3912 = vst.msk [vmem:[%s245 + $0x100] sm:$0xf] %vm3847, %v3655
        %3913 = vst.msk [vmem:[%s245 + $0x104] sm:$0xf] %vm3847, %v3656
        %3914 = vst.msk [vmem:[%s245 + $0x108] sm:$0xf] %vm3847, %v3657
        %3915 = vst.msk [vmem:[%s245 + $0x10c] sm:$0xf] %vm3847, %v3658
        %3916 = vst.msk [vmem:[%s245 + $0x110] sm:$0xf] %vm3847, %v3659
        %3917 = vst.msk [vmem:[%s245 + $0x114] sm:$0xf] %vm3847, %v3660
        %3918 = vst.msk [vmem:[%s245 + $0x118] sm:$0xf] %vm3847, %v3661
        %3919 = vst.msk [vmem:[%s245 + $0x11c] sm:$0xf] %vm3847, %v3662
        %3920 = vst.msk [vmem:[%s245 + $0x120] sm:$0xf] %vm3847, %v3663
        %3921 = vst.msk [vmem:[%s245 + $0x124] sm:$0xf] %vm3847, %v3664
        %3922 = vst.msk [vmem:[%s245 + $0x128] sm:$0xf] %vm3847, %v3665
        %3923 = vst.msk [vmem:[%s245 + $0x12c] sm:$0xf] %vm3847, %v3666
        %3924 = vst.msk [vmem:[%s245 + $0x130] sm:$0xf] %vm3847, %v3667
        %3925 = vst.msk [vmem:[%s245 + $0x134] sm:$0xf] %vm3847, %v3668
        %3926 = vst.msk [vmem:[%s245 + $0x138] sm:$0xf] %vm3847, %v3669
        %3927 = vst.msk [vmem:[%s245 + $0x13c] sm:$0xf] %vm3847, %v3670
        %3928 = vst.msk [vmem:[%s245 + $0x140] sm:$0xf] %vm3847, %v3671
        %3929 = vst.msk [vmem:[%s245 + $0x144] sm:$0xf] %vm3847, %v3672
        %3930 = vst.msk [vmem:[%s245 + $0x148] sm:$0xf] %vm3847, %v3673
        %3931 = vst.msk [vmem:[%s245 + $0x14c] sm:$0xf] %vm3847, %v3674
        %3932 = vst.msk [vmem:[%s245 + $0x150] sm:$0xf] %vm3847, %v3675
        %3933 = vst.msk [vmem:[%s245 + $0x154] sm:$0xf] %vm3847, %v3676
        %3934 = vst.msk [vmem:[%s245 + $0x158] sm:$0xf] %vm3847, %v3677
        %3935 = vst.msk [vmem:[%s245 + $0x15c] sm:$0xf] %vm3847, %v3678
        %3936 = vst.msk [vmem:[%s245 + $0x160] sm:$0xf] %vm3847, %v3679
        %3937 = vst.msk [vmem:[%s245 + $0x164] sm:$0xf] %vm3847, %v3680
        %3938 = vst.msk [vmem:[%s245 + $0x168] sm:$0xf] %vm3847, %v3681
        %3939 = vst.msk [vmem:[%s245 + $0x16c] sm:$0xf] %vm3847, %v3682
        %3940 = vst.msk [vmem:[%s245 + $0x170] sm:$0xf] %vm3847, %v3683
        %3941 = vst.msk [vmem:[%s245 + $0x174] sm:$0xf] %vm3847, %v3684
        %3942 = vst.msk [vmem:[%s245 + $0x178] sm:$0xf] %vm3847, %v3685
        %3943 = vst.msk [vmem:[%s245 + $0x17c] sm:$0xf] %vm3847, %v3686
        %3944 = vst.msk [vmem:[%s245 + $0x180] sm:$0xf] %vm3847, %v3687
        %3945 = vst.msk [vmem:[%s245 + $0x184] sm:$0xf] %vm3847, %v3688
        %3946 = vst.msk [vmem:[%s245 + $0x188] sm:$0xf] %vm3847, %v3689
        %3947 = vst.msk [vmem:[%s245 + $0x18c] sm:$0xf] %vm3847, %v3690
        %3948 = vst.msk [vmem:[%s245 + $0x190] sm:$0xf] %vm3847, %v3691
        %3949 = vst.msk [vmem:[%s245 + $0x194] sm:$0xf] %vm3847, %v3692
        %3950 = vst.msk [vmem:[%s245 + $0x198] sm:$0xf] %vm3847, %v3693
        %3951 = vst.msk [vmem:[%s245 + $0x19c] sm:$0xf] %vm3847, %v3694
        %3952 = vst.msk [vmem:[%s245 + $0x1a0] sm:$0xf] %vm3847, %v3695
        %3953 = vst.msk [vmem:[%s245 + $0x1a4] sm:$0xf] %vm3847, %v3696
        %3954 = vst.msk [vmem:[%s245 + $0x1a8] sm:$0xf] %vm3847, %v3697
        %3955 = vst.msk [vmem:[%s245 + $0x1ac] sm:$0xf] %vm3847, %v3698
        %3956 = vst.msk [vmem:[%s245 + $0x1b0] sm:$0xf] %vm3847, %v3699
        %3957 = vst.msk [vmem:[%s245 + $0x1b4] sm:$0xf] %vm3847, %v3700
        %3958 = vst.msk [vmem:[%s245 + $0x1b8] sm:$0xf] %vm3847, %v3701
        %3959 = vst.msk [vmem:[%s245 + $0x1bc] sm:$0xf] %vm3847, %v3702
        %3960 = vst.msk [vmem:[%s245 + $0x1c0] sm:$0xf] %vm3847, %v3703
        %3961 = vst.msk [vmem:[%s245 + $0x1c4] sm:$0xf] %vm3847, %v3704
        %3962 = vst.msk [vmem:[%s245 + $0x1c8] sm:$0xf] %vm3847, %v3705
        %3963 = vst.msk [vmem:[%s245 + $0x1cc] sm:$0xf] %vm3847, %v3706
        %3964 = vst.msk [vmem:[%s245 + $0x1d0] sm:$0xf] %vm3847, %v3707
        %3965 = vst.msk [vmem:[%s245 + $0x1d4] sm:$0xf] %vm3847, %v3708
        %3966 = vst.msk [vmem:[%s245 + $0x1d8] sm:$0xf] %vm3847, %v3709
        %3967 = vst.msk [vmem:[%s245 + $0x1dc] sm:$0xf] %vm3847, %v3710
        %3968 = vst.msk [vmem:[%s245 + $0x1e0] sm:$0xf] %vm3847, %v3711
        %3969 = vst.msk [vmem:[%s245 + $0x1e4] sm:$0xf] %vm3847, %v3712
        %3970 = vst.msk [vmem:[%s245 + $0x1e8] sm:$0xf] %vm3847, %v3713
        %3971 = vst.msk [vmem:[%s245 + $0x1ec] sm:$0xf] %vm3847, %v3714
        %3972 = vst.msk [vmem:[%s245 + $0x1f0] sm:$0xf] %vm3847, %v3715
        %3973 = vst.msk [vmem:[%s245 + $0x1f4] sm:$0xf] %vm3847, %v3716
        %3974 = vst.msk [vmem:[%s245 + $0x1f8] sm:$0xf] %vm3847, %v3717
        %3975 = vst.msk [vmem:[%s245 + $0x1fc] sm:$0xf] %vm3847, %v3718
        %s3976 = sand.u32 %s113, 1
        %s3977 = scalar_lea.sflag [#allocation5], %s3976
        %s3978 = sand.u32 %s113, 1
        %s3979 = smul.addr %s3978, 512
        %s3980 = scalar_lea.vmem [#allocation8], %s3979
        // Predicated region
        $region41: #{tpu_custom_call.1} parent=31 // pred_check
          %p3981 = pneg %p123
        $region42: #{tpu_custom_call.1} parent=31 // pred_check_branch
          %3983 = sbr.rel (%p3981) target = $region44
        $region43: #{tpu_custom_call.1} parent=31 // pred_region
          #allocation12 [shape = 'u32[6]{0}', space=smem, size = 0x18, scoped, tag = 'DMA stride descriptor']
          %s3984 = smul.u32 8, %s26
          %s3986 = ssub.s32 8192, 8192
          %3987 = vsyncadd %s3977, %s3986
          %s3988 = smul.addr %s3984, 2
          %s3989 = smul.addr %s25, 256
          %s3990 = sadd.s32 %s3988, %s3989
          %s3991 = smul.addr %s3990, 64
          %s3992 = scalar_lea.hbm %s3, %s3991
          %s3994 = sshll.u32 1, 14
          %s3995 = sxor.u32 4294967295, %s3994
          %s3998 = sshll.u32 7, 18
          %s3999 = sxor.u32 4294967295, %s3998
          %s4000 = sand.u32 0, %s3999
          %s4002 = sor.u32 %s4000, 0
          %s4004 = sshll.u32 3, 24
          %s4005 = sxor.u32 4294967295, %s4004
          %s4006 = sand.u32 %s4002, %s4005
          %s4008 = sor.u32 %s4006, 0
          %s4009 = sshll.u32 %s3980, 4
          %s4010 = int_to_ptr.vmem [resolvable:$true] %s4009
          %4016 = sst [smem:[#allocation12]] 1024
          %s4017 = scalar_lea.smem [#allocation12], 1
          %4018 = sst [smem:[%s4017]] 2048
          %s4019 = scalar_lea.smem [#allocation12], 2
          %4020 = sst [smem:[%s4019]] 16
          %s4021 = scalar_lea.smem [#allocation12], 3
          %4022 = sst [smem:[%s4021]] 64
          %s4023 = scalar_lea.smem [#allocation12], 4
          %4024 = sst [smem:[%s4023]] 64
          %s4025 = scalar_lea.smem [#allocation12], 5
          %4026 = sst [smem:[%s4025]] 4
          %4028 = dma.general %s4010, 8192, %s3992, %s3977, [#allocation11], [#allocation12], %s4008, 0
        $region44: #{tpu_custom_call.1} parent=31 // pred_fallthru
          _
      $region32: #{tpu_custom_call.1} parent=5 // pred_fallthru
        _
      %p4029 = scmp.le.s32.totalorder 2, %s16
      // Predicated region
      $region45: #{tpu_custom_call.1} parent=5 // pred_check
        %p4030 = pneg %p4029
      $region46: #{tpu_custom_call.1} parent=5 // pred_check_branch
        %4032 = sbr.rel (%p4030) target = $region48
      $region47: #{tpu_custom_call.1} parent=5 // pred_region
        %s4033 = ssub.s32 %s16, 2
        // Predicated region
        $region49: #{tpu_custom_call.1} parent=47 // pred_check
          %p4034 = pneg %p129
        $region50: #{tpu_custom_call.1} parent=47 // pred_check_branch
          %4036 = sbr.rel (%p4034) target = $region52
        $region51: #{tpu_custom_call.1} parent=47 // pred_region
          %s4037 = sand.u32 %s114, 1
          %s4038 = scalar_lea.sflag [#allocation5], %s4037
          %s4039 = sand.u32 %s114, 1
          %s4040 = smul.addr %s4039, 512
          %s4041 = scalar_lea.vmem [#allocation8], %s4040
          %4042 = dma.done %s4038, 8192
        $region52: #{tpu_custom_call.1} parent=47 // pred_fallthru
          _
      $region48: #{tpu_custom_call.1} parent=5 // pred_fallthru
        _
    $region6: #{tpu_custom_call.1} parent=1 // loop_footer
      %s20 = sadd.s32 1, %s16
    $region7: #{tpu_custom_call.1} parent=1 // loop_footer_branch
      %15 = sbr.rel target = $region3
    $region8: #{tpu_custom_call.1} parent=1 // loop_exit
      _
    %4043 = vsyncpa [#allocation4], 1
    %s4044 = scalar_lea.sflag [#allocation4], 1
    %4045 = vsyncpa %s4044, 1
    %4046 = vsyncpa [#allocation7], 1
    %4047 = vsyncpa [#allocation5], 1
    %s4048 = scalar_lea.sflag [#allocation5], 1
    %4049 = vsyncpa %s4048, 1

</llo_original>
